<compile_context>
chip_gen: v7x
topology: tpu7x:2x2x1
jax: 0.10.0
libtpu: 0.0.40
codegen_flags: <defaults>
</compile_context>

<pallas_src>
import jax
import jax.numpy as jnp
from jax import lax
from jax.experimental import pallas as pl
from jax.experimental.pallas import tpu as pltpu

EPS = 1e-5          # nn.BatchNorm1d default eps
NEG_SLOPE = 0.01    # nn.LeakyReLU default negative_slope


def _leaky_relu(x):
    # identical to LeakyReLU for slope < 1, one fewer VALU op than where()
    return jnp.maximum(x, NEG_SLOPE * x)


def _cdiv(a, b):
    return -(-a // b)


def _round8(n):
    return _cdiv(n, 8) * 8


def init_params(key, input_dim, internal_dim=16, initial_dim=130):
    """Deterministic synthetic parameters (PyTorch-style uniform fan-in init)."""
    dims = [(input_dim, initial_dim),
            (initial_dim, internal_dim),
            (internal_dim, internal_dim),
            (internal_dim, internal_dim),
            (internal_dim, internal_dim),
            (internal_dim, 1)]
    bn_dims = [initial_dim, internal_dim, internal_dim, internal_dim]

    params = []
    keys = jax.random.split(key, 2 * len(dims))
    for i, (din, dout) in enumerate(dims):
        bound = 1.0 / jnp.sqrt(jnp.float32(din))
        w = jax.random.uniform(keys[2 * i], (din, dout), jnp.float32, -bound, bound)
        b = jax.random.uniform(keys[2 * i + 1], (1, dout), jnp.float32, -bound, bound)
        params.append((w, b))

    bn_params = []
    for d in bn_dims:
        gamma = jnp.ones((1, d), jnp.float32)   # BatchNorm1d default init
        beta = jnp.zeros((1, d), jnp.float32)
        bn_params.append((gamma, beta))
    return params, bn_params


def _reference_forward(x, params, bn_params):
    """Pure-JAX reference (training-mode BN, f32)."""
    (w1, b1), (w2, b2), (w3, b3), (w4, b4), (w5, b5), (w6, b6) = params
    h = x
    for (w, b), (g, be) in zip([(w1, b1), (w2, b2), (w3, b3), (w4, b4)], bn_params):
        h = _leaky_relu(h @ w + b)
        mean = jnp.mean(h, axis=0, keepdims=True)
        var = jnp.mean((h - mean) ** 2, axis=0, keepdims=True)
        h = (h - mean) * lax.rsqrt(var + EPS) * g + be
    h = _leaky_relu(h @ w5 + b5)
    return h @ w6 + b6


def binary_classifier_forward(x, params, bn_params, *, block_b=1024):
    """Forward pass.  x: (B, input_dim) f32.  Returns (B, 1) f32 logits."""
    (w1, b1), (w2, b2), (w3, b3), (w4, b4), (w5, b5), (w6, b6) = params
    (g1, be1), (g2, be2), (g3, be3), (g4, be4) = bn_params

    B, IN = x.shape
    D1 = w1.shape[1]          # initial_dim (130 -> pads to 256 lanes)
    D2 = w2.shape[1]          # internal_dim (16)

    # ---- batch tiling: TB is a multiple of 128 (lane-dense output rows) ----
    TB = min(max(block_b, 128), _cdiv(B, 128) * 128)
    TB = (TB // 128) * 128
    n_tiles = _cdiv(B, TB)
    B_pad = n_tiles * TB
    last = n_tiles - 1
    have_pad = (B_pad != B)

    # h2 cache budget (VMEM lanes pad 16->128 => 512 B per batch row).
    # TODO(synk): add an HBM (bf16) spill path for very large batches.
    if B_pad * 128 * 4 > 24 * 1024 * 1024:
        raise NotImplementedError(
            "batch too large for the resident h2 VMEM cache; add HBM spill")

    x = x.astype(jnp.float32)
    if have_pad:
        x = jnp.pad(x, ((0, B_pad - B), (0, 0)))
    # pre-cast the dominant HBM stream + layer-1 weight to bf16 (MXU path)
    x_bf16 = x.astype(jnp.bfloat16)
    w1_bf16 = w1.astype(jnp.bfloat16)

    # tiny f32 pack for layer1/BN1 vectors: rows = [b1; gamma1; beta1]
    pv = jnp.concatenate([b1.reshape(1, D1), g1.reshape(1, D1),
                          be1.reshape(1, D1)], axis=0).astype(jnp.float32)

    # narrow f32 pack (R_TOT, D2): w2..w5, w6^T row, and remaining vectors
    R_W2 = 0
    R_W3 = _round8(D1)
    R_W4 = R_W3 + _round8(D2)
    R_W5 = R_W4 + _round8(D2)
    R_W6 = R_W5 + _round8(D2)
    R_VEC = R_W6 + 8
    RB2, RG2, RBE2 = R_VEC + 0, R_VEC + 1, R_VEC + 2
    RB3, RG3, RBE3 = R_VEC + 3, R_VEC + 4, R_VEC + 5
    RB4, RG4, RBE4 = R_VEC + 6, R_VEC + 7, R_VEC + 8
    RB5, RB6 = R_VEC + 9, R_VEC + 10
    R_TOT = _round8(R_VEC + 11)

    ps = jnp.zeros((R_TOT, D2), jnp.float32)
    ps = ps.at[R_W2:R_W2 + D1, :].set(w2.astype(jnp.float32))
    ps = ps.at[R_W3:R_W3 + D2, :].set(w3.astype(jnp.float32))
    ps = ps.at[R_W4:R_W4 + D2, :].set(w4.astype(jnp.float32))
    ps = ps.at[R_W5:R_W5 + D2, :].set(w5.astype(jnp.float32))
    ps = ps.at[R_W6, :].set(w6[:, 0].astype(jnp.float32))
    for row, v in ((RB2, b2), (RG2, g2), (RBE2, be2),
                   (RB3, b3), (RG3, g3), (RBE3, be3),
                   (RB4, b4), (RG4, g4), (RBE4, be4),
                   (RB5, b5)):
        ps = ps.at[row, :].set(v.reshape(D2).astype(jnp.float32))
    ps = ps.at[RB6, :].set(jnp.broadcast_to(b6.reshape(()).astype(jnp.float32), (D2,)))

    inv_b = 1.0 / float(B)

    def kernel(x_ref, w1_ref, pv_ref, ps_ref, out_ref, h2c, st1, st2):
        ph = pl.program_id(0)   # 0: BN1 stats sweep, 1: h2-cache / output sweep
        ti = pl.program_id(1)   # batch-tile index

        @pl.when((ph == 0) & (ti == 0))
        def _init():
            st1[...] = jnp.zeros_like(st1)
            st2[...] = jnp.zeros_like(st2)

        def tile_mask():
            rows = ti * TB + lax.broadcasted_iota(jnp.int32, (TB, 1), 0)
            return (rows < B).astype(jnp.float32)

        def accum(st, h):
            def add(hm):
                st[0:1, :] += jnp.sum(hm, axis=0, keepdims=True)
                st[1:2, :] += jnp.sum(hm * hm, axis=0, keepdims=True)
            if have_pad:
                # mask only on the last tile (mask in {0,1}: (h*m)^2 == h^2*m)
                @pl.when(ti == last)
                def _():
                    add(h * tile_mask())

                @pl.when(ti != last)
                def _():
                    add(h)
            else:
                add(h)

        def fold(sum_, sumsq, gamma, beta):
            mean = sum_ * inv_b
            var = jnp.maximum(sumsq * inv_b - mean * mean, 0.0)
            a = gamma * lax.rsqrt(var + EPS)
            return a, beta - mean * a

        # ---- layer 1 (both phases): bf16 MXU matmul, f32 accumulation ----
        h1 = jnp.dot(x_ref[...], w1_ref[...], preferred_element_type=jnp.float32)
        h1 = _leaky_relu(h1 + pv_ref[0:1, :])

        # ---- phase 0: BN1 statistics; fold scale/shift at the last tile ----
        @pl.when(ph == 0)
        def _phase0():
            accum(st1, h1)

            @pl.when(ti == last)
            def _():
                a1, c1 = fold(st1[0:1, :], st1[1:2, :],
                              pv_ref[1:2, :], pv_ref[2:3, :])
                st1[2:3, :] = a1
                st1[3:4, :] = c1

        # ---- phase 1: BN1-fold + layer 2, cache h2, BN2 stats, tail ----
        @pl.when(ph == 1)
        def _phase1():
            h1b = h1 * st1[2:3, :] + st1[3:4, :]
            h2 = _leaky_relu(
                jnp.dot(h1b, ps_ref[R_W2:R_W2 + D1, :],
                        preferred_element_type=jnp.float32)
                + ps_ref[RB2:RB2 + 1, :])
            h2c[ti] = h2
            accum(st2, h2)

            # Last tile: the whole rest of the network runs over the resident
            # h2 cache (three cheap 16-wide sweeps) and writes all logits into
            # the resident output block.
            @pl.when(ti == last)
            def _tail():
                a2, c2 = fold(st2[0:1, :], st2[1:2, :],
                              ps_ref[RG2:RG2 + 1, :], ps_ref[RBE2:RBE2 + 1, :])
                # hoist all parameter loads out of the sweeps
                w3 = ps_ref[R_W3:R_W3 + D2, :]
                w4 = ps_ref[R_W4:R_W4 + D2, :]
                w5 = ps_ref[R_W5:R_W5 + D2, :]
                w6r = ps_ref[R_W6:R_W6 + 1, :]
                b3 = ps_ref[RB3:RB3 + 1, :]
                b4 = ps_ref[RB4:RB4 + 1, :]
                b5 = ps_ref[RB5:RB5 + 1, :]
                b6 = ps_ref[RB6:RB6 + 1, :]
                g3, be3 = ps_ref[RG3:RG3 + 1, :], ps_ref[RBE3:RBE3 + 1, :]
                g4, be4 = ps_ref[RG4:RG4 + 1, :], ps_ref[RBE4:RBE4 + 1, :]

                def chunk_mask(i):
                    rows = i * TB + lax.broadcasted_iota(jnp.int32, (TB, 1), 0)
                    return (rows < B).astype(jnp.float32)

                def h3_of(i):
                    return _leaky_relu(
                        jnp.dot(h2c[i] * a2 + c2, w3,
                                preferred_element_type=jnp.float32) + b3)

                def stats(i, carry, h):
                    s, ss = carry
                    hm = h * chunk_mask(i) if have_pad else h
                    return (s + jnp.sum(hm, axis=0, keepdims=True),
                            ss + jnp.sum(hm * hm, axis=0, keepdims=True))

                zz = (jnp.zeros((1, D2), jnp.float32),
                      jnp.zeros((1, D2), jnp.float32))

                # sweep A: BN3 statistics
                s3, ss3 = lax.fori_loop(
                    0, n_tiles, lambda i, c: stats(i, c, h3_of(i)), zz)
                a3, c3 = fold(s3, ss3, g3, be3)

                def h4_of(i):
                    return _leaky_relu(
                        jnp.dot(h3_of(i) * a3 + c3, w4,
                                preferred_element_type=jnp.float32) + b4)

                # sweep B: BN4 statistics
                s4, ss4 = lax.fori_loop(
                    0, n_tiles, lambda i, c: stats(i, c, h4_of(i)), zz)
                a4, c4 = fold(s4, ss4, g4, be4)

                # sweep C: layer 5 + output layer, write all logits
                @pl.loop(0, n_tiles)
                def _out(i):
                    h5 = _leaky_relu(
                        jnp.dot(h4_of(i) * a4 + c4, w5,
                                preferred_element_type=jnp.float32) + b5)
                    logit = (jnp.sum(h5 * w6r, axis=-1, keepdims=True)
                             + b6[:, 0:1])          # (TB, 1)
                    out_ref[i] = logit[:, 0]        # lane-dense row store

    out = pl.pallas_call(
        kernel,
        out_shape=jax.ShapeDtypeStruct((n_tiles, TB), jnp.float32),
        grid_spec=pltpu.PrefetchScalarGridSpec(
            num_scalar_prefetch=0,
            grid=(2, n_tiles),
            in_specs=[
                pl.BlockSpec((TB, IN), lambda p, t: (t, 0)),      # x (bf16) tiles
                pl.BlockSpec((IN, D1), lambda p, t: (0, 0)),      # w1 (bf16, resident)
                pl.BlockSpec((3, D1), lambda p, t: (0, 0)),       # b1/g1/be1 (resident)
                pl.BlockSpec((R_TOT, D2), lambda p, t: (0, 0)),   # narrow pack (resident)
            ],
            # Constant-index output block: resident in VMEM for the whole
            # kernel, fully written in the final grid step, written back once.
            out_specs=pl.BlockSpec((n_tiles, TB), lambda p, t: (0, 0)),
            scratch_shapes=[
                pltpu.VMEM((n_tiles, TB, D2), jnp.float32),  # h2 activation cache
                pltpu.VMEM((4, D1), jnp.float32),            # BN1 sum/sumsq/a/c
                pltpu.VMEM((2, D2), jnp.float32),            # BN2 sum/sumsq
            ],
        ),
        compiler_params=pltpu.CompilerParams(
            # Both axes sequential: full-batch BN statistics accumulate in a
            # single VMEM scratch across tiles (see v7x TODO above).
            dimension_semantics=("arbitrary", "arbitrary"),
            vmem_limit_bytes=48 * 1024 * 1024,
        ),
    )(x_bf16, w1_bf16, pv, ps)

    # Back to the module's (B, 1) logit shape.
    return out.reshape(B_pad)[:B, None]


if __name__ == "__main__":
    key = jax.random.PRNGKey(0)
    k_params, k_x = jax.random.split(key)

    batch = 64
    input_dim = 32
    x = jax.random.normal(k_x, (batch, input_dim), dtype=jnp.float32)

    params, bn_params = init_params(k_params, input_dim,
                                    internal_dim=16, initial_dim=130)

    logits = binary_classifier_forward(x, params, bn_params)
    jax.block_until_ready(logits)
    assert logits.shape == (batch, 1)

    # Correctness check vs. the pure-JAX reference.  Loose tolerance covers
    # the bf16 layer-1 MXU path (everything else accumulates in f32).
    ref = _reference_forward(x, params, bn_params)
    max_err = float(jnp.max(jnp.abs(logits - ref)))
    assert max_err < 2e-1, f"max abs err {max_err}"

    print("KERNEL_OK")
</pallas_src>

<mosaic_0001>
module attributes {stable_mosaic.version = 11 : i64} {
  func.func @kernel(%arg0: i32, %arg1: i32, %arg2: memref<128x32xbf16, #tpu.memory_space<vmem>>, %arg3: memref<32x130xbf16, #tpu.memory_space<vmem>>, %arg4: memref<3x130xf32, #tpu.memory_space<vmem>>, %arg5: memref<208x16xf32, #tpu.memory_space<vmem>>, %arg6: memref<1x128xf32, #tpu.memory_space<vmem>>, %arg7: memref<1x128x16xf32, #tpu.memory_space<vmem>>, %arg8: memref<4x130xf32, #tpu.memory_space<vmem>>, %arg9: memref<2x16xf32, #tpu.memory_space<vmem>>) attributes {dimension_semantics = [#tpu.dimension_semantics<arbitrary>, #tpu.dimension_semantics<arbitrary>], iteration_bounds = array<i64: 2, 1>, scalar_prefetch = 0 : i64, scratch_operands = 3 : i64, tpu.core_type = #tpu.core_type<tc>, window_params = [{transform_indices = @transform_0, window_bounds = array<i64: 128, 32>}, {pipeline_mode = #tpu.pipeline_mode<synchronous>, transform_indices = @transform_1, window_bounds = array<i64: 32, 130>}, {pipeline_mode = #tpu.pipeline_mode<synchronous>, transform_indices = @transform_2, window_bounds = array<i64: 3, 130>}, {pipeline_mode = #tpu.pipeline_mode<synchronous>, transform_indices = @transform_3, window_bounds = array<i64: 208, 16>}, {pipeline_mode = #tpu.pipeline_mode<synchronous>, transform_indices = @transform_4, window_bounds = array<i64: 1, 128>}]} {
    %c0_i32 = arith.constant 0 : i32
    %0 = arith.cmpi eq, %arg0, %c0_i32 : i32
    %c0_i32_0 = arith.constant 0 : i32
    %1 = arith.cmpi eq, %arg1, %c0_i32_0 : i32
    %2 = arith.andi %0, %1 : i1
    %3 = arith.extui %2 : i1 to i32
    %c0_i32_1 = arith.constant 0 : i32
    %4 = arith.cmpi ne, %3, %c0_i32_1 : i32
    scf.if %4 {
      %cst_11 = arith.constant 0.000000e+00 : f32
      %20 = vector.broadcast %cst_11 : f32 to vector<4x130xf32>
      %c0_12 = arith.constant 0 : index
      %c0_13 = arith.constant 0 : index
      %21 = vector.load %arg8[%c0_12, %c0_13] : memref<4x130xf32, #tpu.memory_space<vmem>>, vector<4x130xf32>
      tpu.vector_store %arg8[%c0_12, %c0_13], %20 {strides = array<i32>} : memref<4x130xf32, #tpu.memory_space<vmem>>, vector<4x130xf32>,
      %cst_14 = arith.constant 0.000000e+00 : f32
      %22 = vector.broadcast %cst_14 : f32 to vector<2x16xf32>
      %c0_15 = arith.constant 0 : index
      %c0_16 = arith.constant 0 : index
      %23 = vector.load %arg9[%c0_15, %c0_16] : memref<2x16xf32, #tpu.memory_space<vmem>>, vector<2x16xf32>
      tpu.vector_store %arg9[%c0_15, %c0_16], %22 {strides = array<i32>} : memref<2x16xf32, #tpu.memory_space<vmem>>, vector<2x16xf32>,
    } else {
    }
    %c0 = arith.constant 0 : index
    %c0_2 = arith.constant 0 : index
    %5 = vector.load %arg2[%c0, %c0_2] : memref<128x32xbf16, #tpu.memory_space<vmem>>, vector<128x32xbf16>
    %c0_3 = arith.constant 0 : index
    %c0_4 = arith.constant 0 : index
    %6 = vector.load %arg3[%c0_3, %c0_4] : memref<32x130xbf16, #tpu.memory_space<vmem>>, vector<32x130xbf16>
    %cst = arith.constant dense<0.000000e+00> : vector<128x130xf32>
    %7 = tpu.matmul %5, %6, %cst {dimension_numbers = #tpu.dot_dimension_numbers<[1], [0], [0], [1], [0, 0, 1, 1], [], []>} : vector<128x32xbf16>, vector<32x130xbf16>, vector<128x130xf32> -> vector<128x130xf32>
    %c0_5 = arith.constant 0 : index
    %c0_6 = arith.constant 0 : index
    %8 = vector.load %arg4[%c0_5, %c0_6] : memref<3x130xf32, #tpu.memory_space<vmem>>, vector<1x130xf32>
    %9 = vector.broadcast %8 : vector<1x130xf32> to vector<128x130xf32>
    %10 = arith.addf %7, %9 : vector<128x130xf32>
    %cst_7 = arith.constant 0.00999999977 : f32
    %11 = vector.broadcast %cst_7 : f32 to vector<128x130xf32>
    %12 = arith.mulf %11, %10 : vector<128x130xf32>
    %13 = arith.maximumf %10, %12 : vector<128x130xf32>
    %c0_i32_8 = arith.constant 0 : i32
    %14 = arith.cmpi eq, %arg0, %c0_i32_8 : i32
    %15 = arith.extui %14 : i1 to i32
    %c0_i32_9 = arith.constant 0 : i32
    %16 = arith.cmpi ne, %15, %c0_i32_9 : i32
    scf.if %16 {
      %c0_i32_11 = arith.constant 0 : i32
      %20 = arith.cmpi eq, %arg1, %c0_i32_11 : i32
      %21 = arith.extui %20 : i1 to i32
      %c0_i32_12 = arith.constant 0 : i32
      %22 = arith.cmpi ne, %21, %c0_i32_12 : i32
      scf.if %22 {
        %c128_i32 = arith.constant 128 : i32
        %29 = arith.muli %arg1, %c128_i32 : i32
        %30 = tpu.iota {dimensions = array<i32: 0>} : vector<128x1xi32>
        %31 = vector.broadcast %29 : i32 to vector<128x1xi32>
        %32 = arith.addi %31, %30 : vector<128x1xi32>
        %c64_i32 = arith.constant 64 : i32
        %33 = vector.broadcast %c64_i32 : i32 to vector<128x1xi32>
        %34 = arith.cmpi slt, %32, %33 : vector<128x1xi32>
        %35 = arith.extui %34 : vector<128x1xi1> to vector<128x1xi32>
        %36 = arith.sitofp %35 : vector<128x1xi32> to vector<128x1xf32>
        %37 = vector.broadcast %36 : vector<128x1xf32> to vector<128x130xf32>
        %38 = arith.mulf %13, %37 : vector<128x130xf32>
        %c0_17 = arith.constant 0 : index
        %c0_18 = arith.constant 0 : index
        %39 = vector.load %arg8[%c0_17, %c0_18] : memref<4x130xf32, #tpu.memory_space<vmem>>, vector<1x130xf32>
        %cst_19 = arith.constant dense<0.000000e+00> : vector<130xf32>
        %40 = vector.multi_reduction <add>, %38, %cst_19 [0] : vector<128x130xf32> to vector<130xf32>
        %41 = vector.shape_cast %40 : vector<130xf32> to vector<1x130xf32>
        %42 = arith.addf %39, %41 : vector<1x130xf32>
        %c0_20 = arith.constant 0 : index
        %c0_21 = arith.constant 0 : index
        %43 = vector.load %arg8[%c0_20, %c0_21] : memref<4x130xf32, #tpu.memory_space<vmem>>, vector<1x130xf32>
        tpu.vector_store %arg8[%c0_20, %c0_21], %42 {strides = array<i32>} : memref<4x130xf32, #tpu.memory_space<vmem>>, vector<1x130xf32>,
        %c1 = arith.constant 1 : index
        %c0_22 = arith.constant 0 : index
        %44 = vector.load %arg8[%c1, %c0_22] : memref<4x130xf32, #tpu.memory_space<vmem>>, vector<1x130xf32>
        %45 = arith.mulf %38, %38 : vector<128x130xf32>
        %cst_23 = arith.constant dense<0.000000e+00> : vector<130xf32>
        %46 = vector.multi_reduction <add>, %45, %cst_23 [0] : vector<128x130xf32> to vector<130xf32>
        %47 = vector.shape_cast %46 : vector<130xf32> to vector<1x130xf32>
        %48 = arith.addf %44, %47 : vector<1x130xf32>
        %c1_24 = arith.constant 1 : index
        %c0_25 = arith.constant 0 : index
        %49 = vector.load %arg8[%c1_24, %c0_25] : memref<4x130xf32, #tpu.memory_space<vmem>>, vector<1x130xf32>
        tpu.vector_store %arg8[%c1_24, %c0_25], %48 {strides = array<i32>} : memref<4x130xf32, #tpu.memory_space<vmem>>, vector<1x130xf32>,
      } else {
      }
      %c0_i32_13 = arith.constant 0 : i32
      %23 = arith.cmpi ne, %arg1, %c0_i32_13 : i32
      %24 = arith.extui %23 : i1 to i32
      %c0_i32_14 = arith.constant 0 : i32
      %25 = arith.cmpi ne, %24, %c0_i32_14 : i32
      scf.if %25 {
        %c0_17 = arith.constant 0 : index
        %c0_18 = arith.constant 0 : index
        %29 = vector.load %arg8[%c0_17, %c0_18] : memref<4x130xf32, #tpu.memory_space<vmem>>, vector<1x130xf32>
        %cst_19 = arith.constant dense<0.000000e+00> : vector<130xf32>
        %30 = vector.multi_reduction <add>, %13, %cst_19 [0] : vector<128x130xf32> to vector<130xf32>
        %31 = vector.shape_cast %30 : vector<130xf32> to vector<1x130xf32>
        %32 = arith.addf %29, %31 : vector<1x130xf32>
        %c0_20 = arith.constant 0 : index
        %c0_21 = arith.constant 0 : index
        %33 = vector.load %arg8[%c0_20, %c0_21] : memref<4x130xf32, #tpu.memory_space<vmem>>, vector<1x130xf32>
        tpu.vector_store %arg8[%c0_20, %c0_21], %32 {strides = array<i32>} : memref<4x130xf32, #tpu.memory_space<vmem>>, vector<1x130xf32>,
        %c1 = arith.constant 1 : index
        %c0_22 = arith.constant 0 : index
        %34 = vector.load %arg8[%c1, %c0_22] : memref<4x130xf32, #tpu.memory_space<vmem>>, vector<1x130xf32>
        %35 = arith.mulf %13, %13 : vector<128x130xf32>
        %cst_23 = arith.constant dense<0.000000e+00> : vector<130xf32>
        %36 = vector.multi_reduction <add>, %35, %cst_23 [0] : vector<128x130xf32> to vector<130xf32>
        %37 = vector.shape_cast %36 : vector<130xf32> to vector<1x130xf32>
        %38 = arith.addf %34, %37 : vector<1x130xf32>
        %c1_24 = arith.constant 1 : index
        %c0_25 = arith.constant 0 : index
        %39 = vector.load %arg8[%c1_24, %c0_25] : memref<4x130xf32, #tpu.memory_space<vmem>>, vector<1x130xf32>
        tpu.vector_store %arg8[%c1_24, %c0_25], %38 {strides = array<i32>} : memref<4x130xf32, #tpu.memory_space<vmem>>, vector<1x130xf32>,
      } else {
      }
      %c0_i32_15 = arith.constant 0 : i32
      %26 = arith.cmpi eq, %arg1, %c0_i32_15 : i32
      %27 = arith.extui %26 : i1 to i32
      %c0_i32_16 = arith.constant 0 : i32
      %28 = arith.cmpi ne, %27, %c0_i32_16 : i32
      scf.if %28 {
        %c0_17 = arith.constant 0 : index
        %c0_18 = arith.constant 0 : index
        %29 = vector.load %arg8[%c0_17, %c0_18] : memref<4x130xf32, #tpu.memory_space<vmem>>, vector<1x130xf32>
        %c1 = arith.constant 1 : index
        %c0_19 = arith.constant 0 : index
        %30 = vector.load %arg8[%c1, %c0_19] : memref<4x130xf32, #tpu.memory_space<vmem>>, vector<1x130xf32>
        %c1_20 = arith.constant 1 : index
        %c0_21 = arith.constant 0 : index
        %31 = vector.load %arg4[%c1_20, %c0_21] : memref<3x130xf32, #tpu.memory_space<vmem>>, vector<1x130xf32>
        %c2 = arith.constant 2 : index
        %c0_22 = arith.constant 0 : index
        %32 = vector.load %arg4[%c2, %c0_22] : memref<3x130xf32, #tpu.memory_space<vmem>>, vector<1x130xf32>
        %cst_23 = arith.constant 1.562500e-02 : f32
        %33 = vector.broadcast %cst_23 : f32 to vector<1x130xf32>
        %34 = arith.mulf %29, %33 : vector<1x130xf32>
        %cst_24 = arith.constant 1.562500e-02 : f32
        %35 = vector.broadcast %cst_24 : f32 to vector<1x130xf32>
        %36 = arith.mulf %30, %35 : vector<1x130xf32>
        %37 = arith.mulf %34, %34 : vector<1x130xf32>
        %38 = arith.subf %36, %37 : vector<1x130xf32>
        %cst_25 = arith.constant 0.000000e+00 : f32
        %39 = vector.broadcast %cst_25 : f32 to vector<1x130xf32>
        %40 = arith.maximumf %38, %39 : vector<1x130xf32>
        %cst_26 = arith.constant 9.99999974E-6 : f32
        %41 = vector.broadcast %cst_26 : f32 to vector<1x130xf32>
        %42 = arith.addf %40, %41 : vector<1x130xf32>
        %43 = math.rsqrt %42 : vector<1x130xf32>
        %44 = arith.mulf %31, %43 : vector<1x130xf32>
        %45 = arith.mulf %34, %44 : vector<1x130xf32>
        %46 = arith.subf %32, %45 : vector<1x130xf32>
        %c2_27 = arith.constant 2 : index
        %c0_28 = arith.constant 0 : index
        %47 = vector.load %arg8[%c2_27, %c0_28] : memref<4x130xf32, #tpu.memory_space<vmem>>, vector<1x130xf32>
        tpu.vector_store %arg8[%c2_27, %c0_28], %44 {strides = array<i32>} : memref<4x130xf32, #tpu.memory_space<vmem>>, vector<1x130xf32>,
        %c3 = arith.constant 3 : index
        %c0_29 = arith.constant 0 : index
        %48 = vector.load %arg8[%c3, %c0_29] : memref<4x130xf32, #tpu.memory_space<vmem>>, vector<1x130xf32>
        tpu.vector_store %arg8[%c3, %c0_29], %46 {strides = array<i32>} : memref<4x130xf32, #tpu.memory_space<vmem>>, vector<1x130xf32>,
      } else {
      }
    } else {
    }
    %c1_i32 = arith.constant 1 : i32
    %17 = arith.cmpi eq, %arg0, %c1_i32 : i32
    %18 = arith.extui %17 : i1 to i32
    %c0_i32_10 = arith.constant 0 : i32
    %19 = arith.cmpi ne, %18, %c0_i32_10 : i32
    scf.if %19 {
      %c2 = arith.constant 2 : index
      %c0_11 = arith.constant 0 : index
      %20 = vector.load %arg8[%c2, %c0_11] : memref<4x130xf32, #tpu.memory_space<vmem>>, vector<1x130xf32>
      %21 = vector.broadcast %20 : vector<1x130xf32> to vector<128x130xf32>
      %22 = arith.mulf %13, %21 : vector<128x130xf32>
      %c3 = arith.constant 3 : index
      %c0_12 = arith.constant 0 : index
      %23 = vector.load %arg8[%c3, %c0_12] : memref<4x130xf32, #tpu.memory_space<vmem>>, vector<1x130xf32>
      %24 = vector.broadcast %23 : vector<1x130xf32> to vector<128x130xf32>
      %25 = arith.addf %22, %24 : vector<128x130xf32>
      %c0_13 = arith.constant 0 : index
      %c0_14 = arith.constant 0 : index
      %26 = vector.load %arg5[%c0_13, %c0_14] : memref<208x16xf32, #tpu.memory_space<vmem>>, vector<130x16xf32>
      %cst_15 = arith.constant dense<0.000000e+00> : vector<128x16xf32>
      %27 = tpu.matmul %25, %26, %cst_15 {dimension_numbers = #tpu.dot_dimension_numbers<[1], [0], [0], [1], [0, 0, 1, 1], [], []>} : vector<128x130xf32>, vector<130x16xf32>, vector<128x16xf32> -> vector<128x16xf32>
      %c192 = arith.constant 192 : index
      %c0_16 = arith.constant 0 : index
      %28 = vector.load %arg5[%c192, %c0_16] : memref<208x16xf32, #tpu.memory_space<vmem>>, vector<1x16xf32>
      %29 = vector.broadcast %28 : vector<1x16xf32> to vector<128x16xf32>
      %30 = arith.addf %27, %29 : vector<128x16xf32>
      %cst_17 = arith.constant 0.00999999977 : f32
      %31 = vector.broadcast %cst_17 : f32 to vector<128x16xf32>
      %32 = arith.mulf %31, %30 : vector<128x16xf32>
      %33 = arith.maximumf %30, %32 : vector<128x16xf32>
      %34 = arith.index_cast %arg1 : i32 to index
      %c0_18 = arith.constant 0 : index
      %c0_19 = arith.constant 0 : index
      %35 = vector.load %arg7[%34, %c0_18, %c0_19] : memref<1x128x16xf32, #tpu.memory_space<vmem>>, vector<1x128x16xf32>
      %36 = vector.shape_cast %35 : vector<1x128x16xf32> to vector<128x16xf32>
      %37 = vector.shape_cast %33 : vector<128x16xf32> to vector<1x128x16xf32>
      tpu.vector_store %arg7[%34, %c0_18, %c0_19], %37 {strides = array<i32>} : memref<1x128x16xf32, #tpu.memory_space<vmem>>, vector<1x128x16xf32>,
      %c0_i32_20 = arith.constant 0 : i32
      %38 = arith.cmpi eq, %arg1, %c0_i32_20 : i32
      %39 = arith.extui %38 : i1 to i32
      %c0_i32_21 = arith.constant 0 : i32
      %40 = arith.cmpi ne, %39, %c0_i32_21 : i32
      scf.if %40 {
        %c128_i32 = arith.constant 128 : i32
        %47 = arith.muli %arg1, %c128_i32 : i32
        %48 = tpu.iota {dimensions = array<i32: 0>} : vector<128x1xi32>
        %49 = vector.broadcast %47 : i32 to vector<128x1xi32>
        %50 = arith.addi %49, %48 : vector<128x1xi32>
        %c64_i32 = arith.constant 64 : i32
        %51 = vector.broadcast %c64_i32 : i32 to vector<128x1xi32>
        %52 = arith.cmpi slt, %50, %51 : vector<128x1xi32>
        %53 = arith.extui %52 : vector<128x1xi1> to vector<128x1xi32>
        %54 = arith.sitofp %53 : vector<128x1xi32> to vector<128x1xf32>
        %55 = vector.broadcast %54 : vector<128x1xf32> to vector<128x16xf32>
        %56 = arith.mulf %33, %55 : vector<128x16xf32>
        %c0_26 = arith.constant 0 : index
        %c0_27 = arith.constant 0 : index
        %57 = vector.load %arg9[%c0_26, %c0_27] : memref<2x16xf32, #tpu.memory_space<vmem>>, vector<1x16xf32>
        %cst_28 = arith.constant dense<0.000000e+00> : vector<16xf32>
        %58 = vector.multi_reduction <add>, %56, %cst_28 [0] : vector<128x16xf32> to vector<16xf32>
        %59 = vector.shape_cast %58 : vector<16xf32> to vector<1x16xf32>
        %60 = arith.addf %57, %59 : vector<1x16xf32>
        %c0_29 = arith.constant 0 : index
        %c0_30 = arith.constant 0 : index
        %61 = vector.load %arg9[%c0_29, %c0_30] : memref<2x16xf32, #tpu.memory_space<vmem>>, vector<1x16xf32>
        tpu.vector_store %arg9[%c0_29, %c0_30], %60 {strides = array<i32>} : memref<2x16xf32, #tpu.memory_space<vmem>>, vector<1x16xf32>,
        %c1 = arith.constant 1 : index
        %c0_31 = arith.constant 0 : index
        %62 = vector.load %arg9[%c1, %c0_31] : memref<2x16xf32, #tpu.memory_space<vmem>>, vector<1x16xf32>
        %63 = arith.mulf %56, %56 : vector<128x16xf32>
        %cst_32 = arith.constant dense<0.000000e+00> : vector<16xf32>
        %64 = vector.multi_reduction <add>, %63, %cst_32 [0] : vector<128x16xf32> to vector<16xf32>
        %65 = vector.shape_cast %64 : vector<16xf32> to vector<1x16xf32>
        %66 = arith.addf %62, %65 : vector<1x16xf32>
        %c1_33 = arith.constant 1 : index
        %c0_34 = arith.constant 0 : index
        %67 = vector.load %arg9[%c1_33, %c0_34] : memref<2x16xf32, #tpu.memory_space<vmem>>, vector<1x16xf32>
        tpu.vector_store %arg9[%c1_33, %c0_34], %66 {strides = array<i32>} : memref<2x16xf32, #tpu.memory_space<vmem>>, vector<1x16xf32>,
      } else {
      }
      %c0_i32_22 = arith.constant 0 : i32
      %41 = arith.cmpi ne, %arg1, %c0_i32_22 : i32
      %42 = arith.extui %41 : i1 to i32
      %c0_i32_23 = arith.constant 0 : i32
      %43 = arith.cmpi ne, %42, %c0_i32_23 : i32
      scf.if %43 {
        %c0_26 = arith.constant 0 : index
        %c0_27 = arith.constant 0 : index
        %47 = vector.load %arg9[%c0_26, %c0_27] : memref<2x16xf32, #tpu.memory_space<vmem>>, vector<1x16xf32>
        %cst_28 = arith.constant dense<0.000000e+00> : vector<16xf32>
        %48 = vector.multi_reduction <add>, %33, %cst_28 [0] : vector<128x16xf32> to vector<16xf32>
        %49 = vector.shape_cast %48 : vector<16xf32> to vector<1x16xf32>
        %50 = arith.addf %47, %49 : vector<1x16xf32>
        %c0_29 = arith.constant 0 : index
        %c0_30 = arith.constant 0 : index
        %51 = vector.load %arg9[%c0_29, %c0_30] : memref<2x16xf32, #tpu.memory_space<vmem>>, vector<1x16xf32>
        tpu.vector_store %arg9[%c0_29, %c0_30], %50 {strides = array<i32>} : memref<2x16xf32, #tpu.memory_space<vmem>>, vector<1x16xf32>,
        %c1 = arith.constant 1 : index
        %c0_31 = arith.constant 0 : index
        %52 = vector.load %arg9[%c1, %c0_31] : memref<2x16xf32, #tpu.memory_space<vmem>>, vector<1x16xf32>
        %53 = arith.mulf %33, %33 : vector<128x16xf32>
        %cst_32 = arith.constant dense<0.000000e+00> : vector<16xf32>
        %54 = vector.multi_reduction <add>, %53, %cst_32 [0] : vector<128x16xf32> to vector<16xf32>
        %55 = vector.shape_cast %54 : vector<16xf32> to vector<1x16xf32>
        %56 = arith.addf %52, %55 : vector<1x16xf32>
        %c1_33 = arith.constant 1 : index
        %c0_34 = arith.constant 0 : index
        %57 = vector.load %arg9[%c1_33, %c0_34] : memref<2x16xf32, #tpu.memory_space<vmem>>, vector<1x16xf32>
        tpu.vector_store %arg9[%c1_33, %c0_34], %56 {strides = array<i32>} : memref<2x16xf32, #tpu.memory_space<vmem>>, vector<1x16xf32>,
      } else {
      }
      %c0_i32_24 = arith.constant 0 : i32
      %44 = arith.cmpi eq, %arg1, %c0_i32_24 : i32
      %45 = arith.extui %44 : i1 to i32
      %c0_i32_25 = arith.constant 0 : i32
      %46 = arith.cmpi ne, %45, %c0_i32_25 : i32
      scf.if %46 {
        %c0_26 = arith.constant 0 : index
        %c0_27 = arith.constant 0 : index
        %47 = vector.load %arg9[%c0_26, %c0_27] : memref<2x16xf32, #tpu.memory_space<vmem>>, vector<1x16xf32>
        %c1 = arith.constant 1 : index
        %c0_28 = arith.constant 0 : index
        %48 = vector.load %arg9[%c1, %c0_28] : memref<2x16xf32, #tpu.memory_space<vmem>>, vector<1x16xf32>
        %c193 = arith.constant 193 : index
        %c0_29 = arith.constant 0 : index
        %49 = vector.load %arg5[%c193, %c0_29] : memref<208x16xf32, #tpu.memory_space<vmem>>, vector<1x16xf32>
        %c194 = arith.constant 194 : index
        %c0_30 = arith.constant 0 : index
        %50 = vector.load %arg5[%c194, %c0_30] : memref<208x16xf32, #tpu.memory_space<vmem>>, vector<1x16xf32>
        %cst_31 = arith.constant 1.562500e-02 : f32
        %51 = vector.broadcast %cst_31 : f32 to vector<1x16xf32>
        %52 = arith.mulf %47, %51 : vector<1x16xf32>
        %cst_32 = arith.constant 1.562500e-02 : f32
        %53 = vector.broadcast %cst_32 : f32 to vector<1x16xf32>
        %54 = arith.mulf %48, %53 : vector<1x16xf32>
        %55 = arith.mulf %52, %52 : vector<1x16xf32>
        %56 = arith.subf %54, %55 : vector<1x16xf32>
        %cst_33 = arith.constant 0.000000e+00 : f32
        %57 = vector.broadcast %cst_33 : f32 to vector<1x16xf32>
        %58 = arith.maximumf %56, %57 : vector<1x16xf32>
        %cst_34 = arith.constant 9.99999974E-6 : f32
        %59 = vector.broadcast %cst_34 : f32 to vector<1x16xf32>
        %60 = arith.addf %58, %59 : vector<1x16xf32>
        %61 = math.rsqrt %60 : vector<1x16xf32>
        %62 = arith.mulf %49, %61 : vector<1x16xf32>
        %63 = arith.mulf %52, %62 : vector<1x16xf32>
        %64 = arith.subf %50, %63 : vector<1x16xf32>
        %c136 = arith.constant 136 : index
        %c0_35 = arith.constant 0 : index
        %65 = vector.load %arg5[%c136, %c0_35] : memref<208x16xf32, #tpu.memory_space<vmem>>, vector<16x16xf32>
        %c152 = arith.constant 152 : index
        %c0_36 = arith.constant 0 : index
        %66 = vector.load %arg5[%c152, %c0_36] : memref<208x16xf32, #tpu.memory_space<vmem>>, vector<16x16xf32>
        %c168 = arith.constant 168 : index
        %c0_37 = arith.constant 0 : index
        %67 = vector.load %arg5[%c168, %c0_37] : memref<208x16xf32, #tpu.memory_space<vmem>>, vector<16x16xf32>
        %c184 = arith.constant 184 : index
        %c0_38 = arith.constant 0 : index
        %68 = vector.load %arg5[%c184, %c0_38] : memref<208x16xf32, #tpu.memory_space<vmem>>, vector<1x16xf32>
        %c195 = arith.constant 195 : index
        %c0_39 = arith.constant 0 : index
        %69 = vector.load %arg5[%c195, %c0_39] : memref<208x16xf32, #tpu.memory_space<vmem>>, vector<1x16xf32>
        %c198 = arith.constant 198 : index
        %c0_40 = arith.constant 0 : index
        %70 = vector.load %arg5[%c198, %c0_40] : memref<208x16xf32, #tpu.memory_space<vmem>>, vector<1x16xf32>
        %c201 = arith.constant 201 : index
        %c0_41 = arith.constant 0 : index
        %71 = vector.load %arg5[%c201, %c0_41] : memref<208x16xf32, #tpu.memory_space<vmem>>, vector<1x16xf32>
        %c202 = arith.constant 202 : index
        %c0_42 = arith.constant 0 : index
        %72 = vector.load %arg5[%c202, %c0_42] : memref<208x16xf32, #tpu.memory_space<vmem>>, vector<1x16xf32>
        %c196 = arith.constant 196 : index
        %c0_43 = arith.constant 0 : index
        %73 = vector.load %arg5[%c196, %c0_43] : memref<208x16xf32, #tpu.memory_space<vmem>>, vector<1x16xf32>
        %c197 = arith.constant 197 : index
        %c0_44 = arith.constant 0 : index
        %74 = vector.load %arg5[%c197, %c0_44] : memref<208x16xf32, #tpu.memory_space<vmem>>, vector<1x16xf32>
        %c199 = arith.constant 199 : index
        %c0_45 = arith.constant 0 : index
        %75 = vector.load %arg5[%c199, %c0_45] : memref<208x16xf32, #tpu.memory_space<vmem>>, vector<1x16xf32>
        %c200 = arith.constant 200 : index
        %c0_46 = arith.constant 0 : index
        %76 = vector.load %arg5[%c200, %c0_46] : memref<208x16xf32, #tpu.memory_space<vmem>>, vector<1x16xf32>
        %cst_47 = arith.constant 0.000000e+00 : f32
        %77 = vector.broadcast %cst_47 : f32 to vector<1x16xf32>
        %cst_48 = arith.constant 0.000000e+00 : f32
        %78 = vector.broadcast %cst_48 : f32 to vector<1x16xf32>
        %c0_i32_49 = arith.constant 0 : i32
        %79 = arith.index_cast %c0_i32_49 : i32 to index
        %c0_50 = arith.constant 0 : index
        %c0_51 = arith.constant 0 : index
        %80 = vector.load %arg7[%79, %c0_50, %c0_51] : memref<1x128x16xf32, #tpu.memory_space<vmem>>, vector<1x128x16xf32>
        %81 = vector.shape_cast %80 : vector<1x128x16xf32> to vector<128x16xf32>
        %82 = vector.broadcast %62 : vector<1x16xf32> to vector<128x16xf32>
        %83 = arith.mulf %81, %82 : vector<128x16xf32>
        %84 = vector.broadcast %64 : vector<1x16xf32> to vector<128x16xf32>
        %85 = arith.addf %83, %84 : vector<128x16xf32>
        %cst_52 = arith.constant dense<0.000000e+00> : vector<128x16xf32>
        %86 = tpu.matmul %85, %65, %cst_52 {dimension_numbers = #tpu.dot_dimension_numbers<[1], [0], [0], [1], [0, 0, 1, 1], [], []>} : vector<128x16xf32>, vector<16x16xf32>, vector<128x16xf32> -> vector<128x16xf32>
        %87 = vector.broadcast %69 : vector<1x16xf32> to vector<128x16xf32>
        %88 = arith.addf %86, %87 : vector<128x16xf32>
        %cst_53 = arith.constant 0.00999999977 : f32
        %89 = vector.broadcast %cst_53 : f32 to vector<128x16xf32>
        %90 = arith.mulf %89, %88 : vector<128x16xf32>
        %91 = arith.maximumf %88, %90 : vector<128x16xf32>
        %c128_i32 = arith.constant 128 : i32
        %92 = arith.muli %c0_i32_49, %c128_i32 : i32
        %93 = tpu.iota {dimensions = array<i32: 0>} : vector<128x1xi32>
        %94 = vector.broadcast %92 : i32 to vector<128x1xi32>
        %95 = arith.addi %94, %93 : vector<128x1xi32>
        %c64_i32 = arith.constant 64 : i32
        %96 = vector.broadcast %c64_i32 : i32 to vector<128x1xi32>
        %97 = arith.cmpi slt, %95, %96 : vector<128x1xi32>
        %98 = arith.extui %97 : vector<128x1xi1> to vector<128x1xi32>
        %99 = arith.sitofp %98 : vector<128x1xi32> to vector<128x1xf32>
        %100 = vector.broadcast %99 : vector<128x1xf32> to vector<128x16xf32>
        %101 = arith.mulf %91, %100 : vector<128x16xf32>
        %cst_54 = arith.constant dense<0.000000e+00> : vector<16xf32>
        %102 = vector.multi_reduction <add>, %101, %cst_54 [0] : vector<128x16xf32> to vector<16xf32>
        %103 = vector.shape_cast %102 : vector<16xf32> to vector<1x16xf32>
        %104 = arith.addf %77, %103 : vector<1x16xf32>
        %105 = arith.mulf %101, %101 : vector<128x16xf32>
        %cst_55 = arith.constant dense<0.000000e+00> : vector<16xf32>
        %106 = vector.multi_reduction <add>, %105, %cst_55 [0] : vector<128x16xf32> to vector<16xf32>
        %107 = vector.shape_cast %106 : vector<16xf32> to vector<1x16xf32>
        %108 = arith.addf %78, %107 : vector<1x16xf32>
        %c1_i32_56 = arith.constant 1 : i32
        %cst_57 = arith.constant 1.562500e-02 : f32
        %109 = vector.broadcast %cst_57 : f32 to vector<1x16xf32>
        %110 = arith.mulf %104, %109 : vector<1x16xf32>
        %cst_58 = arith.constant 1.562500e-02 : f32
        %111 = vector.broadcast %cst_58 : f32 to vector<1x16xf32>
        %112 = arith.mulf %108, %111 : vector<1x16xf32>
        %113 = arith.mulf %110, %110 : vector<1x16xf32>
        %114 = arith.subf %112, %113 : vector<1x16xf32>
        %cst_59 = arith.constant 0.000000e+00 : f32
        %115 = vector.broadcast %cst_59 : f32 to vector<1x16xf32>
        %116 = arith.maximumf %114, %115 : vector<1x16xf32>
        %cst_60 = arith.constant 9.99999974E-6 : f32
        %117 = vector.broadcast %cst_60 : f32 to vector<1x16xf32>
        %118 = arith.addf %116, %117 : vector<1x16xf32>
        %119 = math.rsqrt %118 : vector<1x16xf32>
        %120 = arith.mulf %73, %119 : vector<1x16xf32>
        %121 = arith.mulf %110, %120 : vector<1x16xf32>
        %122 = arith.subf %74, %121 : vector<1x16xf32>
        %c0_i32_61 = arith.constant 0 : i32
        %123 = arith.index_cast %c0_i32_61 : i32 to index
        %c0_62 = arith.constant 0 : index
        %c0_63 = arith.constant 0 : index
        %124 = vector.load %arg7[%123, %c0_62, %c0_63] : memref<1x128x16xf32, #tpu.memory_space<vmem>>, vector<1x128x16xf32>
        %125 = vector.shape_cast %124 : vector<1x128x16xf32> to vector<128x16xf32>
        %126 = vector.broadcast %62 : vector<1x16xf32> to vector<128x16xf32>
        %127 = arith.mulf %125, %126 : vector<128x16xf32>
        %128 = vector.broadcast %64 : vector<1x16xf32> to vector<128x16xf32>
        %129 = arith.addf %127, %128 : vector<128x16xf32>
        %cst_64 = arith.constant dense<0.000000e+00> : vector<128x16xf32>
        %130 = tpu.matmul %129, %65, %cst_64 {dimension_numbers = #tpu.dot_dimension_numbers<[1], [0], [0], [1], [0, 0, 1, 1], [], []>} : vector<128x16xf32>, vector<16x16xf32>, vector<128x16xf32> -> vector<128x16xf32>
        %131 = vector.broadcast %69 : vector<1x16xf32> to vector<128x16xf32>
        %132 = arith.addf %130, %131 : vector<128x16xf32>
        %cst_65 = arith.constant 0.00999999977 : f32
        %133 = vector.broadcast %cst_65 : f32 to vector<128x16xf32>
        %134 = arith.mulf %133, %132 : vector<128x16xf32>
        %135 = arith.maximumf %132, %134 : vector<128x16xf32>
        %136 = vector.broadcast %120 : vector<1x16xf32> to vector<128x16xf32>
        %137 = arith.mulf %135, %136 : vector<128x16xf32>
        %138 = vector.broadcast %122 : vector<1x16xf32> to vector<128x16xf32>
        %139 = arith.addf %137, %138 : vector<128x16xf32>
        %cst_66 = arith.constant dense<0.000000e+00> : vector<128x16xf32>
        %140 = tpu.matmul %139, %66, %cst_66 {dimension_numbers = #tpu.dot_dimension_numbers<[1], [0], [0], [1], [0, 0, 1, 1], [], []>} : vector<128x16xf32>, vector<16x16xf32>, vector<128x16xf32> -> vector<128x16xf32>
        %141 = vector.broadcast %70 : vector<1x16xf32> to vector<128x16xf32>
        %142 = arith.addf %140, %141 : vector<128x16xf32>
        %cst_67 = arith.constant 0.00999999977 : f32
        %143 = vector.broadcast %cst_67 : f32 to vector<128x16xf32>
        %144 = arith.mulf %143, %142 : vector<128x16xf32>
        %145 = arith.maximumf %142, %144 : vector<128x16xf32>
        %c128_i32_68 = arith.constant 128 : i32
        %146 = arith.muli %c0_i32_61, %c128_i32_68 : i32
        %147 = tpu.iota {dimensions = array<i32: 0>} : vector<128x1xi32>
        %148 = vector.broadcast %146 : i32 to vector<128x1xi32>
        %149 = arith.addi %148, %147 : vector<128x1xi32>
        %c64_i32_69 = arith.constant 64 : i32
        %150 = vector.broadcast %c64_i32_69 : i32 to vector<128x1xi32>
        %151 = arith.cmpi slt, %149, %150 : vector<128x1xi32>
        %152 = arith.extui %151 : vector<128x1xi1> to vector<128x1xi32>
        %153 = arith.sitofp %152 : vector<128x1xi32> to vector<128x1xf32>
        %154 = vector.broadcast %153 : vector<128x1xf32> to vector<128x16xf32>
        %155 = arith.mulf %145, %154 : vector<128x16xf32>
        %cst_70 = arith.constant dense<0.000000e+00> : vector<16xf32>
        %156 = vector.multi_reduction <add>, %155, %cst_70 [0] : vector<128x16xf32> to vector<16xf32>
        %157 = vector.shape_cast %156 : vector<16xf32> to vector<1x16xf32>
        %158 = arith.addf %77, %157 : vector<1x16xf32>
        %159 = arith.mulf %155, %155 : vector<128x16xf32>
        %cst_71 = arith.constant dense<0.000000e+00> : vector<16xf32>
        %160 = vector.multi_reduction <add>, %159, %cst_71 [0] : vector<128x16xf32> to vector<16xf32>
        %161 = vector.shape_cast %160 : vector<16xf32> to vector<1x16xf32>
        %162 = arith.addf %78, %161 : vector<1x16xf32>
        %c1_i32_72 = arith.constant 1 : i32
        %cst_73 = arith.constant 1.562500e-02 : f32
        %163 = vector.broadcast %cst_73 : f32 to vector<1x16xf32>
        %164 = arith.mulf %158, %163 : vector<1x16xf32>
        %cst_74 = arith.constant 1.562500e-02 : f32
        %165 = vector.broadcast %cst_74 : f32 to vector<1x16xf32>
        %166 = arith.mulf %162, %165 : vector<1x16xf32>
        %167 = arith.mulf %164, %164 : vector<1x16xf32>
        %168 = arith.subf %166, %167 : vector<1x16xf32>
        %cst_75 = arith.constant 0.000000e+00 : f32
        %169 = vector.broadcast %cst_75 : f32 to vector<1x16xf32>
        %170 = arith.maximumf %168, %169 : vector<1x16xf32>
        %cst_76 = arith.constant 9.99999974E-6 : f32
        %171 = vector.broadcast %cst_76 : f32 to vector<1x16xf32>
        %172 = arith.addf %170, %171 : vector<1x16xf32>
        %173 = math.rsqrt %172 : vector<1x16xf32>
        %174 = arith.mulf %75, %173 : vector<1x16xf32>
        %175 = arith.mulf %164, %174 : vector<1x16xf32>
        %176 = arith.subf %76, %175 : vector<1x16xf32>
        %c0_i32_77 = arith.constant 0 : i32
        %c1_i32_78 = arith.constant 1 : i32
        %177 = arith.muli %c0_i32_77, %c1_i32_78 : i32
        %c0_i32_79 = arith.constant 0 : i32
        %178 = arith.addi %c0_i32_79, %177 : i32
        %179 = arith.index_cast %178 : i32 to index
        %c0_80 = arith.constant 0 : index
        %c0_81 = arith.constant 0 : index
        %180 = vector.load %arg7[%179, %c0_80, %c0_81] : memref<1x128x16xf32, #tpu.memory_space<vmem>>, vector<1x128x16xf32>
        %181 = vector.shape_cast %180 : vector<1x128x16xf32> to vector<128x16xf32>
        %182 = vector.broadcast %62 : vector<1x16xf32> to vector<128x16xf32>
        %183 = arith.mulf %181, %182 : vector<128x16xf32>
        %184 = vector.broadcast %64 : vector<1x16xf32> to vector<128x16xf32>
        %185 = arith.addf %183, %184 : vector<128x16xf32>
        %cst_82 = arith.constant dense<0.000000e+00> : vector<128x16xf32>
        %186 = tpu.matmul %185, %65, %cst_82 {dimension_numbers = #tpu.dot_dimension_numbers<[1], [0], [0], [1], [0, 0, 1, 1], [], []>} : vector<128x16xf32>, vector<16x16xf32>, vector<128x16xf32> -> vector<128x16xf32>
        %187 = vector.broadcast %69 : vector<1x16xf32> to vector<128x16xf32>
        %188 = arith.addf %186, %187 : vector<128x16xf32>
        %cst_83 = arith.constant 0.00999999977 : f32
        %189 = vector.broadcast %cst_83 : f32 to vector<128x16xf32>
        %190 = arith.mulf %189, %188 : vector<128x16xf32>
        %191 = arith.maximumf %188, %190 : vector<128x16xf32>
        %192 = vector.broadcast %120 : vector<1x16xf32> to vector<128x16xf32>
        %193 = arith.mulf %191, %192 : vector<128x16xf32>
        %194 = vector.broadcast %122 : vector<1x16xf32> to vector<128x16xf32>
        %195 = arith.addf %193, %194 : vector<128x16xf32>
        %cst_84 = arith.constant dense<0.000000e+00> : vector<128x16xf32>
        %196 = tpu.matmul %195, %66, %cst_84 {dimension_numbers = #tpu.dot_dimension_numbers<[1], [0], [0], [1], [0, 0, 1, 1], [], []>} : vector<128x16xf32>, vector<16x16xf32>, vector<128x16xf32> -> vector<128x16xf32>
        %197 = vector.broadcast %70 : vector<1x16xf32> to vector<128x16xf32>
        %198 = arith.addf %196, %197 : vector<128x16xf32>
        %cst_85 = arith.constant 0.00999999977 : f32
        %199 = vector.broadcast %cst_85 : f32 to vector<128x16xf32>
        %200 = arith.mulf %199, %198 : vector<128x16xf32>
        %201 = arith.maximumf %198, %200 : vector<128x16xf32>
        %202 = vector.broadcast %174 : vector<1x16xf32> to vector<128x16xf32>
        %203 = arith.mulf %201, %202 : vector<128x16xf32>
        %204 = vector.broadcast %176 : vector<1x16xf32> to vector<128x16xf32>
        %205 = arith.addf %203, %204 : vector<128x16xf32>
        %cst_86 = arith.constant dense<0.000000e+00> : vector<128x16xf32>
        %206 = tpu.matmul %205, %67, %cst_86 {dimension_numbers = #tpu.dot_dimension_numbers<[1], [0], [0], [1], [0, 0, 1, 1], [], []>} : vector<128x16xf32>, vector<16x16xf32>, vector<128x16xf32> -> vector<128x16xf32>
        %207 = vector.broadcast %71 : vector<1x16xf32> to vector<128x16xf32>
        %208 = arith.addf %206, %207 : vector<128x16xf32>
        %cst_87 = arith.constant 0.00999999977 : f32
        %209 = vector.broadcast %cst_87 : f32 to vector<128x16xf32>
        %210 = arith.mulf %209, %208 : vector<128x16xf32>
        %211 = arith.maximumf %208, %210 : vector<128x16xf32>
        %212 = vector.broadcast %68 : vector<1x16xf32> to vector<128x16xf32>
        %213 = arith.mulf %211, %212 : vector<128x16xf32>
        %cst_88 = arith.constant dense<0.000000e+00> : vector<128xf32>
        %214 = vector.multi_reduction <add>, %213, %cst_88 [1] : vector<128x16xf32> to vector<128xf32>
        %215 = vector.shape_cast %214 : vector<128xf32> to vector<128x1xf32>
        %216 = vector.extract_strided_slice %72 {offsets = [0, 0], sizes = [1, 1], strides = [1, 1]} : vector<1x16xf32> to vector<1x1xf32>
        %217 = vector.broadcast %216 : vector<1x1xf32> to vector<128x1xf32>
        %218 = arith.addf %215, %217 : vector<128x1xf32>
        %219 = vector.shape_cast %218 : vector<128x1xf32> to vector<128xf32>
        %220 = arith.index_cast %178 : i32 to index
        %c0_89 = arith.constant 0 : index
        %221 = vector.load %arg6[%220, %c0_89] : memref<1x128xf32, #tpu.memory_space<vmem>>, vector<1x128xf32>
        %222 = vector.shape_cast %221 : vector<1x128xf32> to vector<128xf32>
        %223 = vector.shape_cast %219 : vector<128xf32> to vector<1x128xf32>
        tpu.vector_store %arg6[%220, %c0_89], %223 {strides = array<i32>} : memref<1x128xf32, #tpu.memory_space<vmem>>, vector<1x128xf32>,
        %c1_i32_90 = arith.constant 1 : i32
      } else {
      }
    } else {
    }
    return
  }
  func.func @transform_0(%arg0: i32, %arg1: i32) -> (i32, i32) {
    %c0_i32 = arith.constant 0 : i32
    %c0_i32_0 = arith.constant 0 : i32
    return %arg1, %c0_i32 : i32, i32
  }
  func.func @transform_1(%arg0: i32, %arg1: i32) -> (i32, i32) {
    %c0_i32 = arith.constant 0 : i32
    %c0_i32_0 = arith.constant 0 : i32
    %c0_i32_1 = arith.constant 0 : i32
    return %c0_i32, %c0_i32_0 : i32, i32
  }
  func.func @transform_2(%arg0: i32, %arg1: i32) -> (i32, i32) {
    %c0_i32 = arith.constant 0 : i32
    %c0_i32_0 = arith.constant 0 : i32
    %c0_i32_1 = arith.constant 0 : i32
    return %c0_i32, %c0_i32_0 : i32, i32
  }
  func.func @transform_3(%arg0: i32, %arg1: i32) -> (i32, i32) {
    %c0_i32 = arith.constant 0 : i32
    %c0_i32_0 = arith.constant 0 : i32
    %c0_i32_1 = arith.constant 0 : i32
    return %c0_i32, %c0_i32_0 : i32, i32
  }
  func.func @transform_4(%arg0: i32, %arg1: i32) -> (i32, i32) {
    %c0_i32 = arith.constant 0 : i32
    %c0_i32_0 = arith.constant 0 : i32
    %c0_i32_1 = arith.constant 0 : i32
    return %c0_i32, %c0_i32_0 : i32, i32
  }
}

</mosaic_0001>

<llo_original>
// kernel: tpu_custom_call.1
$region0: #{tpu_custom_call.1}
  #allocation0 [shape = 'u32[]', space=smem, size = 0x4, offset = 0x4, fixed_abs, tag = 'smem constant byte address 0x4 - core index']
  #allocation1 [shape = 'u32[144,128]{1,0:T(1,128)}', space=vmem, size = 0x12000, scoped, tag = 'internal scratch']
  #allocation2 [shape = 'f32[1,128,16]{2,1,0:T(8,128)}', space=vmem, size = 0x10000, scoped, tag = 'scratch operand']
  #allocation3 [shape = 'f32[4,130]{1,0:T(4,128)}', space=vmem, size = 0x1000, scoped, tag = 'scratch operand']
  #allocation4 [shape = 'f32[2,16]{1,0:T(2,128)}', space=vmem, size = 0x400, scoped, tag = 'scratch operand']
  %s0 = inlined_call_operand.vmem [shape: bf16[128,32], index: 0, kind: input, shape index: {}]
  %s1 = inlined_call_operand.vmem [shape: bf16[32,130], index: 1, kind: input, shape index: {}]
  %s2 = inlined_call_operand.vmem [shape: f32[3,130], index: 2, kind: input, shape index: {}]
  %s3 = inlined_call_operand.vmem [shape: f32[208,16], index: 3, kind: input, shape index: {}]
  %s4 = inlined_call_operand.hbm [shape: f32[1,128], index: 4, kind: output, shape index: {}]
  %s5 = sld [smem:[#allocation0]]
  $region85: #{tpu_custom_call.1} parent=0
    _
  %s7 = ssub.s32 1, %s5
  %s8 = scalar_select 0, %s7, %s5
  $region1: #{tpu_custom_call.1} parent=0
    #allocation5 [shape = 'u8[512]{0}', space=vmem, size = 0x400, scoped, tag = 'output window, operand 0, single buffered']
    #allocation6 [shape = 's32[2]{0}', space=sflag, size = 0x8, scoped, tag = 'scoped memory for tpu_custom_call.1']
    %9 = vsyncpa [#allocation6], 0
    loop: start=0, step=1, limit=4
    $region2: #{tpu_custom_call.1} parent=1 // loop_pre_header
      _
    $region3: #{tpu_custom_call.1} parent=1 // loop_header
      %s11 = sphi 0, %s15
      %p12 = scmp.ge.s32.totalorder %s11, 4
      %s18 = sphi 0, %s30
      %s19 = sphi 0, %s26
      %s20 = sphi 0, %s18
      %s21 = sphi 0, %s19
      %s22 = sphi 0, %s20
      %s23 = sphi 0, %s21
      %s33 = sphi 0, %s35
      %s36 = sphi 0, %s33
      %s37 = sphi 0, %s36
      %s53 = sphi 0, %s37
      %s57 = sphi 0, %s57
      %s59 = sphi 0, %s57
      %s60 = sphi 0, %s59
      %s74 = sphi 0, %s60
      %s78 = sphi 0, %s78
      %s80 = sphi 0, %s78
      %s81 = sphi 0, %s80
      %s95 = sphi 0, %s81
      %s99 = sphi 0, %s99
      %s101 = sphi 0, %s99
      %s102 = sphi 0, %s101
      %s116 = sphi 0, %s102
      %s120 = sphi 0, %s120
      %s122 = sphi 0, %s120
      %s123 = sphi 0, %s122
      %s137 = sphi 0, %s123
    $region4: #{tpu_custom_call.1} parent=1 // loop_header_branch
      %14 = sbr.rel (%p12) target = $region8
    $region5: #{tpu_custom_call.1} parent=1 // loop_body
      %s16 = ssub.s32 %s11, 1
      %s17 = ssub.s32 %s11, 2
      %s24 = sadd.s32 1, %s19
      %p25 = scmp.ge.s32.totalorder %s24, 1
      %s26 = scalar_select %p25, 0, %s24
      %s27 = sadd.s32 1, %s18
      %s28 = scalar_select %p25, %s27, %s18
      %p29 = scmp.ge.s32.totalorder %s28, 2
      %s30 = scalar_select %p29, 0, %s28
      %s31 = ssub.s32 %s19, %s26
      %p32 = scmp.eq.s32.totalorder %s31, 0
      %s34 = sadd.s32 %s33, 1
      %s35 = scalar_select %p32, %s33, %s34
      %p38 = pneg %p32
      %p39 = scmp.eq.s32.totalorder %s11, 1
      %p40 = por %p38, %p39
      %p41 = scmp.ne.s32.totalorder %s33, %s36
      %p42 = scmp.eq.s32.totalorder %s11, 0
      %p43 = por %p41, %p42
      %p44 = scmp.ne.s32.totalorder %s33, %s36
      %p45 = scmp.eq.s32.totalorder %s16, 1
      %p46 = por %p44, %p45
      %p47 = scmp.ne.s32.totalorder %s36, %s37
      %p48 = scmp.eq.s32.totalorder %s16, 0
      %p49 = por %p47, %p48
      %p50 = scmp.ne.s32.totalorder %s36, %s37
      %p51 = scmp.eq.s32.totalorder %s17, 1
      %p52 = por %p50, %p51
      %p54 = scmp.ne.s32.totalorder %s37, %s53
      %p55 = scmp.eq.s32.totalorder %s17, 0
      %p56 = por %p54, %p55
      %s58 = sadd.s32 %s57, 1
      %p61 = scmp.eq.s32.totalorder %s11, 1
      %p62 = scmp.ne.s32.totalorder %s57, %s59
      %p63 = scmp.eq.s32.totalorder %s11, 0
      %p64 = por %p62, %p63
      %p65 = scmp.ne.s32.totalorder %s57, %s59
      %p66 = scmp.eq.s32.totalorder %s16, 1
      %p67 = por %p65, %p66
      %p68 = scmp.ne.s32.totalorder %s59, %s60
      %p69 = scmp.eq.s32.totalorder %s16, 0
      %p70 = por %p68, %p69
      %p71 = scmp.ne.s32.totalorder %s59, %s60
      %p72 = scmp.eq.s32.totalorder %s17, 1
      %p73 = por %p71, %p72
      %p75 = scmp.ne.s32.totalorder %s60, %s74
      %p76 = scmp.eq.s32.totalorder %s17, 0
      %p77 = por %p75, %p76
      %s79 = sadd.s32 %s78, 1
      %p82 = scmp.eq.s32.totalorder %s11, 1
      %p83 = scmp.ne.s32.totalorder %s78, %s80
      %p84 = scmp.eq.s32.totalorder %s11, 0
      %p85 = por %p83, %p84
      %p86 = scmp.ne.s32.totalorder %s78, %s80
      %p87 = scmp.eq.s32.totalorder %s16, 1
      %p88 = por %p86, %p87
      %p89 = scmp.ne.s32.totalorder %s80, %s81
      %p90 = scmp.eq.s32.totalorder %s16, 0
      %p91 = por %p89, %p90
      %p92 = scmp.ne.s32.totalorder %s80, %s81
      %p93 = scmp.eq.s32.totalorder %s17, 1
      %p94 = por %p92, %p93
      %p96 = scmp.ne.s32.totalorder %s81, %s95
      %p97 = scmp.eq.s32.totalorder %s17, 0
      %p98 = por %p96, %p97
      %s100 = sadd.s32 %s99, 1
      %p103 = scmp.eq.s32.totalorder %s11, 1
      %p104 = scmp.ne.s32.totalorder %s99, %s101
      %p105 = scmp.eq.s32.totalorder %s11, 0
      %p106 = por %p104, %p105
      %p107 = scmp.ne.s32.totalorder %s99, %s101
      %p108 = scmp.eq.s32.totalorder %s16, 1
      %p109 = por %p107, %p108
      %p110 = scmp.ne.s32.totalorder %s101, %s102
      %p111 = scmp.eq.s32.totalorder %s16, 0
      %p112 = por %p110, %p111
      %p113 = scmp.ne.s32.totalorder %s101, %s102
      %p114 = scmp.eq.s32.totalorder %s17, 1
      %p115 = por %p113, %p114
      %p117 = scmp.ne.s32.totalorder %s102, %s116
      %p118 = scmp.eq.s32.totalorder %s17, 0
      %p119 = por %p117, %p118
      %s121 = sadd.s32 %s120, 1
      %p124 = scmp.eq.s32.totalorder %s11, 1
      %p125 = scmp.ne.s32.totalorder %s120, %s122
      %p126 = scmp.eq.s32.totalorder %s11, 0
      %p127 = por %p125, %p126
      %p128 = scmp.ne.s32.totalorder %s120, %s122
      %p129 = scmp.eq.s32.totalorder %s16, 1
      %p130 = por %p128, %p129
      %p131 = scmp.ne.s32.totalorder %s122, %s123
      %p132 = scmp.eq.s32.totalorder %s16, 0
      %p133 = por %p131, %p132
      %p134 = scmp.ne.s32.totalorder %s122, %s123
      %p135 = scmp.eq.s32.totalorder %s17, 1
      %p136 = por %p134, %p135
      %p138 = scmp.ne.s32.totalorder %s123, %s137
      %p139 = scmp.eq.s32.totalorder %s17, 0
      %p140 = por %p138, %p139
      %p141 = scmp.le.s32.totalorder 1, %s11
      %p142 = scmp.lt.s32.totalorder %s11, 3
      %p143 = pnand %p141, %p142
      %p144 = pneg %p143
      // Predicated region
      $region9: #{tpu_custom_call.1} parent=5 // pred_check
        _
      $region10: #{tpu_custom_call.1} parent=5 // pred_check_branch
        %146 = sbr.rel (%p143) target = $region12
      $region11: #{tpu_custom_call.1} parent=5 // pred_region
        %s147 = ssub.s32 %s11, 1
        // Predicated region
        $region13: #{tpu_custom_call.1} parent=11 // pred_check
          %p148 = pneg %p49
        $region14: #{tpu_custom_call.1} parent=11 // pred_check_branch
          %150 = sbr.rel (%p148) target = $region16
        $region15: #{tpu_custom_call.1} parent=11 // pred_region
          %s151 = smul.u32 16, %s21
          %p152 = scmp.lt.s32.totalorder %s151, 15
          %s153 = scalar_select %p152, %s151, 15
          %s154 = smul.addr %s153, 4
          %s155 = scalar_lea.vmem %s0, %s154
          %s156 = smul.u32 16, %s21
        $region16: #{tpu_custom_call.1} parent=11 // pred_fallthru
          _
        // Predicated region
        $region17: #{tpu_custom_call.1} parent=11 // pred_check
          %p157 = pneg %p70
        $region18: #{tpu_custom_call.1} parent=11 // pred_check_branch
          %159 = sbr.rel (%p157) target = $region20
        $region19: #{tpu_custom_call.1} parent=11 // pred_region
          _
        $region20: #{tpu_custom_call.1} parent=11 // pred_fallthru
          _
        // Predicated region
        $region21: #{tpu_custom_call.1} parent=11 // pred_check
          %p160 = pneg %p91
        $region22: #{tpu_custom_call.1} parent=11 // pred_check_branch
          %162 = sbr.rel (%p160) target = $region24
        $region23: #{tpu_custom_call.1} parent=11 // pred_region
          _
        $region24: #{tpu_custom_call.1} parent=11 // pred_fallthru
          _
        // Predicated region
        $region25: #{tpu_custom_call.1} parent=11 // pred_check
          %p163 = pneg %p112
        $region26: #{tpu_custom_call.1} parent=11 // pred_check_branch
          %165 = sbr.rel (%p163) target = $region28
        $region27: #{tpu_custom_call.1} parent=11 // pred_region
          _
        $region28: #{tpu_custom_call.1} parent=11 // pred_fallthru
          _
      $region12: #{tpu_custom_call.1} parent=5 // pred_fallthru
        _
      %p166 = scmp.lt.s32.totalorder %s11, 2
      // Predicated region
      $region29: #{tpu_custom_call.1} parent=5 // pred_check
        %p167 = pneg %p166
      $region30: #{tpu_custom_call.1} parent=5 // pred_check_branch
        %169 = sbr.rel (%p167) target = $region32
      $region31: #{tpu_custom_call.1} parent=5 // pred_region
        _
      $region32: #{tpu_custom_call.1} parent=5 // pred_fallthru
        _
      %p170 = scmp.le.s32.totalorder 1, %s11
      %p171 = scmp.lt.s32.totalorder %s11, 3
      %p172 = pnand %p170, %p171
      %p173 = pneg %p172
      // Predicated region
      $region33: #{tpu_custom_call.1} parent=5 // pred_check
        _
      $region34: #{tpu_custom_call.1} parent=5 // pred_check_branch
        %175 = sbr.rel (%p172) target = $region36
      $region35: #{tpu_custom_call.1} parent=5 // pred_region
        %s176 = ssub.s32 %s11, 1
        %s177 = smul.u32 16, %s21
        %p178 = scmp.lt.s32.totalorder %s177, 15
        %s179 = scalar_select %p178, %s177, 15
        %s180 = smul.addr %s179, 4
        %s181 = scalar_lea.vmem %s0, %s180
        %p182 = pneg %p49
        %p183 = pneg %p46
        %p184 = pneg %p70
        %p185 = pneg %p67
        %p186 = pneg %p91
        %p187 = pneg %p88
        %p188 = pneg %p112
        %p189 = pneg %p109
        %p190 = pneg %p133
        %p191 = pneg %p130
        %s192 = smul.u32 16, %s21
        %p193 = scmp.lt.s32.totalorder %s192, 15
        %s194 = scalar_select %p193, %s192, 15
        %s195 = smul.addr %s194, 4
        %s196 = scalar_lea.vmem %s0, %s195
        %s197 = smul.u32 16, %s21
        %p199 = scmp.eq.s32.totalorder %s20, 0
        %p200 = scmp.eq.s32.totalorder %s21, 0
        %p201 = pnand %p199, %p200
        %p202 = pneg %p201
        // Predicated region
        $region37: #{tpu_custom_call.1} parent=35 // pred_check
          _
        $region38: #{tpu_custom_call.1} parent=35 // pred_check_branch
          %204 = sbr.rel (%p201) target = $region40
        $region39: #{tpu_custom_call.1} parent=35 // pred_region
          %vm205 = vcmask 1043456
          %vm206 = vcmask 15364
          %vm207 = vmor %vm206, %vm205
          %208 = vst.msk [vmem:[#allocation3] sm:$0xff] %vm207, 0.0
          %vm209 = vcmask 123904
          %210 = vst.msk [vmem:[#allocation4] sm:$0x3] %vm209, 0.0
        $region40: #{tpu_custom_call.1} parent=35 // pred_fallthru
          _
        %v211 = vld [vmem:[%s196] sm:$0xf]
        %v212 = vld [vmem:[%s196 + $0x4] sm:$0xf]
        %v213 = vld [vmem:[%s196 + $0x8] sm:$0xf]
        %v214 = vld [vmem:[%s196 + $0xc] sm:$0xf]
        %v215 = vld [vmem:[%s196 + $0x10] sm:$0xf]
        %v216 = vld [vmem:[%s196 + $0x14] sm:$0xf]
        %v217 = vld [vmem:[%s196 + $0x18] sm:$0xf]
        %v218 = vld [vmem:[%s196 + $0x1c] sm:$0xf]
        %v219 = vld [vmem:[%s196 + $0x20] sm:$0xf]
        %v220 = vld [vmem:[%s196 + $0x24] sm:$0xf]
        %v221 = vld [vmem:[%s196 + $0x28] sm:$0xf]
        %v222 = vld [vmem:[%s196 + $0x2c] sm:$0xf]
        %v223 = vld [vmem:[%s196 + $0x30] sm:$0xf]
        %v224 = vld [vmem:[%s196 + $0x34] sm:$0xf]
        %v225 = vld [vmem:[%s196 + $0x38] sm:$0xf]
        %v226 = vld [vmem:[%s196 + $0x3c] sm:$0xf]
        %v227 = vld [vmem:[%s1] sm:$0xff]
        %v228 = vld [vmem:[%s1 + $0x8] sm:$0xff]
        %v229 = vld [vmem:[%s1 + $0x10] sm:$0xff]
        %v230 = vld [vmem:[%s1 + $0x18] sm:$0xff]
        %v231 = vld [vmem:[%s2] ss:$4 sm:$0x3]
        %v233 = vlaneseq
        %v234 = vshrl.u32 %v233, 7
        %v235 = vsub.s32 0, %v234
        %v236 = vrot.slane %v231, %v235
        %v237 = vlaneseq
        %v238 = vshrl.u32 %v237, 7
        %v239 = vsub.s32 1, %v238
        %v240 = vrot.slane %v231, %v239
        %v259 = vunpack.c.l.b16 %v211
        %v260 = vunpack.c.l.b16 %v212
        %v261 = vunpack.c.l.b16 %v213
        %v262 = vunpack.c.l.b16 %v214
        %v263 = vunpack.c.l.b16 %v215
        %v264 = vunpack.c.l.b16 %v216
        %v265 = vunpack.c.l.b16 %v217
        %v266 = vunpack.c.l.b16 %v218
        %v267 = vunpack.c.l.b16 %v219
        %v268 = vunpack.c.l.b16 %v220
        %v269 = vunpack.c.l.b16 %v221
        %v270 = vunpack.c.l.b16 %v222
        %v271 = vunpack.c.l.b16 %v223
        %v272 = vunpack.c.l.b16 %v224
        %v273 = vunpack.c.l.b16 %v225
        %v274 = vunpack.c.l.b16 %v226
        %v275 = vpack.c.b16 %v260, %v259
        %v276 = vpack.c.b16 %v262, %v261
        %v277 = vpack.c.b16 %v264, %v263
        %v278 = vpack.c.b16 %v266, %v265
        %v279 = vpack.c.b16 %v268, %v267
        %v280 = vpack.c.b16 %v270, %v269
        %v281 = vpack.c.b16 %v272, %v271
        %v282 = vpack.c.b16 %v274, %v273
        %v287 = vunpack.c.l.b16 %v227
        %v288 = vunpack.c.h.b16 %v227
        %v289 = vunpack.c.l.b16 %v228
        %v290 = vunpack.c.h.b16 %v228
        %v291 = vunpack.c.l.b16 %v229
        %v292 = vunpack.c.h.b16 %v229
        %v293 = vunpack.c.l.b16 %v230
        %v294 = vunpack.c.h.b16 %v230
        %v295 = vpack.c.b16 %v289, %v287
        %v296 = vpack.c.b16 %v290, %v288
        %v297 = vpack.c.b16 %v293, %v291
        %v298 = vpack.c.b16 %v294, %v292
        %vm303 = vcmask 261120
        %v305 = vsel %vm303, %v275, 0
        %v308 = vsel %vm303, %v276, 0
        %v311 = vsel %vm303, %v277, 0
        %v314 = vsel %vm303, %v278, 0
        %v317 = vsel %vm303, %v279, 0
        %v320 = vsel %vm303, %v280, 0
        %v323 = vsel %vm303, %v281, 0
        %v326 = vsel %vm303, %v282, 0
        %328 = vmatprep.subr.bf16.mxu0 %v296
        %329 = vmatpush1.bf16.msra.mxu0 %v295
        %330 = vmatprep.subr.bf16.mxu0 %v298
        %331 = vmatpush1.bf16.msra.mxu0 %v297
        %332 = vmatprep.subr.bf16.mxu0 0
        %333 = vmatpush1.bf16.msra.mxu0 0
        %334 = vmatprep.subr.bf16.mxu0 0
        %335 = vmatpush1.bf16.msra.mxu0 0
        %336 = vmatprep.subr.bf16.mxu0 0
        %337 = vmatpush1.bf16.msra.mxu0 0
        %338 = vmatprep.subr.bf16.mxu0 0
        %339 = vmatpush1.bf16.msra.mxu0 0
        %340 = vmatprep.subr.bf16.mxu0 0
        %341 = vmatpush1.bf16.msra.mxu0 0
        %342 = vmatprep.subr.bf16.mxu0 0
        %343 = vmatpush1.bf16.msra.mxu0 0
        %344 = vmatprep.subr.bf16.mxu0 0
        %345 = vmatpush1.bf16.msra.mxu0 0
        %346 = vmatprep.subr.bf16.mxu0 0
        %347 = vmatpush1.bf16.msra.mxu0 0
        %348 = vmatprep.subr.bf16.mxu0 0
        %349 = vmatpush1.bf16.msra.mxu0 0
        %350 = vmatprep.subr.bf16.mxu0 0
        %351 = vmatpush1.bf16.msra.mxu0 0
        %352 = vmatprep.subr.bf16.mxu0 0
        %353 = vmatpush1.bf16.msra.mxu0 0
        %354 = vmatprep.subr.bf16.mxu0 0
        %355 = vmatpush1.bf16.msra.mxu0 0
        %356 = vmatprep.subr.bf16.mxu0 0
        %357 = vmatpush1.bf16.msra.mxu0 0
        %358 = vmatprep.subr.bf16.mxu0 0
        %359 = vmatpush1.bf16.msra.mxu0 0
        %360 = vmatprep.mubr.bf16.mxu0 0
        %361 = vmatmul.mubr.bf16.gmra.mrb[0].mxu0 %v305
        %v362 = vpop.f32.mrb[0].mxu0
        %v363 = vadd.f32 %v236, %v362
        %v364 = vpop.f32.mrb[0].mxu0
        %v365 = vadd.f32 %v240, %v364
        %v366 = vpop.f32.mrb[0].mxu0
        %v367 = vadd.f32 %v236, %v366
        %v368 = vpop.f32.mrb[0].mxu0
        %v369 = vadd.f32 %v240, %v368
        %370 = vmatprep.mubr.bf16.mxu0 0
        %371 = vmatmul.mubr.bf16.gmra.mrb[0].mxu0 %v308
        %v372 = vpop.f32.mrb[0].mxu0
        %v373 = vadd.f32 %v236, %v372
        %v374 = vpop.f32.mrb[0].mxu0
        %v375 = vadd.f32 %v240, %v374
        %v376 = vpop.f32.mrb[0].mxu0
        %v377 = vadd.f32 %v236, %v376
        %v378 = vpop.f32.mrb[0].mxu0
        %v379 = vadd.f32 %v240, %v378
        %380 = vmatprep.mubr.bf16.mxu0 0
        %381 = vmatmul.mubr.bf16.gmra.mrb[0].mxu0 %v311
        %v382 = vpop.f32.mrb[0].mxu0
        %v383 = vadd.f32 %v236, %v382
        %v384 = vpop.f32.mrb[0].mxu0
        %v385 = vadd.f32 %v240, %v384
        %v386 = vpop.f32.mrb[0].mxu0
        %v387 = vadd.f32 %v236, %v386
        %v388 = vpop.f32.mrb[0].mxu0
        %v389 = vadd.f32 %v240, %v388
        %390 = vmatprep.mubr.bf16.mxu0 0
        %391 = vmatmul.mubr.bf16.gmra.mrb[0].mxu0 %v314
        %v392 = vpop.f32.mrb[0].mxu0
        %v393 = vadd.f32 %v236, %v392
        %v394 = vpop.f32.mrb[0].mxu0
        %v395 = vadd.f32 %v240, %v394
        %v396 = vpop.f32.mrb[0].mxu0
        %v397 = vadd.f32 %v236, %v396
        %v398 = vpop.f32.mrb[0].mxu0
        %v399 = vadd.f32 %v240, %v398
        %400 = vmatprep.mubr.bf16.mxu0 0
        %401 = vmatmul.mubr.bf16.gmra.mrb[0].mxu0 %v317
        %v402 = vpop.f32.mrb[0].mxu0
        %v403 = vadd.f32 %v236, %v402
        %v404 = vpop.f32.mrb[0].mxu0
        %v405 = vadd.f32 %v240, %v404
        %v406 = vpop.f32.mrb[0].mxu0
        %v407 = vadd.f32 %v236, %v406
        %v408 = vpop.f32.mrb[0].mxu0
        %v409 = vadd.f32 %v240, %v408
        %410 = vmatprep.mubr.bf16.mxu0 0
        %411 = vmatmul.mubr.bf16.gmra.mrb[0].mxu0 %v320
        %v412 = vpop.f32.mrb[0].mxu0
        %v413 = vadd.f32 %v236, %v412
        %v414 = vpop.f32.mrb[0].mxu0
        %v415 = vadd.f32 %v240, %v414
        %v416 = vpop.f32.mrb[0].mxu0
        %v417 = vadd.f32 %v236, %v416
        %v418 = vpop.f32.mrb[0].mxu0
        %v419 = vadd.f32 %v240, %v418
        %420 = vmatprep.mubr.bf16.mxu0 0
        %421 = vmatmul.mubr.bf16.gmra.mrb[0].mxu0 %v323
        %v422 = vpop.f32.mrb[0].mxu0
        %v423 = vadd.f32 %v236, %v422
        %v424 = vpop.f32.mrb[0].mxu0
        %v425 = vadd.f32 %v240, %v424
        %v426 = vpop.f32.mrb[0].mxu0
        %v427 = vadd.f32 %v236, %v426
        %v428 = vpop.f32.mrb[0].mxu0
        %v429 = vadd.f32 %v240, %v428
        %430 = vmatprep.mubr.bf16.mxu0 0
        %431 = vmatmul.mubr.bf16.gmra.mrb[0].mxu0 %v326
        %v432 = vpop.f32.mrb[0].mxu0
        %v433 = vadd.f32 %v236, %v432
        %v434 = vpop.f32.mrb[0].mxu0
        %v435 = vadd.f32 %v240, %v434
        %v436 = vpop.f32.mrb[0].mxu0
        %v437 = vadd.f32 %v236, %v436
        %v438 = vpop.f32.mrb[0].mxu0
        %v439 = vadd.f32 %v240, %v438
        %440 = vdwg.mxu0
        %v441 = vmul.f32 %v363, 0.01
        %v442 = vmul.f32 %v365, 0.01
        %v443 = vmul.f32 %v367, 0.01
        %v444 = vmul.f32 %v369, 0.01
        %v445 = vmul.f32 %v373, 0.01
        %v446 = vmul.f32 %v375, 0.01
        %v447 = vmul.f32 %v377, 0.01
        %v448 = vmul.f32 %v379, 0.01
        %v449 = vmul.f32 %v383, 0.01
        %v450 = vmul.f32 %v385, 0.01
        %v451 = vmul.f32 %v387, 0.01
        %v452 = vmul.f32 %v389, 0.01
        %v453 = vmul.f32 %v393, 0.01
        %v454 = vmul.f32 %v395, 0.01
        %v455 = vmul.f32 %v397, 0.01
        %v456 = vmul.f32 %v399, 0.01
        %v457 = vmul.f32 %v403, 0.01
        %v458 = vmul.f32 %v405, 0.01
        %v459 = vmul.f32 %v407, 0.01
        %v460 = vmul.f32 %v409, 0.01
        %v461 = vmul.f32 %v413, 0.01
        %v462 = vmul.f32 %v415, 0.01
        %v463 = vmul.f32 %v417, 0.01
        %v464 = vmul.f32 %v419, 0.01
        %v465 = vmul.f32 %v423, 0.01
        %v466 = vmul.f32 %v425, 0.01
        %v467 = vmul.f32 %v427, 0.01
        %v468 = vmul.f32 %v429, 0.01
        %v469 = vmul.f32 %v433, 0.01
        %v470 = vmul.f32 %v435, 0.01
        %v471 = vmul.f32 %v437, 0.01
        %v472 = vmul.f32 %v439, 0.01
        %v473 = vmax.f32 %v363, %v441
        %v474 = vmax.f32 %v365, %v442
        %v475 = vmax.f32 %v367, %v443
        %v476 = vmax.f32 %v369, %v444
        %v477 = vmax.f32 %v373, %v445
        %v478 = vmax.f32 %v375, %v446
        %v479 = vmax.f32 %v377, %v447
        %v480 = vmax.f32 %v379, %v448
        %v481 = vmax.f32 %v383, %v449
        %v482 = vmax.f32 %v385, %v450
        %v483 = vmax.f32 %v387, %v451
        %v484 = vmax.f32 %v389, %v452
        %v485 = vmax.f32 %v393, %v453
        %v486 = vmax.f32 %v395, %v454
        %v487 = vmax.f32 %v397, %v455
        %v488 = vmax.f32 %v399, %v456
        %v489 = vmax.f32 %v403, %v457
        %v490 = vmax.f32 %v405, %v458
        %v491 = vmax.f32 %v407, %v459
        %v492 = vmax.f32 %v409, %v460
        %v493 = vmax.f32 %v413, %v461
        %v494 = vmax.f32 %v415, %v462
        %v495 = vmax.f32 %v417, %v463
        %v496 = vmax.f32 %v419, %v464
        %v497 = vmax.f32 %v423, %v465
        %v498 = vmax.f32 %v425, %v466
        %v499 = vmax.f32 %v427, %v467
        %v500 = vmax.f32 %v429, %v468
        %v501 = vmax.f32 %v433, %v469
        %v502 = vmax.f32 %v435, %v470
        %v503 = vmax.f32 %v437, %v471
        %v504 = vmax.f32 %v439, %v472
        // Predicated region
        $region41: #{tpu_custom_call.1} parent=35 // pred_check
          %p505 = pneg %p199
        $region42: #{tpu_custom_call.1} parent=35 // pred_check_branch
          %507 = sbr.rel (%p505) target = $region44
        $region43: #{tpu_custom_call.1} parent=35 // pred_region
          // Predicated region
          $region45: #{tpu_custom_call.1} parent=43 // pred_check
            %p508 = pneg %p200
          $region46: #{tpu_custom_call.1} parent=43 // pred_check_branch
            %510 = sbr.rel (%p508) target = $region48
          $region47: #{tpu_custom_call.1} parent=43 // pred_region
            %s511 = smul.u32 %s21, 128
            %v512 = vlaneseq
            %v513 = vshrl.u32 %v512, 7
            %v514 = vadd.s32 %v513, 8
            %v515 = vadd.s32 %v513, 16
            %v516 = vadd.s32 %v513, 24
            %v517 = vadd.s32 %v513, 32
            %v518 = vadd.s32 %v513, 40
            %v519 = vadd.s32 %v513, 48
            %v520 = vadd.s32 %v513, 56
            %v521 = vadd.s32 %v513, 64
            %v522 = vadd.s32 %v513, 72
            %v523 = vadd.s32 %v513, 80
            %v524 = vadd.s32 %v513, 88
            %v525 = vadd.s32 %v513, 96
            %v526 = vadd.s32 %v513, 104
            %v527 = vadd.s32 %v513, 112
            %v528 = vadd.s32 %v513, 120
            %v529 = vstv %s511
            %v530 = vadd.s32 %v529, %v513
            %v531 = vadd.s32 %v529, %v514
            %v532 = vadd.s32 %v529, %v515
            %v533 = vadd.s32 %v529, %v516
            %v534 = vadd.s32 %v529, %v517
            %v535 = vadd.s32 %v529, %v518
            %v536 = vadd.s32 %v529, %v519
            %v537 = vadd.s32 %v529, %v520
            %v538 = vadd.s32 %v529, %v521
            %v539 = vadd.s32 %v529, %v522
            %v540 = vadd.s32 %v529, %v523
            %v541 = vadd.s32 %v529, %v524
            %v542 = vadd.s32 %v529, %v525
            %v543 = vadd.s32 %v529, %v526
            %v544 = vadd.s32 %v529, %v527
            %v545 = vadd.s32 %v529, %v528
            %vm546 = vcmp.lt.s32.totalorder %v530, 64
            %vm547 = vcmp.lt.s32.totalorder %v531, 64
            %vm548 = vcmp.lt.s32.totalorder %v532, 64
            %vm549 = vcmp.lt.s32.totalorder %v533, 64
            %vm550 = vcmp.lt.s32.totalorder %v534, 64
            %vm551 = vcmp.lt.s32.totalorder %v535, 64
            %vm552 = vcmp.lt.s32.totalorder %v536, 64
            %vm553 = vcmp.lt.s32.totalorder %v537, 64
            %vm554 = vcmp.lt.s32.totalorder %v538, 64
            %vm555 = vcmp.lt.s32.totalorder %v539, 64
            %vm556 = vcmp.lt.s32.totalorder %v540, 64
            %vm557 = vcmp.lt.s32.totalorder %v541, 64
            %vm558 = vcmp.lt.s32.totalorder %v542, 64
            %vm559 = vcmp.lt.s32.totalorder %v543, 64
            %vm560 = vcmp.lt.s32.totalorder %v544, 64
            %vm561 = vcmp.lt.s32.totalorder %v545, 64
            %v562 = vsel %vm546, 1, 0
            %v563 = vsel %vm547, 1, 0
            %v564 = vsel %vm548, 1, 0
            %v565 = vsel %vm549, 1, 0
            %v566 = vsel %vm550, 1, 0
            %v567 = vsel %vm551, 1, 0
            %v568 = vsel %vm552, 1, 0
            %v569 = vsel %vm553, 1, 0
            %v570 = vsel %vm554, 1, 0
            %v571 = vsel %vm555, 1, 0
            %v572 = vsel %vm556, 1, 0
            %v573 = vsel %vm557, 1, 0
            %v574 = vsel %vm558, 1, 0
            %v575 = vsel %vm559, 1, 0
            %v576 = vsel %vm560, 1, 0
            %v577 = vsel %vm561, 1, 0
            %v578 = vcvt.s32.f32 %v562
            %v579 = vcvt.s32.f32 %v563
            %v580 = vcvt.s32.f32 %v564
            %v581 = vcvt.s32.f32 %v565
            %v582 = vcvt.s32.f32 %v566
            %v583 = vcvt.s32.f32 %v567
            %v584 = vcvt.s32.f32 %v568
            %v585 = vcvt.s32.f32 %v569
            %v586 = vcvt.s32.f32 %v570
            %v587 = vcvt.s32.f32 %v571
            %v588 = vcvt.s32.f32 %v572
            %v589 = vcvt.s32.f32 %v573
            %v590 = vcvt.s32.f32 %v574
            %v591 = vcvt.s32.f32 %v575
            %v592 = vcvt.s32.f32 %v576
            %v593 = vcvt.s32.f32 %v577
            %v594 = vmul.f32 %v473, %v578
            %v595 = vmul.f32 %v474, %v578
            %v596 = vmul.f32 %v475, %v579
            %v597 = vmul.f32 %v476, %v579
            %v598 = vmul.f32 %v477, %v580
            %v599 = vmul.f32 %v478, %v580
            %v600 = vmul.f32 %v479, %v581
            %v601 = vmul.f32 %v480, %v581
            %v602 = vmul.f32 %v481, %v582
            %v603 = vmul.f32 %v482, %v582
            %v604 = vmul.f32 %v483, %v583
            %v605 = vmul.f32 %v484, %v583
            %v606 = vmul.f32 %v485, %v584
            %v607 = vmul.f32 %v486, %v584
            %v608 = vmul.f32 %v487, %v585
            %v609 = vmul.f32 %v488, %v585
            %v610 = vmul.f32 %v489, %v586
            %v611 = vmul.f32 %v490, %v586
            %v612 = vmul.f32 %v491, %v587
            %v613 = vmul.f32 %v492, %v587
            %v614 = vmul.f32 %v493, %v588
            %v615 = vmul.f32 %v494, %v588
            %v616 = vmul.f32 %v495, %v589
            %v617 = vmul.f32 %v496, %v589
            %v618 = vmul.f32 %v497, %v590
            %v619 = vmul.f32 %v498, %v590
            %v620 = vmul.f32 %v499, %v591
            %v621 = vmul.f32 %v500, %v591
            %v622 = vmul.f32 %v501, %v592
            %v623 = vmul.f32 %v502, %v592
            %v624 = vmul.f32 %v503, %v593
            %v625 = vmul.f32 %v504, %v593
            %v626 = vld [vmem:[#allocation3] ss:$4 sm:$0x3]
            %v627 = vadd.f32 %v594, %v596
            %v628 = vadd.f32 %v627, %v598
            %v629 = vadd.f32 %v628, %v600
            %v630 = vadd.f32 %v629, %v602
            %v631 = vadd.f32 %v630, %v604
            %v632 = vadd.f32 %v631, %v606
            %v633 = vadd.f32 %v632, %v608
            %v634 = vadd.f32 %v633, %v610
            %v635 = vadd.f32 %v634, %v612
            %v636 = vadd.f32 %v635, %v614
            %v637 = vadd.f32 %v636, %v616
            %v638 = vadd.f32 %v637, %v618
            %v639 = vadd.f32 %v638, %v620
            %v640 = vadd.f32 %v639, %v622
            %v641 = vadd.f32 %v640, %v624
            %v642 = vrot.slane %v641, 4
            %v643 = vadd.f32 %v641, %v642
            %v644 = vrot.slane %v643, 2
            %v645 = vadd.f32 %v643, %v644
            %v646 = vrot.slane %v645, 1
            %v647 = vadd.f32 %v645, %v646
            %vm648 = vcmask 15360
            %v649 = vsel %vm648, %v595, 0.0
            %v650 = vsel %vm648, %v597, 0.0
            %v651 = vadd.f32 %v649, %v650
            %v652 = vsel %vm648, %v599, 0.0
            %v653 = vadd.f32 %v651, %v652
            %v654 = vsel %vm648, %v601, 0.0
            %v655 = vadd.f32 %v653, %v654
            %v656 = vsel %vm648, %v603, 0.0
            %v657 = vadd.f32 %v655, %v656
            %v658 = vsel %vm648, %v605, 0.0
            %v659 = vadd.f32 %v657, %v658
            %v660 = vsel %vm648, %v607, 0.0
            %v661 = vadd.f32 %v659, %v660
            %v662 = vsel %vm648, %v609, 0.0
            %v663 = vadd.f32 %v661, %v662
            %v664 = vsel %vm648, %v611, 0.0
            %v665 = vadd.f32 %v663, %v664
            %v666 = vsel %vm648, %v613, 0.0
            %v667 = vadd.f32 %v665, %v666
            %v668 = vsel %vm648, %v615, 0.0
            %v669 = vadd.f32 %v667, %v668
            %v670 = vsel %vm648, %v617, 0.0
            %v671 = vadd.f32 %v669, %v670
            %v672 = vsel %vm648, %v619, 0.0
            %v673 = vadd.f32 %v671, %v672
            %v674 = vsel %vm648, %v621, 0.0
            %v675 = vadd.f32 %v673, %v674
            %v676 = vsel %vm648, %v623, 0.0
            %v677 = vadd.f32 %v675, %v676
            %v678 = vsel %vm648, %v625, 0.0
            %v679 = vadd.f32 %v677, %v678
            %v680 = vrot.slane %v679, 4
            %v681 = vadd.f32 %v679, %v680
            %v682 = vrot.slane %v681, 2
            %v683 = vadd.f32 %v681, %v682
            %v684 = vrot.slane %v683, 1
            %v685 = vadd.f32 %v683, %v684
            %v688 = vcombine.low %v647, %v685
            %v690 = vunpack.c.l.s4 1966171168
            %v691 = vunpack.c.0.s8 %v690
            %v692 = vlaneseq
            %v693 = vshrl.u32 %v692, 7
            %v694 = vsub.s32 %v691, %v693
            %v695 = vrot.slane %v688, %v694
            %v697 = vunpack.c.l.s4 1966171168
            %v698 = vunpack.c.0.s8 %v697
            %v699 = vlaneseq
            %v700 = vshrl.u32 %v699, 7
            %v701 = vsub.s32 %v698, %v700
            %v702 = vrot.slane %v695, %v701
            %v704 = vadd.f32 %v626, %v702
            %v705 = vlaneseq
            %vm706 = vcmp.ge.s32.totalorder %v705, 0
            %vm707 = vcmp.lt.s32.totalorder %v705, 130
            %vm708 = vmand %vm706, %vm707
            %709 = vst.msk [vmem:[#allocation3] ss:$4 sm:$0x3] %vm708, %v704
            %s710 = scalar_lea.vmem [#allocation3], 1
            %v711 = vld [vmem:[%s710] ss:$4 sm:$0x3]
            %v712 = vmul.f32 %v594, %v594
            %v713 = vmul.f32 %v595, %v595
            %v714 = vmul.f32 %v596, %v596
            %v715 = vmul.f32 %v597, %v597
            %v716 = vmul.f32 %v598, %v598
            %v717 = vmul.f32 %v599, %v599
            %v718 = vmul.f32 %v600, %v600
            %v719 = vmul.f32 %v601, %v601
            %v720 = vmul.f32 %v602, %v602
            %v721 = vmul.f32 %v603, %v603
            %v722 = vmul.f32 %v604, %v604
            %v723 = vmul.f32 %v605, %v605
            %v724 = vmul.f32 %v606, %v606
            %v725 = vmul.f32 %v607, %v607
            %v726 = vmul.f32 %v608, %v608
            %v727 = vmul.f32 %v609, %v609
            %v728 = vmul.f32 %v610, %v610
            %v729 = vmul.f32 %v611, %v611
            %v730 = vmul.f32 %v612, %v612
            %v731 = vmul.f32 %v613, %v613
            %v732 = vmul.f32 %v614, %v614
            %v733 = vmul.f32 %v615, %v615
            %v734 = vmul.f32 %v616, %v616
            %v735 = vmul.f32 %v617, %v617
            %v736 = vmul.f32 %v618, %v618
            %v737 = vmul.f32 %v619, %v619
            %v738 = vmul.f32 %v620, %v620
            %v739 = vmul.f32 %v621, %v621
            %v740 = vmul.f32 %v622, %v622
            %v741 = vmul.f32 %v623, %v623
            %v742 = vmul.f32 %v624, %v624
            %v743 = vmul.f32 %v625, %v625
            %v744 = vadd.f32 %v712, %v714
            %v745 = vadd.f32 %v744, %v716
            %v746 = vadd.f32 %v745, %v718
            %v747 = vadd.f32 %v746, %v720
            %v748 = vadd.f32 %v747, %v722
            %v749 = vadd.f32 %v748, %v724
            %v750 = vadd.f32 %v749, %v726
            %v751 = vadd.f32 %v750, %v728
            %v752 = vadd.f32 %v751, %v730
            %v753 = vadd.f32 %v752, %v732
            %v754 = vadd.f32 %v753, %v734
            %v755 = vadd.f32 %v754, %v736
            %v756 = vadd.f32 %v755, %v738
            %v757 = vadd.f32 %v756, %v740
            %v758 = vadd.f32 %v757, %v742
            %v759 = vrot.slane %v758, 4
            %v760 = vadd.f32 %v758, %v759
            %v761 = vrot.slane %v760, 2
            %v762 = vadd.f32 %v760, %v761
            %v763 = vrot.slane %v762, 1
            %v764 = vadd.f32 %v762, %v763
            %v765 = vsel %vm648, %v713, 0.0
            %v766 = vsel %vm648, %v715, 0.0
            %v767 = vadd.f32 %v765, %v766
            %v768 = vsel %vm648, %v717, 0.0
            %v769 = vadd.f32 %v767, %v768
            %v770 = vsel %vm648, %v719, 0.0
            %v771 = vadd.f32 %v769, %v770
            %v772 = vsel %vm648, %v721, 0.0
            %v773 = vadd.f32 %v771, %v772
            %v774 = vsel %vm648, %v723, 0.0
            %v775 = vadd.f32 %v773, %v774
            %v776 = vsel %vm648, %v725, 0.0
            %v777 = vadd.f32 %v775, %v776
            %v778 = vsel %vm648, %v727, 0.0
            %v779 = vadd.f32 %v777, %v778
            %v780 = vsel %vm648, %v729, 0.0
            %v781 = vadd.f32 %v779, %v780
            %v782 = vsel %vm648, %v731, 0.0
            %v783 = vadd.f32 %v781, %v782
            %v784 = vsel %vm648, %v733, 0.0
            %v785 = vadd.f32 %v783, %v784
            %v786 = vsel %vm648, %v735, 0.0
            %v787 = vadd.f32 %v785, %v786
            %v788 = vsel %vm648, %v737, 0.0
            %v789 = vadd.f32 %v787, %v788
            %v790 = vsel %vm648, %v739, 0.0
            %v791 = vadd.f32 %v789, %v790
            %v792 = vsel %vm648, %v741, 0.0
            %v793 = vadd.f32 %v791, %v792
            %v794 = vsel %vm648, %v743, 0.0
            %v795 = vadd.f32 %v793, %v794
            %v796 = vrot.slane %v795, 4
            %v797 = vadd.f32 %v795, %v796
            %v798 = vrot.slane %v797, 2
            %v799 = vadd.f32 %v797, %v798
            %v800 = vrot.slane %v799, 1
            %v801 = vadd.f32 %v799, %v800
            %v804 = vcombine.low %v764, %v801
            %v806 = vunpack.c.l.s4 1966171168
            %v807 = vunpack.c.0.s8 %v806
            %v808 = vlaneseq
            %v809 = vshrl.u32 %v808, 7
            %v810 = vsub.s32 %v807, %v809
            %v811 = vrot.slane %v804, %v810
            %v813 = vunpack.c.l.s4 1966171168
            %v814 = vunpack.c.0.s8 %v813
            %v815 = vlaneseq
            %v816 = vshrl.u32 %v815, 7
            %v817 = vsub.s32 %v814, %v816
            %v818 = vrot.slane %v811, %v817
            %v820 = vadd.f32 %v711, %v818
            %821 = vst.msk [vmem:[%s710] ss:$4 sm:$0x3] %vm708, %v820
          $region48: #{tpu_custom_call.1} parent=43 // pred_fallthru
            _
          %p822 = scmp.ne.s32.totalorder %s21, 0
          // Predicated region
          $region49: #{tpu_custom_call.1} parent=43 // pred_check
            %p823 = pneg %p822
          $region50: #{tpu_custom_call.1} parent=43 // pred_check_branch
            %825 = sbr.rel (%p823) target = $region52
          $region51: #{tpu_custom_call.1} parent=43 // pred_region
            %v826 = vld [vmem:[#allocation3] ss:$4 sm:$0x3]
            %v827 = vadd.f32 %v473, %v475
            %v828 = vadd.f32 %v827, %v477
            %v829 = vadd.f32 %v828, %v479
            %v830 = vadd.f32 %v829, %v481
            %v831 = vadd.f32 %v830, %v483
            %v832 = vadd.f32 %v831, %v485
            %v833 = vadd.f32 %v832, %v487
            %v834 = vadd.f32 %v833, %v489
            %v835 = vadd.f32 %v834, %v491
            %v836 = vadd.f32 %v835, %v493
            %v837 = vadd.f32 %v836, %v495
            %v838 = vadd.f32 %v837, %v497
            %v839 = vadd.f32 %v838, %v499
            %v840 = vadd.f32 %v839, %v501
            %v841 = vadd.f32 %v840, %v503
            %v842 = vrot.slane %v841, 4
            %v843 = vadd.f32 %v841, %v842
            %v844 = vrot.slane %v843, 2
            %v845 = vadd.f32 %v843, %v844
            %v846 = vrot.slane %v845, 1
            %v847 = vadd.f32 %v845, %v846
            %vm848 = vcmask 15360
            %v849 = vsel %vm848, %v474, 0.0
            %v850 = vsel %vm848, %v476, 0.0
            %v851 = vadd.f32 %v849, %v850
            %v852 = vsel %vm848, %v478, 0.0
            %v853 = vadd.f32 %v851, %v852
            %v854 = vsel %vm848, %v480, 0.0
            %v855 = vadd.f32 %v853, %v854
            %v856 = vsel %vm848, %v482, 0.0
            %v857 = vadd.f32 %v855, %v856
            %v858 = vsel %vm848, %v484, 0.0
            %v859 = vadd.f32 %v857, %v858
            %v860 = vsel %vm848, %v486, 0.0
            %v861 = vadd.f32 %v859, %v860
            %v862 = vsel %vm848, %v488, 0.0
            %v863 = vadd.f32 %v861, %v862
            %v864 = vsel %vm848, %v490, 0.0
            %v865 = vadd.f32 %v863, %v864
            %v866 = vsel %vm848, %v492, 0.0
            %v867 = vadd.f32 %v865, %v866
            %v868 = vsel %vm848, %v494, 0.0
            %v869 = vadd.f32 %v867, %v868
            %v870 = vsel %vm848, %v496, 0.0
            %v871 = vadd.f32 %v869, %v870
            %v872 = vsel %vm848, %v498, 0.0
            %v873 = vadd.f32 %v871, %v872
            %v874 = vsel %vm848, %v500, 0.0
            %v875 = vadd.f32 %v873, %v874
            %v876 = vsel %vm848, %v502, 0.0
            %v877 = vadd.f32 %v875, %v876
            %v878 = vsel %vm848, %v504, 0.0
            %v879 = vadd.f32 %v877, %v878
            %v880 = vrot.slane %v879, 4
            %v881 = vadd.f32 %v879, %v880
            %v882 = vrot.slane %v881, 2
            %v883 = vadd.f32 %v881, %v882
            %v884 = vrot.slane %v883, 1
            %v885 = vadd.f32 %v883, %v884
            %v888 = vcombine.low %v847, %v885
            %v890 = vunpack.c.l.s4 1966171168
            %v891 = vunpack.c.0.s8 %v890
            %v892 = vlaneseq
            %v893 = vshrl.u32 %v892, 7
            %v894 = vsub.s32 %v891, %v893
            %v895 = vrot.slane %v888, %v894
            %v897 = vunpack.c.l.s4 1966171168
            %v898 = vunpack.c.0.s8 %v897
            %v899 = vlaneseq
            %v900 = vshrl.u32 %v899, 7
            %v901 = vsub.s32 %v898, %v900
            %v902 = vrot.slane %v895, %v901
            %v904 = vadd.f32 %v826, %v902
            %v905 = vlaneseq
            %vm906 = vcmp.ge.s32.totalorder %v905, 0
            %vm907 = vcmp.lt.s32.totalorder %v905, 130
            %vm908 = vmand %vm906, %vm907
            %909 = vst.msk [vmem:[#allocation3] ss:$4 sm:$0x3] %vm908, %v904
            %s910 = scalar_lea.vmem [#allocation3], 1
            %v911 = vld [vmem:[%s910] ss:$4 sm:$0x3]
            %v912 = vmul.f32 %v473, %v473
            %v913 = vmul.f32 %v474, %v474
            %v914 = vmul.f32 %v475, %v475
            %v915 = vmul.f32 %v476, %v476
            %v916 = vmul.f32 %v477, %v477
            %v917 = vmul.f32 %v478, %v478
            %v918 = vmul.f32 %v479, %v479
            %v919 = vmul.f32 %v480, %v480
            %v920 = vmul.f32 %v481, %v481
            %v921 = vmul.f32 %v482, %v482
            %v922 = vmul.f32 %v483, %v483
            %v923 = vmul.f32 %v484, %v484
            %v924 = vmul.f32 %v485, %v485
            %v925 = vmul.f32 %v486, %v486
            %v926 = vmul.f32 %v487, %v487
            %v927 = vmul.f32 %v488, %v488
            %v928 = vmul.f32 %v489, %v489
            %v929 = vmul.f32 %v490, %v490
            %v930 = vmul.f32 %v491, %v491
            %v931 = vmul.f32 %v492, %v492
            %v932 = vmul.f32 %v493, %v493
            %v933 = vmul.f32 %v494, %v494
            %v934 = vmul.f32 %v495, %v495
            %v935 = vmul.f32 %v496, %v496
            %v936 = vmul.f32 %v497, %v497
            %v937 = vmul.f32 %v498, %v498
            %v938 = vmul.f32 %v499, %v499
            %v939 = vmul.f32 %v500, %v500
            %v940 = vmul.f32 %v501, %v501
            %v941 = vmul.f32 %v502, %v502
            %v942 = vmul.f32 %v503, %v503
            %v943 = vmul.f32 %v504, %v504
            %v944 = vadd.f32 %v912, %v914
            %v945 = vadd.f32 %v944, %v916
            %v946 = vadd.f32 %v945, %v918
            %v947 = vadd.f32 %v946, %v920
            %v948 = vadd.f32 %v947, %v922
            %v949 = vadd.f32 %v948, %v924
            %v950 = vadd.f32 %v949, %v926
            %v951 = vadd.f32 %v950, %v928
            %v952 = vadd.f32 %v951, %v930
            %v953 = vadd.f32 %v952, %v932
            %v954 = vadd.f32 %v953, %v934
            %v955 = vadd.f32 %v954, %v936
            %v956 = vadd.f32 %v955, %v938
            %v957 = vadd.f32 %v956, %v940
            %v958 = vadd.f32 %v957, %v942
            %v959 = vrot.slane %v958, 4
            %v960 = vadd.f32 %v958, %v959
            %v961 = vrot.slane %v960, 2
            %v962 = vadd.f32 %v960, %v961
            %v963 = vrot.slane %v962, 1
            %v964 = vadd.f32 %v962, %v963
            %v965 = vsel %vm848, %v913, 0.0
            %v966 = vsel %vm848, %v915, 0.0
            %v967 = vadd.f32 %v965, %v966
            %v968 = vsel %vm848, %v917, 0.0
            %v969 = vadd.f32 %v967, %v968
            %v970 = vsel %vm848, %v919, 0.0
            %v971 = vadd.f32 %v969, %v970
            %v972 = vsel %vm848, %v921, 0.0
            %v973 = vadd.f32 %v971, %v972
            %v974 = vsel %vm848, %v923, 0.0
            %v975 = vadd.f32 %v973, %v974
            %v976 = vsel %vm848, %v925, 0.0
            %v977 = vadd.f32 %v975, %v976
            %v978 = vsel %vm848, %v927, 0.0
            %v979 = vadd.f32 %v977, %v978
            %v980 = vsel %vm848, %v929, 0.0
            %v981 = vadd.f32 %v979, %v980
            %v982 = vsel %vm848, %v931, 0.0
            %v983 = vadd.f32 %v981, %v982
            %v984 = vsel %vm848, %v933, 0.0
            %v985 = vadd.f32 %v983, %v984
            %v986 = vsel %vm848, %v935, 0.0
            %v987 = vadd.f32 %v985, %v986
            %v988 = vsel %vm848, %v937, 0.0
            %v989 = vadd.f32 %v987, %v988
            %v990 = vsel %vm848, %v939, 0.0
            %v991 = vadd.f32 %v989, %v990
            %v992 = vsel %vm848, %v941, 0.0
            %v993 = vadd.f32 %v991, %v992
            %v994 = vsel %vm848, %v943, 0.0
            %v995 = vadd.f32 %v993, %v994
            %v996 = vrot.slane %v995, 4
            %v997 = vadd.f32 %v995, %v996
            %v998 = vrot.slane %v997, 2
            %v999 = vadd.f32 %v997, %v998
            %v1000 = vrot.slane %v999, 1
            %v1001 = vadd.f32 %v999, %v1000
            %v1004 = vcombine.low %v964, %v1001
            %v1006 = vunpack.c.l.s4 1966171168
            %v1007 = vunpack.c.0.s8 %v1006
            %v1008 = vlaneseq
            %v1009 = vshrl.u32 %v1008, 7
            %v1010 = vsub.s32 %v1007, %v1009
            %v1011 = vrot.slane %v1004, %v1010
            %v1013 = vunpack.c.l.s4 1966171168
            %v1014 = vunpack.c.0.s8 %v1013
            %v1015 = vlaneseq
            %v1016 = vshrl.u32 %v1015, 7
            %v1017 = vsub.s32 %v1014, %v1016
            %v1018 = vrot.slane %v1011, %v1017
            %v1020 = vadd.f32 %v911, %v1018
            %1021 = vst.msk [vmem:[%s910] ss:$4 sm:$0x3] %vm908, %v1020
          $region52: #{tpu_custom_call.1} parent=43 // pred_fallthru
            _
          // Predicated region
          $region53: #{tpu_custom_call.1} parent=43 // pred_check
            %p1022 = pneg %p200
          $region54: #{tpu_custom_call.1} parent=43 // pred_check_branch
            %1024 = sbr.rel (%p1022) target = $region56
          $region55: #{tpu_custom_call.1} parent=43 // pred_region
            %v1025 = vld [vmem:[#allocation3] ss:$4 sm:$0x3]
            %s1026 = scalar_lea.vmem [#allocation3], 1
            %v1027 = vld [vmem:[%s1026] ss:$4 sm:$0x3]
            %s1028 = scalar_lea.vmem %s2, 1
            %v1029 = vld [vmem:[%s1028] ss:$4 sm:$0x3]
            %s1030 = scalar_lea.vmem %s2, 2
            %v1031 = vld [vmem:[%s1030] ss:$4 sm:$0x3]
            %v1032 = vmul.f32 %v1025, 0.015625
            %v1033 = vmul.f32 %v1027, 0.015625
            %v1034 = vmul.f32 %v1032, %v1032
            %v1035 = vsub.f32 %v1033, %v1034
            %v1036 = vmax.f32 %v1035, 0.0
            %v1037 = vadd.f32 %v1036, 1e-05
            %v1038 = vrsqrt.pop %v1037
            %v1039 = vmul.f32 %v1029, %v1038
            %v1040 = vmul.f32 %v1032, %v1039
            %v1041 = vsub.f32 %v1031, %v1040
            %v1042 = vlaneseq
            %vm1043 = vcmp.ge.s32.totalorder %v1042, 0
            %vm1044 = vcmp.lt.s32.totalorder %v1042, 130
            %vm1045 = vmand %vm1043, %vm1044
            %s1046 = scalar_lea.vmem [#allocation3], 2
            %1047 = vst.msk [vmem:[%s1046] ss:$4 sm:$0x3] %vm1045, %v1039
            %s1048 = scalar_lea.vmem [#allocation3], 3
            %1049 = vst.msk [vmem:[%s1048] ss:$4 sm:$0x3] %vm1045, %v1041
          $region56: #{tpu_custom_call.1} parent=43 // pred_fallthru
            _
        $region44: #{tpu_custom_call.1} parent=35 // pred_fallthru
          _
        %p1050 = scmp.eq.s32.totalorder %s20, 1
        // Predicated region
        $region57: #{tpu_custom_call.1} parent=35 // pred_check
          %p1051 = pneg %p1050
        $region58: #{tpu_custom_call.1} parent=35 // pred_check_branch
          %1053 = sbr.rel (%p1051) target = $region60
        $region59: #{tpu_custom_call.1} parent=35 // pred_region
          %s1054 = scalar_lea.vmem [#allocation3], 2
          %v1055 = vld [vmem:[%s1054] ss:$4 sm:$0x3]
          %v1057 = vlaneseq
          %v1058 = vshrl.u32 %v1057, 7
          %v1059 = vsub.s32 0, %v1058
          %v1060 = vrot.slane %v1055, %v1059
          %v1061 = vlaneseq
          %v1062 = vshrl.u32 %v1061, 7
          %v1063 = vsub.s32 1, %v1062
          %v1064 = vrot.slane %v1055, %v1063
          %v1067 = vmul.f32 %v473, %v1060
          %v1068 = vmul.f32 %v474, %v1064
          %v1069 = vmul.f32 %v475, %v1060
          %v1070 = vmul.f32 %v476, %v1064
          %v1071 = vmul.f32 %v477, %v1060
          %v1072 = vmul.f32 %v478, %v1064
          %v1073 = vmul.f32 %v479, %v1060
          %v1074 = vmul.f32 %v480, %v1064
          %v1075 = vmul.f32 %v481, %v1060
          %v1076 = vmul.f32 %v482, %v1064
          %v1077 = vmul.f32 %v483, %v1060
          %v1078 = vmul.f32 %v484, %v1064
          %v1079 = vmul.f32 %v485, %v1060
          %v1080 = vmul.f32 %v486, %v1064
          %v1081 = vmul.f32 %v487, %v1060
          %v1082 = vmul.f32 %v488, %v1064
          %v1083 = vmul.f32 %v489, %v1060
          %v1084 = vmul.f32 %v490, %v1064
          %v1085 = vmul.f32 %v491, %v1060
          %v1086 = vmul.f32 %v492, %v1064
          %v1087 = vmul.f32 %v493, %v1060
          %v1088 = vmul.f32 %v494, %v1064
          %v1089 = vmul.f32 %v495, %v1060
          %v1090 = vmul.f32 %v496, %v1064
          %v1091 = vmul.f32 %v497, %v1060
          %v1092 = vmul.f32 %v498, %v1064
          %v1093 = vmul.f32 %v499, %v1060
          %v1094 = vmul.f32 %v500, %v1064
          %v1095 = vmul.f32 %v501, %v1060
          %v1096 = vmul.f32 %v502, %v1064
          %v1097 = vmul.f32 %v503, %v1060
          %v1098 = vmul.f32 %v504, %v1064
          %s1099 = scalar_lea.vmem [#allocation3], 3
          %v1100 = vld [vmem:[%s1099] ss:$4 sm:$0x3]
          %v1102 = vlaneseq
          %v1103 = vshrl.u32 %v1102, 7
          %v1104 = vsub.s32 0, %v1103
          %v1105 = vrot.slane %v1100, %v1104
          %v1106 = vlaneseq
          %v1107 = vshrl.u32 %v1106, 7
          %v1108 = vsub.s32 1, %v1107
          %v1109 = vrot.slane %v1100, %v1108
          %v1112 = vadd.f32 %v1067, %v1105
          %v1113 = vadd.f32 %v1068, %v1109
          %v1114 = vadd.f32 %v1069, %v1105
          %v1115 = vadd.f32 %v1070, %v1109
          %v1116 = vadd.f32 %v1071, %v1105
          %v1117 = vadd.f32 %v1072, %v1109
          %v1118 = vadd.f32 %v1073, %v1105
          %v1119 = vadd.f32 %v1074, %v1109
          %v1120 = vadd.f32 %v1075, %v1105
          %v1121 = vadd.f32 %v1076, %v1109
          %v1122 = vadd.f32 %v1077, %v1105
          %v1123 = vadd.f32 %v1078, %v1109
          %v1124 = vadd.f32 %v1079, %v1105
          %v1125 = vadd.f32 %v1080, %v1109
          %v1126 = vadd.f32 %v1081, %v1105
          %v1127 = vadd.f32 %v1082, %v1109
          %v1128 = vadd.f32 %v1083, %v1105
          %v1129 = vadd.f32 %v1084, %v1109
          %v1130 = vadd.f32 %v1085, %v1105
          %v1131 = vadd.f32 %v1086, %v1109
          %v1132 = vadd.f32 %v1087, %v1105
          %v1133 = vadd.f32 %v1088, %v1109
          %v1134 = vadd.f32 %v1089, %v1105
          %v1135 = vadd.f32 %v1090, %v1109
          %v1136 = vadd.f32 %v1091, %v1105
          %v1137 = vadd.f32 %v1092, %v1109
          %v1138 = vadd.f32 %v1093, %v1105
          %v1139 = vadd.f32 %v1094, %v1109
          %v1140 = vadd.f32 %v1095, %v1105
          %v1141 = vadd.f32 %v1096, %v1109
          %v1142 = vadd.f32 %v1097, %v1105
          %v1143 = vadd.f32 %v1098, %v1109
          %v1144 = vld [vmem:[%s3] sm:$0xff]
          %v1145 = vld [vmem:[%s3 + $0x8] sm:$0xff]
          %v1146 = vld [vmem:[%s3 + $0x10] sm:$0xff]
          %v1147 = vld [vmem:[%s3 + $0x18] sm:$0xff]
          %v1148 = vld [vmem:[%s3 + $0x20] sm:$0xff]
          %v1149 = vld [vmem:[%s3 + $0x28] sm:$0xff]
          %v1150 = vld [vmem:[%s3 + $0x30] sm:$0xff]
          %v1151 = vld [vmem:[%s3 + $0x38] sm:$0xff]
          %v1152 = vld [vmem:[%s3 + $0x40] sm:$0xff]
          %v1153 = vld [vmem:[%s3 + $0x48] sm:$0xff]
          %v1154 = vld [vmem:[%s3 + $0x50] sm:$0xff]
          %v1155 = vld [vmem:[%s3 + $0x58] sm:$0xff]
          %v1156 = vld [vmem:[%s3 + $0x60] sm:$0xff]
          %v1157 = vld [vmem:[%s3 + $0x68] sm:$0xff]
          %v1158 = vld [vmem:[%s3 + $0x70] sm:$0xff]
          %v1159 = vld [vmem:[%s3 + $0x78] sm:$0xff]
          %v1160 = vld [vmem:[%s3 + $0x80] sm:$0x3]
          %v1161 = vld [vmem:[%s3 + $0xc0] sm:$0x1]
          %v1162 = vlaneseq
          %v1163 = vshrl.u32 %v1162, 7
          %v1164 = vsub.s32 0, %v1163
          %v1165 = vrot.slane %v1161, %v1164
          %vm1166 = vcmask 15360
          %v1168 = vsel %vm1166, %v1113, 0
          %v1171 = vsel %vm1166, %v1115, 0
          %v1174 = vsel %vm1166, %v1117, 0
          %v1177 = vsel %vm1166, %v1119, 0
          %v1180 = vsel %vm1166, %v1121, 0
          %v1183 = vsel %vm1166, %v1123, 0
          %v1186 = vsel %vm1166, %v1125, 0
          %v1189 = vsel %vm1166, %v1127, 0
          %v1192 = vsel %vm1166, %v1129, 0
          %v1195 = vsel %vm1166, %v1131, 0
          %v1198 = vsel %vm1166, %v1133, 0
          %v1201 = vsel %vm1166, %v1135, 0
          %v1204 = vsel %vm1166, %v1137, 0
          %v1207 = vsel %vm1166, %v1139, 0
          %v1210 = vsel %vm1166, %v1141, 0
          %v1213 = vsel %vm1166, %v1143, 0
          %vm1215 = vcmask 1041408
          %v1217 = vsel %vm1215, %v1160, 0
          %1219 = vmatprep.subr.mxu0 0.0
          %1220 = vmatpush1.msra.mxu0 %v1144
          %1221 = vmatprep.subr.mxu0 0.0
          %1222 = vmatpush1.msra.mxu0 %v1145
          %1223 = vmatprep.subr.mxu0 0.0
          %1224 = vmatpush1.msra.mxu0 %v1146
          %1225 = vmatprep.subr.mxu0 0.0
          %1226 = vmatpush1.msra.mxu0 %v1147
          %1227 = vmatprep.subr.mxu0 0.0
          %1228 = vmatpush1.msra.mxu0 %v1148
          %1229 = vmatprep.subr.mxu0 0.0
          %1230 = vmatpush1.msra.mxu0 %v1149
          %1231 = vmatprep.subr.mxu0 0.0
          %1232 = vmatpush1.msra.mxu0 %v1150
          %1233 = vmatprep.subr.mxu0 0.0
          %1234 = vmatpush1.msra.mxu0 %v1151
          %1235 = vmatprep.subr.mxu0 0.0
          %1236 = vmatpush1.msra.mxu0 %v1152
          %1237 = vmatprep.subr.mxu0 0.0
          %1238 = vmatpush1.msra.mxu0 %v1153
          %1239 = vmatprep.subr.mxu0 0.0
          %1240 = vmatpush1.msra.mxu0 %v1154
          %1241 = vmatprep.subr.mxu0 0.0
          %1242 = vmatpush1.msra.mxu0 %v1155
          %1243 = vmatprep.subr.mxu0 0.0
          %1244 = vmatpush1.msra.mxu0 %v1156
          %1245 = vmatprep.subr.mxu0 0.0
          %1246 = vmatpush1.msra.mxu0 %v1157
          %1247 = vmatprep.subr.mxu0 0.0
          %1248 = vmatpush1.msra.mxu0 %v1158
          %1249 = vmatprep.subr.mxu0 0.0
          %1250 = vmatpush1.msra.mxu0 %v1159
          %1251 = vmatprep.subr.mxu0 0.0
          %1252 = vmatpush1.msra.mxu0 %v1217
          %1253 = vmatprep.subr.mxu0 0.0
          %1254 = vmatpush1.msra.mxu0 0.0
          %1255 = vmatprep.subr.mxu0 0.0
          %1256 = vmatpush1.msra.mxu0 0.0
          %1257 = vmatprep.subr.mxu0 0.0
          %1258 = vmatpush1.msra.mxu0 0.0
          %1259 = vmatprep.subr.mxu0 0.0
          %1260 = vmatpush1.msra.mxu0 0.0
          %1261 = vmatprep.subr.mxu0 0.0
          %1262 = vmatpush1.msra.mxu0 0.0
          %1263 = vmatprep.subr.mxu0 0.0
          %1264 = vmatpush1.msra.mxu0 0.0
          %1265 = vmatprep.subr.mxu0 0.0
          %1266 = vmatpush1.msra.mxu0 0.0
          %1267 = vmatprep.subr.mxu0 0.0
          %1268 = vmatpush1.msra.mxu0 0.0
          %1269 = vmatprep.subr.mxu0 0.0
          %1270 = vmatpush1.msra.mxu0 0.0
          %1271 = vmatprep.subr.mxu0 0.0
          %1272 = vmatpush1.msra.mxu0 0.0
          %1273 = vmatprep.subr.mxu0 0.0
          %1274 = vmatpush1.msra.mxu0 0.0
          %1275 = vmatprep.subr.mxu0 0.0
          %1276 = vmatpush1.msra.mxu0 0.0
          %1277 = vmatprep.subr.mxu0 0.0
          %1278 = vmatpush1.msra.mxu0 0.0
          %1279 = vmatprep.subr.mxu0 0.0
          %1280 = vmatpush1.msra.mxu0 0.0
          %1281 = vmatprep.subr.mxu0 0.0
          %1282 = vmatpush1.msra.mxu0 0.0
          %1283 = vmatprep.mubr.f32.mxu0 %v1168
          %1284 = vmatmul.mubr.f32.gmra.mrb[0].mxu0 %v1112
          %v1285 = vpop.f32.mrb[0].mxu0
          %v1286 = vadd.f32 %v1165, %v1285
          %v1287 = vpop.f32.mrb[0].mxu0
          %1288 = vmatprep.mubr.f32.mxu0 %v1171
          %1289 = vmatmul.mubr.f32.gmra.mrb[0].mxu0 %v1114
          %v1290 = vpop.f32.mrb[0].mxu0
          %v1291 = vadd.f32 %v1165, %v1290
          %v1292 = vpop.f32.mrb[0].mxu0
          %1293 = vmatprep.mubr.f32.mxu0 %v1174
          %1294 = vmatmul.mubr.f32.gmra.mrb[0].mxu0 %v1116
          %v1295 = vpop.f32.mrb[0].mxu0
          %v1296 = vadd.f32 %v1165, %v1295
          %v1297 = vpop.f32.mrb[0].mxu0
          %1298 = vmatprep.mubr.f32.mxu0 %v1177
          %1299 = vmatmul.mubr.f32.gmra.mrb[0].mxu0 %v1118
          %v1300 = vpop.f32.mrb[0].mxu0
          %v1301 = vadd.f32 %v1165, %v1300
          %v1302 = vpop.f32.mrb[0].mxu0
          %1303 = vmatprep.mubr.f32.mxu0 %v1180
          %1304 = vmatmul.mubr.f32.gmra.mrb[0].mxu0 %v1120
          %v1305 = vpop.f32.mrb[0].mxu0
          %v1306 = vadd.f32 %v1165, %v1305
          %v1307 = vpop.f32.mrb[0].mxu0
          %1308 = vmatprep.mubr.f32.mxu0 %v1183
          %1309 = vmatmul.mubr.f32.gmra.mrb[0].mxu0 %v1122
          %v1310 = vpop.f32.mrb[0].mxu0
          %v1311 = vadd.f32 %v1165, %v1310
          %v1312 = vpop.f32.mrb[0].mxu0
          %1313 = vmatprep.mubr.f32.mxu0 %v1186
          %1314 = vmatmul.mubr.f32.gmra.mrb[0].mxu0 %v1124
          %v1315 = vpop.f32.mrb[0].mxu0
          %v1316 = vadd.f32 %v1165, %v1315
          %v1317 = vpop.f32.mrb[0].mxu0
          %1318 = vmatprep.mubr.f32.mxu0 %v1189
          %1319 = vmatmul.mubr.f32.gmra.mrb[0].mxu0 %v1126
          %v1320 = vpop.f32.mrb[0].mxu0
          %v1321 = vadd.f32 %v1165, %v1320
          %v1322 = vpop.f32.mrb[0].mxu0
          %1323 = vmatprep.mubr.f32.mxu0 %v1192
          %1324 = vmatmul.mubr.f32.gmra.mrb[0].mxu0 %v1128
          %v1325 = vpop.f32.mrb[0].mxu0
          %v1326 = vadd.f32 %v1165, %v1325
          %v1327 = vpop.f32.mrb[0].mxu0
          %1328 = vmatprep.mubr.f32.mxu0 %v1195
          %1329 = vmatmul.mubr.f32.gmra.mrb[0].mxu0 %v1130
          %v1330 = vpop.f32.mrb[0].mxu0
          %v1331 = vadd.f32 %v1165, %v1330
          %v1332 = vpop.f32.mrb[0].mxu0
          %1333 = vmatprep.mubr.f32.mxu0 %v1198
          %1334 = vmatmul.mubr.f32.gmra.mrb[0].mxu0 %v1132
          %v1335 = vpop.f32.mrb[0].mxu0
          %v1336 = vadd.f32 %v1165, %v1335
          %v1337 = vpop.f32.mrb[0].mxu0
          %1338 = vmatprep.mubr.f32.mxu0 %v1201
          %1339 = vmatmul.mubr.f32.gmra.mrb[0].mxu0 %v1134
          %v1340 = vpop.f32.mrb[0].mxu0
          %v1341 = vadd.f32 %v1165, %v1340
          %v1342 = vpop.f32.mrb[0].mxu0
          %1343 = vmatprep.mubr.f32.mxu0 %v1204
          %1344 = vmatmul.mubr.f32.gmra.mrb[0].mxu0 %v1136
          %v1345 = vpop.f32.mrb[0].mxu0
          %v1346 = vadd.f32 %v1165, %v1345
          %v1347 = vpop.f32.mrb[0].mxu0
          %1348 = vmatprep.mubr.f32.mxu0 %v1207
          %1349 = vmatmul.mubr.f32.gmra.mrb[0].mxu0 %v1138
          %v1350 = vpop.f32.mrb[0].mxu0
          %v1351 = vadd.f32 %v1165, %v1350
          %v1352 = vpop.f32.mrb[0].mxu0
          %1353 = vmatprep.mubr.f32.mxu0 %v1210
          %1354 = vmatmul.mubr.f32.gmra.mrb[0].mxu0 %v1140
          %v1355 = vpop.f32.mrb[0].mxu0
          %v1356 = vadd.f32 %v1165, %v1355
          %v1357 = vpop.f32.mrb[0].mxu0
          %1358 = vmatprep.mubr.f32.mxu0 %v1213
          %1359 = vmatmul.mubr.f32.gmra.mrb[0].mxu0 %v1142
          %v1360 = vpop.f32.mrb[0].mxu0
          %v1361 = vadd.f32 %v1165, %v1360
          %v1362 = vpop.f32.mrb[0].mxu0
          %1363 = vdwg.mxu0
          %v1364 = vmul.f32 %v1286, 0.01
          %v1365 = vmul.f32 %v1291, 0.01
          %v1366 = vmul.f32 %v1296, 0.01
          %v1367 = vmul.f32 %v1301, 0.01
          %v1368 = vmul.f32 %v1306, 0.01
          %v1369 = vmul.f32 %v1311, 0.01
          %v1370 = vmul.f32 %v1316, 0.01
          %v1371 = vmul.f32 %v1321, 0.01
          %v1372 = vmul.f32 %v1326, 0.01
          %v1373 = vmul.f32 %v1331, 0.01
          %v1374 = vmul.f32 %v1336, 0.01
          %v1375 = vmul.f32 %v1341, 0.01
          %v1376 = vmul.f32 %v1346, 0.01
          %v1377 = vmul.f32 %v1351, 0.01
          %v1378 = vmul.f32 %v1356, 0.01
          %v1379 = vmul.f32 %v1361, 0.01
          %v1380 = vmax.f32 %v1286, %v1364
          %v1381 = vmax.f32 %v1291, %v1365
          %v1382 = vmax.f32 %v1296, %v1366
          %v1383 = vmax.f32 %v1301, %v1367
          %v1384 = vmax.f32 %v1306, %v1368
          %v1385 = vmax.f32 %v1311, %v1369
          %v1386 = vmax.f32 %v1316, %v1370
          %v1387 = vmax.f32 %v1321, %v1371
          %v1388 = vmax.f32 %v1326, %v1372
          %v1389 = vmax.f32 %v1331, %v1373
          %v1390 = vmax.f32 %v1336, %v1374
          %v1391 = vmax.f32 %v1341, %v1375
          %v1392 = vmax.f32 %v1346, %v1376
          %v1393 = vmax.f32 %v1351, %v1377
          %v1394 = vmax.f32 %v1356, %v1378
          %v1395 = vmax.f32 %v1361, %v1379
          %s1396 = smul.u32 %s21, 128
          %s1397 = scalar_lea.vmem [#allocation2], %s1396
          %vm1398 = vcmask 130048
          %1399 = vst.msk [vmem:[%s1397] sm:$0xff] %vm1398, %v1380
          %1400 = vst.msk [vmem:[%s1397 + $0x8] sm:$0xff] %vm1398, %v1381
          %1401 = vst.msk [vmem:[%s1397 + $0x10] sm:$0xff] %vm1398, %v1382
          %1402 = vst.msk [vmem:[%s1397 + $0x18] sm:$0xff] %vm1398, %v1383
          %1403 = vst.msk [vmem:[%s1397 + $0x20] sm:$0xff] %vm1398, %v1384
          %1404 = vst.msk [vmem:[%s1397 + $0x28] sm:$0xff] %vm1398, %v1385
          %1405 = vst.msk [vmem:[%s1397 + $0x30] sm:$0xff] %vm1398, %v1386
          %1406 = vst.msk [vmem:[%s1397 + $0x38] sm:$0xff] %vm1398, %v1387
          %1407 = vst.msk [vmem:[%s1397 + $0x40] sm:$0xff] %vm1398, %v1388
          %1408 = vst.msk [vmem:[%s1397 + $0x48] sm:$0xff] %vm1398, %v1389
          %1409 = vst.msk [vmem:[%s1397 + $0x50] sm:$0xff] %vm1398, %v1390
          %1410 = vst.msk [vmem:[%s1397 + $0x58] sm:$0xff] %vm1398, %v1391
          %1411 = vst.msk [vmem:[%s1397 + $0x60] sm:$0xff] %vm1398, %v1392
          %1412 = vst.msk [vmem:[%s1397 + $0x68] sm:$0xff] %vm1398, %v1393
          %1413 = vst.msk [vmem:[%s1397 + $0x70] sm:$0xff] %vm1398, %v1394
          %1414 = vst.msk [vmem:[%s1397 + $0x78] sm:$0xff] %vm1398, %v1395
          // Predicated region
          $region61: #{tpu_custom_call.1} parent=59 // pred_check
            %p1415 = pneg %p200
          $region62: #{tpu_custom_call.1} parent=59 // pred_check_branch
            %1417 = sbr.rel (%p1415) target = $region64
          $region63: #{tpu_custom_call.1} parent=59 // pred_region
            %v1418 = vlaneseq
            %v1419 = vshrl.u32 %v1418, 7
            %v1420 = vadd.s32 %v1419, 8
            %v1421 = vadd.s32 %v1419, 16
            %v1422 = vadd.s32 %v1419, 24
            %v1423 = vadd.s32 %v1419, 32
            %v1424 = vadd.s32 %v1419, 40
            %v1425 = vadd.s32 %v1419, 48
            %v1426 = vadd.s32 %v1419, 56
            %v1427 = vadd.s32 %v1419, 64
            %v1428 = vadd.s32 %v1419, 72
            %v1429 = vadd.s32 %v1419, 80
            %v1430 = vadd.s32 %v1419, 88
            %v1431 = vadd.s32 %v1419, 96
            %v1432 = vadd.s32 %v1419, 104
            %v1433 = vadd.s32 %v1419, 112
            %v1434 = vadd.s32 %v1419, 120
            %v1435 = vstv %s1396
            %v1436 = vadd.s32 %v1435, %v1419
            %v1437 = vadd.s32 %v1435, %v1420
            %v1438 = vadd.s32 %v1435, %v1421
            %v1439 = vadd.s32 %v1435, %v1422
            %v1440 = vadd.s32 %v1435, %v1423
            %v1441 = vadd.s32 %v1435, %v1424
            %v1442 = vadd.s32 %v1435, %v1425
            %v1443 = vadd.s32 %v1435, %v1426
            %v1444 = vadd.s32 %v1435, %v1427
            %v1445 = vadd.s32 %v1435, %v1428
            %v1446 = vadd.s32 %v1435, %v1429
            %v1447 = vadd.s32 %v1435, %v1430
            %v1448 = vadd.s32 %v1435, %v1431
            %v1449 = vadd.s32 %v1435, %v1432
            %v1450 = vadd.s32 %v1435, %v1433
            %v1451 = vadd.s32 %v1435, %v1434
            %vm1452 = vcmp.lt.s32.totalorder %v1436, 64
            %vm1453 = vcmp.lt.s32.totalorder %v1437, 64
            %vm1454 = vcmp.lt.s32.totalorder %v1438, 64
            %vm1455 = vcmp.lt.s32.totalorder %v1439, 64
            %vm1456 = vcmp.lt.s32.totalorder %v1440, 64
            %vm1457 = vcmp.lt.s32.totalorder %v1441, 64
            %vm1458 = vcmp.lt.s32.totalorder %v1442, 64
            %vm1459 = vcmp.lt.s32.totalorder %v1443, 64
            %vm1460 = vcmp.lt.s32.totalorder %v1444, 64
            %vm1461 = vcmp.lt.s32.totalorder %v1445, 64
            %vm1462 = vcmp.lt.s32.totalorder %v1446, 64
            %vm1463 = vcmp.lt.s32.totalorder %v1447, 64
            %vm1464 = vcmp.lt.s32.totalorder %v1448, 64
            %vm1465 = vcmp.lt.s32.totalorder %v1449, 64
            %vm1466 = vcmp.lt.s32.totalorder %v1450, 64
            %vm1467 = vcmp.lt.s32.totalorder %v1451, 64
            %v1468 = vsel %vm1452, 1, 0
            %v1469 = vsel %vm1453, 1, 0
            %v1470 = vsel %vm1454, 1, 0
            %v1471 = vsel %vm1455, 1, 0
            %v1472 = vsel %vm1456, 1, 0
            %v1473 = vsel %vm1457, 1, 0
            %v1474 = vsel %vm1458, 1, 0
            %v1475 = vsel %vm1459, 1, 0
            %v1476 = vsel %vm1460, 1, 0
            %v1477 = vsel %vm1461, 1, 0
            %v1478 = vsel %vm1462, 1, 0
            %v1479 = vsel %vm1463, 1, 0
            %v1480 = vsel %vm1464, 1, 0
            %v1481 = vsel %vm1465, 1, 0
            %v1482 = vsel %vm1466, 1, 0
            %v1483 = vsel %vm1467, 1, 0
            %v1484 = vcvt.s32.f32 %v1468
            %v1485 = vcvt.s32.f32 %v1469
            %v1486 = vcvt.s32.f32 %v1470
            %v1487 = vcvt.s32.f32 %v1471
            %v1488 = vcvt.s32.f32 %v1472
            %v1489 = vcvt.s32.f32 %v1473
            %v1490 = vcvt.s32.f32 %v1474
            %v1491 = vcvt.s32.f32 %v1475
            %v1492 = vcvt.s32.f32 %v1476
            %v1493 = vcvt.s32.f32 %v1477
            %v1494 = vcvt.s32.f32 %v1478
            %v1495 = vcvt.s32.f32 %v1479
            %v1496 = vcvt.s32.f32 %v1480
            %v1497 = vcvt.s32.f32 %v1481
            %v1498 = vcvt.s32.f32 %v1482
            %v1499 = vcvt.s32.f32 %v1483
            %v1500 = vmul.f32 %v1380, %v1484
            %v1501 = vmul.f32 %v1381, %v1485
            %v1502 = vmul.f32 %v1382, %v1486
            %v1503 = vmul.f32 %v1383, %v1487
            %v1504 = vmul.f32 %v1384, %v1488
            %v1505 = vmul.f32 %v1385, %v1489
            %v1506 = vmul.f32 %v1386, %v1490
            %v1507 = vmul.f32 %v1387, %v1491
            %v1508 = vmul.f32 %v1388, %v1492
            %v1509 = vmul.f32 %v1389, %v1493
            %v1510 = vmul.f32 %v1390, %v1494
            %v1511 = vmul.f32 %v1391, %v1495
            %v1512 = vmul.f32 %v1392, %v1496
            %v1513 = vmul.f32 %v1393, %v1497
            %v1514 = vmul.f32 %v1394, %v1498
            %v1515 = vmul.f32 %v1395, %v1499
            %v1516 = vld [vmem:[#allocation4] sm:$0x1]
            %v1517 = vsel %vm1398, %v1500, 0.0
            %v1518 = vsel %vm1398, %v1501, 0.0
            %v1519 = vadd.f32 %v1517, %v1518
            %v1520 = vsel %vm1398, %v1502, 0.0
            %v1521 = vadd.f32 %v1519, %v1520
            %v1522 = vsel %vm1398, %v1503, 0.0
            %v1523 = vadd.f32 %v1521, %v1522
            %v1524 = vsel %vm1398, %v1504, 0.0
            %v1525 = vadd.f32 %v1523, %v1524
            %v1526 = vsel %vm1398, %v1505, 0.0
            %v1527 = vadd.f32 %v1525, %v1526
            %v1528 = vsel %vm1398, %v1506, 0.0
            %v1529 = vadd.f32 %v1527, %v1528
            %v1530 = vsel %vm1398, %v1507, 0.0
            %v1531 = vadd.f32 %v1529, %v1530
            %v1532 = vsel %vm1398, %v1508, 0.0
            %v1533 = vadd.f32 %v1531, %v1532
            %v1534 = vsel %vm1398, %v1509, 0.0
            %v1535 = vadd.f32 %v1533, %v1534
            %v1536 = vsel %vm1398, %v1510, 0.0
            %v1537 = vadd.f32 %v1535, %v1536
            %v1538 = vsel %vm1398, %v1511, 0.0
            %v1539 = vadd.f32 %v1537, %v1538
            %v1540 = vsel %vm1398, %v1512, 0.0
            %v1541 = vadd.f32 %v1539, %v1540
            %v1542 = vsel %vm1398, %v1513, 0.0
            %v1543 = vadd.f32 %v1541, %v1542
            %v1544 = vsel %vm1398, %v1514, 0.0
            %v1545 = vadd.f32 %v1543, %v1544
            %v1546 = vsel %vm1398, %v1515, 0.0
            %v1547 = vadd.f32 %v1545, %v1546
            %v1548 = vrot.slane %v1547, 4
            %v1549 = vadd.f32 %v1547, %v1548
            %v1550 = vrot.slane %v1549, 2
            %v1551 = vadd.f32 %v1549, %v1550
            %v1552 = vrot.slane %v1551, 1
            %v1553 = vadd.f32 %v1551, %v1552
            %v1554 = vadd.f32 %v1516, %v1553
            %vm1555 = vcmask 122880
            %1556 = vst.msk [vmem:[#allocation4] sm:$0x1] %vm1555, %v1554
            %v1557 = vld [vmem:[#allocation4 + $0x1] sm:$0x1]
            %v1558 = vmul.f32 %v1500, %v1500
            %v1559 = vmul.f32 %v1501, %v1501
            %v1560 = vmul.f32 %v1502, %v1502
            %v1561 = vmul.f32 %v1503, %v1503
            %v1562 = vmul.f32 %v1504, %v1504
            %v1563 = vmul.f32 %v1505, %v1505
            %v1564 = vmul.f32 %v1506, %v1506
            %v1565 = vmul.f32 %v1507, %v1507
            %v1566 = vmul.f32 %v1508, %v1508
            %v1567 = vmul.f32 %v1509, %v1509
            %v1568 = vmul.f32 %v1510, %v1510
            %v1569 = vmul.f32 %v1511, %v1511
            %v1570 = vmul.f32 %v1512, %v1512
            %v1571 = vmul.f32 %v1513, %v1513
            %v1572 = vmul.f32 %v1514, %v1514
            %v1573 = vmul.f32 %v1515, %v1515
            %v1574 = vsel %vm1398, %v1558, 0.0
            %v1575 = vsel %vm1398, %v1559, 0.0
            %v1576 = vadd.f32 %v1574, %v1575
            %v1577 = vsel %vm1398, %v1560, 0.0
            %v1578 = vadd.f32 %v1576, %v1577
            %v1579 = vsel %vm1398, %v1561, 0.0
            %v1580 = vadd.f32 %v1578, %v1579
            %v1581 = vsel %vm1398, %v1562, 0.0
            %v1582 = vadd.f32 %v1580, %v1581
            %v1583 = vsel %vm1398, %v1563, 0.0
            %v1584 = vadd.f32 %v1582, %v1583
            %v1585 = vsel %vm1398, %v1564, 0.0
            %v1586 = vadd.f32 %v1584, %v1585
            %v1587 = vsel %vm1398, %v1565, 0.0
            %v1588 = vadd.f32 %v1586, %v1587
            %v1589 = vsel %vm1398, %v1566, 0.0
            %v1590 = vadd.f32 %v1588, %v1589
            %v1591 = vsel %vm1398, %v1567, 0.0
            %v1592 = vadd.f32 %v1590, %v1591
            %v1593 = vsel %vm1398, %v1568, 0.0
            %v1594 = vadd.f32 %v1592, %v1593
            %v1595 = vsel %vm1398, %v1569, 0.0
            %v1596 = vadd.f32 %v1594, %v1595
            %v1597 = vsel %vm1398, %v1570, 0.0
            %v1598 = vadd.f32 %v1596, %v1597
            %v1599 = vsel %vm1398, %v1571, 0.0
            %v1600 = vadd.f32 %v1598, %v1599
            %v1601 = vsel %vm1398, %v1572, 0.0
            %v1602 = vadd.f32 %v1600, %v1601
            %v1603 = vsel %vm1398, %v1573, 0.0
            %v1604 = vadd.f32 %v1602, %v1603
            %v1605 = vrot.slane %v1604, 4
            %v1606 = vadd.f32 %v1604, %v1605
            %v1607 = vrot.slane %v1606, 2
            %v1608 = vadd.f32 %v1606, %v1607
            %v1609 = vrot.slane %v1608, 1
            %v1610 = vadd.f32 %v1608, %v1609
            %v1611 = vadd.f32 %v1557, %v1610
            %1612 = vst.msk [vmem:[#allocation4 + $0x1] sm:$0x1] %vm1555, %v1611
          $region64: #{tpu_custom_call.1} parent=59 // pred_fallthru
            _
          %p1613 = scmp.ne.s32.totalorder %s21, 0
          // Predicated region
          $region65: #{tpu_custom_call.1} parent=59 // pred_check
            %p1614 = pneg %p1613
          $region66: #{tpu_custom_call.1} parent=59 // pred_check_branch
            %1616 = sbr.rel (%p1614) target = $region68
          $region67: #{tpu_custom_call.1} parent=59 // pred_region
            %v1617 = vld [vmem:[#allocation4] sm:$0x1]
            %v1618 = vsel %vm1398, %v1380, 0.0
            %v1619 = vsel %vm1398, %v1381, 0.0
            %v1620 = vadd.f32 %v1618, %v1619
            %v1621 = vsel %vm1398, %v1382, 0.0
            %v1622 = vadd.f32 %v1620, %v1621
            %v1623 = vsel %vm1398, %v1383, 0.0
            %v1624 = vadd.f32 %v1622, %v1623
            %v1625 = vsel %vm1398, %v1384, 0.0
            %v1626 = vadd.f32 %v1624, %v1625
            %v1627 = vsel %vm1398, %v1385, 0.0
            %v1628 = vadd.f32 %v1626, %v1627
            %v1629 = vsel %vm1398, %v1386, 0.0
            %v1630 = vadd.f32 %v1628, %v1629
            %v1631 = vsel %vm1398, %v1387, 0.0
            %v1632 = vadd.f32 %v1630, %v1631
            %v1633 = vsel %vm1398, %v1388, 0.0
            %v1634 = vadd.f32 %v1632, %v1633
            %v1635 = vsel %vm1398, %v1389, 0.0
            %v1636 = vadd.f32 %v1634, %v1635
            %v1637 = vsel %vm1398, %v1390, 0.0
            %v1638 = vadd.f32 %v1636, %v1637
            %v1639 = vsel %vm1398, %v1391, 0.0
            %v1640 = vadd.f32 %v1638, %v1639
            %v1641 = vsel %vm1398, %v1392, 0.0
            %v1642 = vadd.f32 %v1640, %v1641
            %v1643 = vsel %vm1398, %v1393, 0.0
            %v1644 = vadd.f32 %v1642, %v1643
            %v1645 = vsel %vm1398, %v1394, 0.0
            %v1646 = vadd.f32 %v1644, %v1645
            %v1647 = vsel %vm1398, %v1395, 0.0
            %v1648 = vadd.f32 %v1646, %v1647
            %v1649 = vrot.slane %v1648, 4
            %v1650 = vadd.f32 %v1648, %v1649
            %v1651 = vrot.slane %v1650, 2
            %v1652 = vadd.f32 %v1650, %v1651
            %v1653 = vrot.slane %v1652, 1
            %v1654 = vadd.f32 %v1652, %v1653
            %v1655 = vadd.f32 %v1617, %v1654
            %vm1656 = vcmask 122880
            %1657 = vst.msk [vmem:[#allocation4] sm:$0x1] %vm1656, %v1655
            %v1658 = vld [vmem:[#allocation4 + $0x1] sm:$0x1]
            %v1659 = vmul.f32 %v1380, %v1380
            %v1660 = vmul.f32 %v1381, %v1381
            %v1661 = vmul.f32 %v1382, %v1382
            %v1662 = vmul.f32 %v1383, %v1383
            %v1663 = vmul.f32 %v1384, %v1384
            %v1664 = vmul.f32 %v1385, %v1385
            %v1665 = vmul.f32 %v1386, %v1386
            %v1666 = vmul.f32 %v1387, %v1387
            %v1667 = vmul.f32 %v1388, %v1388
            %v1668 = vmul.f32 %v1389, %v1389
            %v1669 = vmul.f32 %v1390, %v1390
            %v1670 = vmul.f32 %v1391, %v1391
            %v1671 = vmul.f32 %v1392, %v1392
            %v1672 = vmul.f32 %v1393, %v1393
            %v1673 = vmul.f32 %v1394, %v1394
            %v1674 = vmul.f32 %v1395, %v1395
            %v1675 = vsel %vm1398, %v1659, 0.0
            %v1676 = vsel %vm1398, %v1660, 0.0
            %v1677 = vadd.f32 %v1675, %v1676
            %v1678 = vsel %vm1398, %v1661, 0.0
            %v1679 = vadd.f32 %v1677, %v1678
            %v1680 = vsel %vm1398, %v1662, 0.0
            %v1681 = vadd.f32 %v1679, %v1680
            %v1682 = vsel %vm1398, %v1663, 0.0
            %v1683 = vadd.f32 %v1681, %v1682
            %v1684 = vsel %vm1398, %v1664, 0.0
            %v1685 = vadd.f32 %v1683, %v1684
            %v1686 = vsel %vm1398, %v1665, 0.0
            %v1687 = vadd.f32 %v1685, %v1686
            %v1688 = vsel %vm1398, %v1666, 0.0
            %v1689 = vadd.f32 %v1687, %v1688
            %v1690 = vsel %vm1398, %v1667, 0.0
            %v1691 = vadd.f32 %v1689, %v1690
            %v1692 = vsel %vm1398, %v1668, 0.0
            %v1693 = vadd.f32 %v1691, %v1692
            %v1694 = vsel %vm1398, %v1669, 0.0
            %v1695 = vadd.f32 %v1693, %v1694
            %v1696 = vsel %vm1398, %v1670, 0.0
            %v1697 = vadd.f32 %v1695, %v1696
            %v1698 = vsel %vm1398, %v1671, 0.0
            %v1699 = vadd.f32 %v1697, %v1698
            %v1700 = vsel %vm1398, %v1672, 0.0
            %v1701 = vadd.f32 %v1699, %v1700
            %v1702 = vsel %vm1398, %v1673, 0.0
            %v1703 = vadd.f32 %v1701, %v1702
            %v1704 = vsel %vm1398, %v1674, 0.0
            %v1705 = vadd.f32 %v1703, %v1704
            %v1706 = vrot.slane %v1705, 4
            %v1707 = vadd.f32 %v1705, %v1706
            %v1708 = vrot.slane %v1707, 2
            %v1709 = vadd.f32 %v1707, %v1708
            %v1710 = vrot.slane %v1709, 1
            %v1711 = vadd.f32 %v1709, %v1710
            %v1712 = vadd.f32 %v1658, %v1711
            %1713 = vst.msk [vmem:[#allocation4 + $0x1] sm:$0x1] %vm1656, %v1712
          $region68: #{tpu_custom_call.1} parent=59 // pred_fallthru
            _
          // Predicated region
          $region69: #{tpu_custom_call.1} parent=59 // pred_check
            %p1714 = pneg %p200
          $region70: #{tpu_custom_call.1} parent=59 // pred_check_branch
            %1716 = sbr.rel (%p1714) target = $region72
          $region71: #{tpu_custom_call.1} parent=59 // pred_region
            %v1717 = vld [vmem:[#allocation4] sm:$0x1]
            %v1718 = vld [vmem:[#allocation4 + $0x1] sm:$0x1]
            %v1719 = vld [vmem:[%s3 + $0xc1] sm:$0x1]
            %v1720 = vld [vmem:[%s3 + $0xc2] sm:$0x1]
            %v1721 = vmul.f32 %v1717, 0.015625
            %v1722 = vmul.f32 %v1718, 0.015625
            %v1723 = vmul.f32 %v1721, %v1721
            %v1724 = vsub.f32 %v1722, %v1723
            %v1725 = vmax.f32 %v1724, 0.0
            %v1726 = vadd.f32 %v1725, 1e-05
            %v1727 = vrsqrt.pop %v1726
            %v1728 = vmul.f32 %v1719, %v1727
            %v1729 = vmul.f32 %v1721, %v1728
            %v1730 = vsub.f32 %v1720, %v1729
            %v1731 = vld [vmem:[%s3 + $0x88] sm:$0xff]
            %v1732 = vld [vmem:[%s3 + $0x90] sm:$0xff]
            %v1733 = vld [vmem:[%s3 + $0x98] sm:$0xff]
            %v1734 = vld [vmem:[%s3 + $0xa0] sm:$0xff]
            %v1735 = vld [vmem:[%s3 + $0xa8] sm:$0xff]
            %v1736 = vld [vmem:[%s3 + $0xb0] sm:$0xff]
            %v1737 = vld [vmem:[%s3 + $0xb8] sm:$0x1]
            %v1738 = vld [vmem:[%s3 + $0xc3] sm:$0x1]
            %v1739 = vld [vmem:[%s3 + $0xc6] sm:$0x1]
            %v1740 = vld [vmem:[%s3 + $0xc9] sm:$0x1]
            %v1741 = vld [vmem:[%s3 + $0xca] sm:$0x1]
            %v1742 = vld [vmem:[%s3 + $0xc4] sm:$0x1]
            %v1743 = vld [vmem:[%s3 + $0xc5] sm:$0x1]
            %v1744 = vld [vmem:[%s3 + $0xc7] sm:$0x1]
            %v1745 = vld [vmem:[%s3 + $0xc8] sm:$0x1]
            %v1746 = vld [vmem:[#allocation2] sm:$0xff]
            %v1747 = vld [vmem:[#allocation2 + $0x8] sm:$0xff]
            %v1748 = vld [vmem:[#allocation2 + $0x10] sm:$0xff]
            %v1749 = vld [vmem:[#allocation2 + $0x18] sm:$0xff]
            %v1750 = vld [vmem:[#allocation2 + $0x20] sm:$0xff]
            %v1751 = vld [vmem:[#allocation2 + $0x28] sm:$0xff]
            %v1752 = vld [vmem:[#allocation2 + $0x30] sm:$0xff]
            %v1753 = vld [vmem:[#allocation2 + $0x38] sm:$0xff]
            %v1754 = vld [vmem:[#allocation2 + $0x40] sm:$0xff]
            %v1755 = vld [vmem:[#allocation2 + $0x48] sm:$0xff]
            %v1756 = vld [vmem:[#allocation2 + $0x50] sm:$0xff]
            %v1757 = vld [vmem:[#allocation2 + $0x58] sm:$0xff]
            %v1758 = vld [vmem:[#allocation2 + $0x60] sm:$0xff]
            %v1759 = vld [vmem:[#allocation2 + $0x68] sm:$0xff]
            %v1760 = vld [vmem:[#allocation2 + $0x70] sm:$0xff]
            %v1761 = vld [vmem:[#allocation2 + $0x78] sm:$0xff]
            %v1762 = vlaneseq
            %v1763 = vshrl.u32 %v1762, 7
            %v1764 = vsub.s32 0, %v1763
            %v1765 = vrot.slane %v1728, %v1764
            %v1766 = vmul.f32 %v1746, %v1765
            %v1767 = vmul.f32 %v1747, %v1765
            %v1768 = vmul.f32 %v1748, %v1765
            %v1769 = vmul.f32 %v1749, %v1765
            %v1770 = vmul.f32 %v1750, %v1765
            %v1771 = vmul.f32 %v1751, %v1765
            %v1772 = vmul.f32 %v1752, %v1765
            %v1773 = vmul.f32 %v1753, %v1765
            %v1774 = vmul.f32 %v1754, %v1765
            %v1775 = vmul.f32 %v1755, %v1765
            %v1776 = vmul.f32 %v1756, %v1765
            %v1777 = vmul.f32 %v1757, %v1765
            %v1778 = vmul.f32 %v1758, %v1765
            %v1779 = vmul.f32 %v1759, %v1765
            %v1780 = vmul.f32 %v1760, %v1765
            %v1781 = vmul.f32 %v1761, %v1765
            %v1782 = vlaneseq
            %v1783 = vshrl.u32 %v1782, 7
            %v1784 = vsub.s32 0, %v1783
            %v1785 = vrot.slane %v1730, %v1784
            %v1786 = vadd.f32 %v1766, %v1785
            %v1787 = vadd.f32 %v1767, %v1785
            %v1788 = vadd.f32 %v1768, %v1785
            %v1789 = vadd.f32 %v1769, %v1785
            %v1790 = vadd.f32 %v1770, %v1785
            %v1791 = vadd.f32 %v1771, %v1785
            %v1792 = vadd.f32 %v1772, %v1785
            %v1793 = vadd.f32 %v1773, %v1785
            %v1794 = vadd.f32 %v1774, %v1785
            %v1795 = vadd.f32 %v1775, %v1785
            %v1796 = vadd.f32 %v1776, %v1785
            %v1797 = vadd.f32 %v1777, %v1785
            %v1798 = vadd.f32 %v1778, %v1785
            %v1799 = vadd.f32 %v1779, %v1785
            %v1800 = vadd.f32 %v1780, %v1785
            %v1801 = vadd.f32 %v1781, %v1785
            %v1802 = vlaneseq
            %v1803 = vshrl.u32 %v1802, 7
            %v1804 = vsub.s32 0, %v1803
            %v1805 = vrot.slane %v1738, %v1804
            %v1807 = vsel %vm1398, %v1786, 0
            %v1810 = vsel %vm1398, %v1787, 0
            %v1813 = vsel %vm1398, %v1788, 0
            %v1816 = vsel %vm1398, %v1789, 0
            %v1819 = vsel %vm1398, %v1790, 0
            %v1822 = vsel %vm1398, %v1791, 0
            %v1825 = vsel %vm1398, %v1792, 0
            %v1828 = vsel %vm1398, %v1793, 0
            %v1831 = vsel %vm1398, %v1794, 0
            %v1834 = vsel %vm1398, %v1795, 0
            %v1837 = vsel %vm1398, %v1796, 0
            %v1840 = vsel %vm1398, %v1797, 0
            %v1843 = vsel %vm1398, %v1798, 0
            %v1846 = vsel %vm1398, %v1799, 0
            %v1849 = vsel %vm1398, %v1800, 0
            %v1852 = vsel %vm1398, %v1801, 0
            %1854 = vmatprep.subr.mxu0 0.0
            %1855 = vmatpush1.msra.mxu0 %v1731
            %1856 = vmatprep.subr.mxu0 0.0
            %1857 = vmatpush1.msra.mxu0 %v1732
            %1858 = vmatprep.subr.mxu0 0.0
            %1859 = vmatpush1.msra.mxu0 0.0
            %1860 = vmatprep.subr.mxu0 0.0
            %1861 = vmatpush1.msra.mxu0 0.0
            %1862 = vmatprep.subr.mxu0 0.0
            %1863 = vmatpush1.msra.mxu0 0.0
            %1864 = vmatprep.subr.mxu0 0.0
            %1865 = vmatpush1.msra.mxu0 0.0
            %1866 = vmatprep.subr.mxu0 0.0
            %1867 = vmatpush1.msra.mxu0 0.0
            %1868 = vmatprep.subr.mxu0 0.0
            %1869 = vmatpush1.msra.mxu0 0.0
            %1870 = vmatprep.subr.mxu0 0.0
            %1871 = vmatpush1.msra.mxu0 0.0
            %1872 = vmatprep.subr.mxu0 0.0
            %1873 = vmatpush1.msra.mxu0 0.0
            %1874 = vmatprep.subr.mxu0 0.0
            %1875 = vmatpush1.msra.mxu0 0.0
            %1876 = vmatprep.subr.mxu0 0.0
            %1877 = vmatpush1.msra.mxu0 0.0
            %1878 = vmatprep.subr.mxu0 0.0
            %1879 = vmatpush1.msra.mxu0 0.0
            %1880 = vmatprep.subr.mxu0 0.0
            %1881 = vmatpush1.msra.mxu0 0.0
            %1882 = vmatprep.subr.mxu0 0.0
            %1883 = vmatpush1.msra.mxu0 0.0
            %1884 = vmatprep.subr.mxu0 0.0
            %1885 = vmatpush1.msra.mxu0 0.0
            %1886 = vmatprep.subr.mxu0 0.0
            %1887 = vmatpush1.msra.mxu0 0.0
            %1888 = vmatprep.subr.mxu0 0.0
            %1889 = vmatpush1.msra.mxu0 0.0
            %1890 = vmatprep.subr.mxu0 0.0
            %1891 = vmatpush1.msra.mxu0 0.0
            %1892 = vmatprep.subr.mxu0 0.0
            %1893 = vmatpush1.msra.mxu0 0.0
            %1894 = vmatprep.subr.mxu0 0.0
            %1895 = vmatpush1.msra.mxu0 0.0
            %1896 = vmatprep.subr.mxu0 0.0
            %1897 = vmatpush1.msra.mxu0 0.0
            %1898 = vmatprep.subr.mxu0 0.0
            %1899 = vmatpush1.msra.mxu0 0.0
            %1900 = vmatprep.subr.mxu0 0.0
            %1901 = vmatpush1.msra.mxu0 0.0
            %1902 = vmatprep.subr.mxu0 0.0
            %1903 = vmatpush1.msra.mxu0 0.0
            %1904 = vmatprep.subr.mxu0 0.0
            %1905 = vmatpush1.msra.mxu0 0.0
            %1906 = vmatprep.subr.mxu0 0.0
            %1907 = vmatpush1.msra.mxu0 0.0
            %1908 = vmatprep.subr.mxu0 0.0
            %1909 = vmatpush1.msra.mxu0 0.0
            %1910 = vmatprep.subr.mxu0 0.0
            %1911 = vmatpush1.msra.mxu0 0.0
            %1912 = vmatprep.subr.mxu0 0.0
            %1913 = vmatpush1.msra.mxu0 0.0
            %1914 = vmatprep.subr.mxu0 0.0
            %1915 = vmatpush1.msra.mxu0 0.0
            %1916 = vmatprep.subr.mxu0 0.0
            %1917 = vmatpush1.msra.mxu0 0.0
            %1918 = vmatprep.mubr.f32.mxu0 0.0
            %1919 = vmatmul.mubr.f32.gmra.mrb[0].mxu0 %v1807
            %v1920 = vpop.f32.mrb[0].mxu0
            %v1921 = vadd.f32 %v1805, %v1920
            %v1922 = vpop.f32.mrb[0].mxu0
            %1923 = vmatprep.mubr.f32.mxu0 0.0
            %1924 = vmatmul.mubr.f32.gmra.mrb[0].mxu0 %v1810
            %v1925 = vpop.f32.mrb[0].mxu0
            %v1926 = vadd.f32 %v1805, %v1925
            %v1927 = vpop.f32.mrb[0].mxu0
            %1928 = vmatprep.mubr.f32.mxu0 0.0
            %1929 = vmatmul.mubr.f32.gmra.mrb[0].mxu0 %v1813
            %v1930 = vpop.f32.mrb[0].mxu0
            %v1931 = vadd.f32 %v1805, %v1930
            %v1932 = vpop.f32.mrb[0].mxu0
            %1933 = vmatprep.mubr.f32.mxu0 0.0
            %1934 = vmatmul.mubr.f32.gmra.mrb[0].mxu0 %v1816
            %v1935 = vpop.f32.mrb[0].mxu0
            %v1936 = vadd.f32 %v1805, %v1935
            %v1937 = vpop.f32.mrb[0].mxu0
            %1938 = vmatprep.mubr.f32.mxu0 0.0
            %1939 = vmatmul.mubr.f32.gmra.mrb[0].mxu0 %v1819
            %v1940 = vpop.f32.mrb[0].mxu0
            %v1941 = vadd.f32 %v1805, %v1940
            %v1942 = vpop.f32.mrb[0].mxu0
            %1943 = vmatprep.mubr.f32.mxu0 0.0
            %1944 = vmatmul.mubr.f32.gmra.mrb[0].mxu0 %v1822
            %v1945 = vpop.f32.mrb[0].mxu0
            %v1946 = vadd.f32 %v1805, %v1945
            %v1947 = vpop.f32.mrb[0].mxu0
            %1948 = vmatprep.mubr.f32.mxu0 0.0
            %1949 = vmatmul.mubr.f32.gmra.mrb[0].mxu0 %v1825
            %v1950 = vpop.f32.mrb[0].mxu0
            %v1951 = vadd.f32 %v1805, %v1950
            %v1952 = vpop.f32.mrb[0].mxu0
            %1953 = vmatprep.mubr.f32.mxu0 0.0
            %1954 = vmatmul.mubr.f32.gmra.mrb[0].mxu0 %v1828
            %v1955 = vpop.f32.mrb[0].mxu0
            %v1956 = vadd.f32 %v1805, %v1955
            %v1957 = vpop.f32.mrb[0].mxu0
            %1958 = vmatprep.mubr.f32.mxu0 0.0
            %1959 = vmatmul.mubr.f32.gmra.mrb[0].mxu0 %v1831
            %v1960 = vpop.f32.mrb[0].mxu0
            %v1961 = vadd.f32 %v1805, %v1960
            %v1962 = vpop.f32.mrb[0].mxu0
            %1963 = vmatprep.mubr.f32.mxu0 0.0
            %1964 = vmatmul.mubr.f32.gmra.mrb[0].mxu0 %v1834
            %v1965 = vpop.f32.mrb[0].mxu0
            %v1966 = vadd.f32 %v1805, %v1965
            %v1967 = vpop.f32.mrb[0].mxu0
            %1968 = vmatprep.mubr.f32.mxu0 0.0
            %1969 = vmatmul.mubr.f32.gmra.mrb[0].mxu0 %v1837
            %v1970 = vpop.f32.mrb[0].mxu0
            %v1971 = vadd.f32 %v1805, %v1970
            %v1972 = vpop.f32.mrb[0].mxu0
            %1973 = vmatprep.mubr.f32.mxu0 0.0
            %1974 = vmatmul.mubr.f32.gmra.mrb[0].mxu0 %v1840
            %v1975 = vpop.f32.mrb[0].mxu0
            %v1976 = vadd.f32 %v1805, %v1975
            %v1977 = vpop.f32.mrb[0].mxu0
            %1978 = vmatprep.mubr.f32.mxu0 0.0
            %1979 = vmatmul.mubr.f32.gmra.mrb[0].mxu0 %v1843
            %v1980 = vpop.f32.mrb[0].mxu0
            %v1981 = vadd.f32 %v1805, %v1980
            %v1982 = vpop.f32.mrb[0].mxu0
            %1983 = vmatprep.mubr.f32.mxu0 0.0
            %1984 = vmatmul.mubr.f32.gmra.mrb[0].mxu0 %v1846
            %v1985 = vpop.f32.mrb[0].mxu0
            %v1986 = vadd.f32 %v1805, %v1985
            %v1987 = vpop.f32.mrb[0].mxu0
            %1988 = vmatprep.mubr.f32.mxu0 0.0
            %1989 = vmatmul.mubr.f32.gmra.mrb[0].mxu0 %v1849
            %v1990 = vpop.f32.mrb[0].mxu0
            %v1991 = vadd.f32 %v1805, %v1990
            %v1992 = vpop.f32.mrb[0].mxu0
            %1993 = vmatprep.mubr.f32.mxu0 0.0
            %1994 = vmatmul.mubr.f32.gmra.mrb[0].mxu0 %v1852
            %v1995 = vpop.f32.mrb[0].mxu0
            %v1996 = vadd.f32 %v1805, %v1995
            %v1997 = vpop.f32.mrb[0].mxu0
            %1998 = vdwg.mxu0
            %v1999 = vmul.f32 %v1921, 0.01
            %v2000 = vmul.f32 %v1926, 0.01
            %v2001 = vmul.f32 %v1931, 0.01
            %v2002 = vmul.f32 %v1936, 0.01
            %v2003 = vmul.f32 %v1941, 0.01
            %v2004 = vmul.f32 %v1946, 0.01
            %v2005 = vmul.f32 %v1951, 0.01
            %v2006 = vmul.f32 %v1956, 0.01
            %v2007 = vmul.f32 %v1961, 0.01
            %v2008 = vmul.f32 %v1966, 0.01
            %v2009 = vmul.f32 %v1971, 0.01
            %v2010 = vmul.f32 %v1976, 0.01
            %v2011 = vmul.f32 %v1981, 0.01
            %v2012 = vmul.f32 %v1986, 0.01
            %v2013 = vmul.f32 %v1991, 0.01
            %v2014 = vmul.f32 %v1996, 0.01
            %v2015 = vmax.f32 %v1921, %v1999
            %v2016 = vmax.f32 %v1926, %v2000
            %v2017 = vmax.f32 %v1931, %v2001
            %v2018 = vmax.f32 %v1936, %v2002
            %v2019 = vmax.f32 %v1941, %v2003
            %v2020 = vmax.f32 %v1946, %v2004
            %v2021 = vmax.f32 %v1951, %v2005
            %v2022 = vmax.f32 %v1956, %v2006
            %v2023 = vmax.f32 %v1961, %v2007
            %v2024 = vmax.f32 %v1966, %v2008
            %v2025 = vmax.f32 %v1971, %v2009
            %v2026 = vmax.f32 %v1976, %v2010
            %v2027 = vmax.f32 %v1981, %v2011
            %v2028 = vmax.f32 %v1986, %v2012
            %v2029 = vmax.f32 %v1991, %v2013
            %v2030 = vmax.f32 %v1996, %v2014
            %v2031 = vlaneseq
            %v2032 = vshrl.u32 %v2031, 7
            %v2033 = vadd.s32 %v2032, 8
            %v2034 = vadd.s32 %v2032, 16
            %v2035 = vadd.s32 %v2032, 24
            %v2036 = vadd.s32 %v2032, 32
            %v2037 = vadd.s32 %v2032, 40
            %v2038 = vadd.s32 %v2032, 48
            %v2039 = vadd.s32 %v2032, 56
            %v2040 = vadd.s32 %v2032, 64
            %v2041 = vadd.s32 %v2032, 72
            %v2042 = vadd.s32 %v2032, 80
            %v2043 = vadd.s32 %v2032, 88
            %v2044 = vadd.s32 %v2032, 96
            %v2045 = vadd.s32 %v2032, 104
            %v2046 = vadd.s32 %v2032, 112
            %v2047 = vadd.s32 %v2032, 120
            %vm2048 = vcmp.lt.s32.totalorder %v2032, 64
            %vm2049 = vcmp.lt.s32.totalorder %v2033, 64
            %vm2050 = vcmp.lt.s32.totalorder %v2034, 64
            %vm2051 = vcmp.lt.s32.totalorder %v2035, 64
            %vm2052 = vcmp.lt.s32.totalorder %v2036, 64
            %vm2053 = vcmp.lt.s32.totalorder %v2037, 64
            %vm2054 = vcmp.lt.s32.totalorder %v2038, 64
            %vm2055 = vcmp.lt.s32.totalorder %v2039, 64
            %vm2056 = vcmp.lt.s32.totalorder %v2040, 64
            %vm2057 = vcmp.lt.s32.totalorder %v2041, 64
            %vm2058 = vcmp.lt.s32.totalorder %v2042, 64
            %vm2059 = vcmp.lt.s32.totalorder %v2043, 64
            %vm2060 = vcmp.lt.s32.totalorder %v2044, 64
            %vm2061 = vcmp.lt.s32.totalorder %v2045, 64
            %vm2062 = vcmp.lt.s32.totalorder %v2046, 64
            %vm2063 = vcmp.lt.s32.totalorder %v2047, 64
            %v2064 = vsel %vm2048, 1, 0
            %v2065 = vsel %vm2049, 1, 0
            %v2066 = vsel %vm2050, 1, 0
            %v2067 = vsel %vm2051, 1, 0
            %v2068 = vsel %vm2052, 1, 0
            %v2069 = vsel %vm2053, 1, 0
            %v2070 = vsel %vm2054, 1, 0
            %v2071 = vsel %vm2055, 1, 0
            %v2072 = vsel %vm2056, 1, 0
            %v2073 = vsel %vm2057, 1, 0
            %v2074 = vsel %vm2058, 1, 0
            %v2075 = vsel %vm2059, 1, 0
            %v2076 = vsel %vm2060, 1, 0
            %v2077 = vsel %vm2061, 1, 0
            %v2078 = vsel %vm2062, 1, 0
            %v2079 = vsel %vm2063, 1, 0
            %v2080 = vcvt.s32.f32 %v2064
            %v2081 = vcvt.s32.f32 %v2065
            %v2082 = vcvt.s32.f32 %v2066
            %v2083 = vcvt.s32.f32 %v2067
            %v2084 = vcvt.s32.f32 %v2068
            %v2085 = vcvt.s32.f32 %v2069
            %v2086 = vcvt.s32.f32 %v2070
            %v2087 = vcvt.s32.f32 %v2071
            %v2088 = vcvt.s32.f32 %v2072
            %v2089 = vcvt.s32.f32 %v2073
            %v2090 = vcvt.s32.f32 %v2074
            %v2091 = vcvt.s32.f32 %v2075
            %v2092 = vcvt.s32.f32 %v2076
            %v2093 = vcvt.s32.f32 %v2077
            %v2094 = vcvt.s32.f32 %v2078
            %v2095 = vcvt.s32.f32 %v2079
            %v2096 = vmul.f32 %v2015, %v2080
            %v2097 = vmul.f32 %v2016, %v2081
            %v2098 = vmul.f32 %v2017, %v2082
            %v2099 = vmul.f32 %v2018, %v2083
            %v2100 = vmul.f32 %v2019, %v2084
            %v2101 = vmul.f32 %v2020, %v2085
            %v2102 = vmul.f32 %v2021, %v2086
            %v2103 = vmul.f32 %v2022, %v2087
            %v2104 = vmul.f32 %v2023, %v2088
            %v2105 = vmul.f32 %v2024, %v2089
            %v2106 = vmul.f32 %v2025, %v2090
            %v2107 = vmul.f32 %v2026, %v2091
            %v2108 = vmul.f32 %v2027, %v2092
            %v2109 = vmul.f32 %v2028, %v2093
            %v2110 = vmul.f32 %v2029, %v2094
            %v2111 = vmul.f32 %v2030, %v2095
            %v2112 = vsel %vm1398, %v2096, 0.0
            %v2113 = vsel %vm1398, %v2097, 0.0
            %v2114 = vadd.f32 %v2112, %v2113
            %v2115 = vsel %vm1398, %v2098, 0.0
            %v2116 = vadd.f32 %v2114, %v2115
            %v2117 = vsel %vm1398, %v2099, 0.0
            %v2118 = vadd.f32 %v2116, %v2117
            %v2119 = vsel %vm1398, %v2100, 0.0
            %v2120 = vadd.f32 %v2118, %v2119
            %v2121 = vsel %vm1398, %v2101, 0.0
            %v2122 = vadd.f32 %v2120, %v2121
            %v2123 = vsel %vm1398, %v2102, 0.0
            %v2124 = vadd.f32 %v2122, %v2123
            %v2125 = vsel %vm1398, %v2103, 0.0
            %v2126 = vadd.f32 %v2124, %v2125
            %v2127 = vsel %vm1398, %v2104, 0.0
            %v2128 = vadd.f32 %v2126, %v2127
            %v2129 = vsel %vm1398, %v2105, 0.0
            %v2130 = vadd.f32 %v2128, %v2129
            %v2131 = vsel %vm1398, %v2106, 0.0
            %v2132 = vadd.f32 %v2130, %v2131
            %v2133 = vsel %vm1398, %v2107, 0.0
            %v2134 = vadd.f32 %v2132, %v2133
            %v2135 = vsel %vm1398, %v2108, 0.0
            %v2136 = vadd.f32 %v2134, %v2135
            %v2137 = vsel %vm1398, %v2109, 0.0
            %v2138 = vadd.f32 %v2136, %v2137
            %v2139 = vsel %vm1398, %v2110, 0.0
            %v2140 = vadd.f32 %v2138, %v2139
            %v2141 = vsel %vm1398, %v2111, 0.0
            %v2142 = vadd.f32 %v2140, %v2141
            %v2143 = vrot.slane %v2142, 4
            %v2144 = vadd.f32 %v2142, %v2143
            %v2145 = vrot.slane %v2144, 2
            %v2146 = vadd.f32 %v2144, %v2145
            %v2147 = vrot.slane %v2146, 1
            %v2148 = vadd.f32 %v2146, %v2147
            %v2149 = vadd.f32 %v2148, 0.0
            %v2150 = vmul.f32 %v2096, %v2096
            %v2151 = vmul.f32 %v2097, %v2097
            %v2152 = vmul.f32 %v2098, %v2098
            %v2153 = vmul.f32 %v2099, %v2099
            %v2154 = vmul.f32 %v2100, %v2100
            %v2155 = vmul.f32 %v2101, %v2101
            %v2156 = vmul.f32 %v2102, %v2102
            %v2157 = vmul.f32 %v2103, %v2103
            %v2158 = vmul.f32 %v2104, %v2104
            %v2159 = vmul.f32 %v2105, %v2105
            %v2160 = vmul.f32 %v2106, %v2106
            %v2161 = vmul.f32 %v2107, %v2107
            %v2162 = vmul.f32 %v2108, %v2108
            %v2163 = vmul.f32 %v2109, %v2109
            %v2164 = vmul.f32 %v2110, %v2110
            %v2165 = vmul.f32 %v2111, %v2111
            %v2166 = vsel %vm1398, %v2150, 0.0
            %v2167 = vsel %vm1398, %v2151, 0.0
            %v2168 = vadd.f32 %v2166, %v2167
            %v2169 = vsel %vm1398, %v2152, 0.0
            %v2170 = vadd.f32 %v2168, %v2169
            %v2171 = vsel %vm1398, %v2153, 0.0
            %v2172 = vadd.f32 %v2170, %v2171
            %v2173 = vsel %vm1398, %v2154, 0.0
            %v2174 = vadd.f32 %v2172, %v2173
            %v2175 = vsel %vm1398, %v2155, 0.0
            %v2176 = vadd.f32 %v2174, %v2175
            %v2177 = vsel %vm1398, %v2156, 0.0
            %v2178 = vadd.f32 %v2176, %v2177
            %v2179 = vsel %vm1398, %v2157, 0.0
            %v2180 = vadd.f32 %v2178, %v2179
            %v2181 = vsel %vm1398, %v2158, 0.0
            %v2182 = vadd.f32 %v2180, %v2181
            %v2183 = vsel %vm1398, %v2159, 0.0
            %v2184 = vadd.f32 %v2182, %v2183
            %v2185 = vsel %vm1398, %v2160, 0.0
            %v2186 = vadd.f32 %v2184, %v2185
            %v2187 = vsel %vm1398, %v2161, 0.0
            %v2188 = vadd.f32 %v2186, %v2187
            %v2189 = vsel %vm1398, %v2162, 0.0
            %v2190 = vadd.f32 %v2188, %v2189
            %v2191 = vsel %vm1398, %v2163, 0.0
            %v2192 = vadd.f32 %v2190, %v2191
            %v2193 = vsel %vm1398, %v2164, 0.0
            %v2194 = vadd.f32 %v2192, %v2193
            %v2195 = vsel %vm1398, %v2165, 0.0
            %v2196 = vadd.f32 %v2194, %v2195
            %v2197 = vrot.slane %v2196, 4
            %v2198 = vadd.f32 %v2196, %v2197
            %v2199 = vrot.slane %v2198, 2
            %v2200 = vadd.f32 %v2198, %v2199
            %v2201 = vrot.slane %v2200, 1
            %v2202 = vadd.f32 %v2200, %v2201
            %v2203 = vadd.f32 %v2202, 0.0
            %v2204 = vmul.f32 %v2149, 0.015625
            %v2205 = vmul.f32 %v2203, 0.015625
            %v2206 = vmul.f32 %v2204, %v2204
            %v2207 = vsub.f32 %v2205, %v2206
            %v2208 = vmax.f32 %v2207, 0.0
            %v2209 = vadd.f32 %v2208, 1e-05
            %v2210 = vrsqrt.pop %v2209
            %v2211 = vmul.f32 %v1742, %v2210
            %v2212 = vmul.f32 %v2204, %v2211
            %v2213 = vsub.f32 %v1743, %v2212
            %v2214 = vlaneseq
            %v2215 = vshrl.u32 %v2214, 7
            %v2216 = vsub.s32 0, %v2215
            %v2217 = vrot.slane %v2211, %v2216
            %v2218 = vmul.f32 %v2015, %v2217
            %v2219 = vmul.f32 %v2016, %v2217
            %v2220 = vmul.f32 %v2017, %v2217
            %v2221 = vmul.f32 %v2018, %v2217
            %v2222 = vmul.f32 %v2019, %v2217
            %v2223 = vmul.f32 %v2020, %v2217
            %v2224 = vmul.f32 %v2021, %v2217
            %v2225 = vmul.f32 %v2022, %v2217
            %v2226 = vmul.f32 %v2023, %v2217
            %v2227 = vmul.f32 %v2024, %v2217
            %v2228 = vmul.f32 %v2025, %v2217
            %v2229 = vmul.f32 %v2026, %v2217
            %v2230 = vmul.f32 %v2027, %v2217
            %v2231 = vmul.f32 %v2028, %v2217
            %v2232 = vmul.f32 %v2029, %v2217
            %v2233 = vmul.f32 %v2030, %v2217
            %v2234 = vlaneseq
            %v2235 = vshrl.u32 %v2234, 7
            %v2236 = vsub.s32 0, %v2235
            %v2237 = vrot.slane %v2213, %v2236
            %v2238 = vadd.f32 %v2218, %v2237
            %v2239 = vadd.f32 %v2219, %v2237
            %v2240 = vadd.f32 %v2220, %v2237
            %v2241 = vadd.f32 %v2221, %v2237
            %v2242 = vadd.f32 %v2222, %v2237
            %v2243 = vadd.f32 %v2223, %v2237
            %v2244 = vadd.f32 %v2224, %v2237
            %v2245 = vadd.f32 %v2225, %v2237
            %v2246 = vadd.f32 %v2226, %v2237
            %v2247 = vadd.f32 %v2227, %v2237
            %v2248 = vadd.f32 %v2228, %v2237
            %v2249 = vadd.f32 %v2229, %v2237
            %v2250 = vadd.f32 %v2230, %v2237
            %v2251 = vadd.f32 %v2231, %v2237
            %v2252 = vadd.f32 %v2232, %v2237
            %v2253 = vadd.f32 %v2233, %v2237
            %v2254 = vlaneseq
            %v2255 = vshrl.u32 %v2254, 7
            %v2256 = vsub.s32 0, %v2255
            %v2257 = vrot.slane %v1739, %v2256
            %v2259 = vsel %vm1398, %v2238, 0
            %v2262 = vsel %vm1398, %v2239, 0
            %v2265 = vsel %vm1398, %v2240, 0
            %v2268 = vsel %vm1398, %v2241, 0
            %v2271 = vsel %vm1398, %v2242, 0
            %v2274 = vsel %vm1398, %v2243, 0
            %v2277 = vsel %vm1398, %v2244, 0
            %v2280 = vsel %vm1398, %v2245, 0
            %v2283 = vsel %vm1398, %v2246, 0
            %v2286 = vsel %vm1398, %v2247, 0
            %v2289 = vsel %vm1398, %v2248, 0
            %v2292 = vsel %vm1398, %v2249, 0
            %v2295 = vsel %vm1398, %v2250, 0
            %v2298 = vsel %vm1398, %v2251, 0
            %v2301 = vsel %vm1398, %v2252, 0
            %v2304 = vsel %vm1398, %v2253, 0
            %2306 = vmatprep.subr.mxu0 0.0
            %2307 = vmatpush1.msra.mxu0 %v1733
            %2308 = vmatprep.subr.mxu0 0.0
            %2309 = vmatpush1.msra.mxu0 %v1734
            %2310 = vmatprep.subr.mxu0 0.0
            %2311 = vmatpush1.msra.mxu0 0.0
            %2312 = vmatprep.subr.mxu0 0.0
            %2313 = vmatpush1.msra.mxu0 0.0
            %2314 = vmatprep.subr.mxu0 0.0
            %2315 = vmatpush1.msra.mxu0 0.0
            %2316 = vmatprep.subr.mxu0 0.0
            %2317 = vmatpush1.msra.mxu0 0.0
            %2318 = vmatprep.subr.mxu0 0.0
            %2319 = vmatpush1.msra.mxu0 0.0
            %2320 = vmatprep.subr.mxu0 0.0
            %2321 = vmatpush1.msra.mxu0 0.0
            %2322 = vmatprep.subr.mxu0 0.0
            %2323 = vmatpush1.msra.mxu0 0.0
            %2324 = vmatprep.subr.mxu0 0.0
            %2325 = vmatpush1.msra.mxu0 0.0
            %2326 = vmatprep.subr.mxu0 0.0
            %2327 = vmatpush1.msra.mxu0 0.0
            %2328 = vmatprep.subr.mxu0 0.0
            %2329 = vmatpush1.msra.mxu0 0.0
            %2330 = vmatprep.subr.mxu0 0.0
            %2331 = vmatpush1.msra.mxu0 0.0
            %2332 = vmatprep.subr.mxu0 0.0
            %2333 = vmatpush1.msra.mxu0 0.0
            %2334 = vmatprep.subr.mxu0 0.0
            %2335 = vmatpush1.msra.mxu0 0.0
            %2336 = vmatprep.subr.mxu0 0.0
            %2337 = vmatpush1.msra.mxu0 0.0
            %2338 = vmatprep.subr.mxu0 0.0
            %2339 = vmatpush1.msra.mxu0 0.0
            %2340 = vmatprep.subr.mxu0 0.0
            %2341 = vmatpush1.msra.mxu0 0.0
            %2342 = vmatprep.subr.mxu0 0.0
            %2343 = vmatpush1.msra.mxu0 0.0
            %2344 = vmatprep.subr.mxu0 0.0
            %2345 = vmatpush1.msra.mxu0 0.0
            %2346 = vmatprep.subr.mxu0 0.0
            %2347 = vmatpush1.msra.mxu0 0.0
            %2348 = vmatprep.subr.mxu0 0.0
            %2349 = vmatpush1.msra.mxu0 0.0
            %2350 = vmatprep.subr.mxu0 0.0
            %2351 = vmatpush1.msra.mxu0 0.0
            %2352 = vmatprep.subr.mxu0 0.0
            %2353 = vmatpush1.msra.mxu0 0.0
            %2354 = vmatprep.subr.mxu0 0.0
            %2355 = vmatpush1.msra.mxu0 0.0
            %2356 = vmatprep.subr.mxu0 0.0
            %2357 = vmatpush1.msra.mxu0 0.0
            %2358 = vmatprep.subr.mxu0 0.0
            %2359 = vmatpush1.msra.mxu0 0.0
            %2360 = vmatprep.subr.mxu0 0.0
            %2361 = vmatpush1.msra.mxu0 0.0
            %2362 = vmatprep.subr.mxu0 0.0
            %2363 = vmatpush1.msra.mxu0 0.0
            %2364 = vmatprep.subr.mxu0 0.0
            %2365 = vmatpush1.msra.mxu0 0.0
            %2366 = vmatprep.subr.mxu0 0.0
            %2367 = vmatpush1.msra.mxu0 0.0
            %2368 = vmatprep.subr.mxu0 0.0
            %2369 = vmatpush1.msra.mxu0 0.0
            %2370 = vmatprep.mubr.f32.mxu0 0.0
            %2371 = vmatmul.mubr.f32.gmra.mrb[0].mxu0 %v2259
            %v2372 = vpop.f32.mrb[0].mxu0
            %v2373 = vadd.f32 %v2257, %v2372
            %v2374 = vpop.f32.mrb[0].mxu0
            %2375 = vmatprep.mubr.f32.mxu0 0.0
            %2376 = vmatmul.mubr.f32.gmra.mrb[0].mxu0 %v2262
            %v2377 = vpop.f32.mrb[0].mxu0
            %v2378 = vadd.f32 %v2257, %v2377
            %v2379 = vpop.f32.mrb[0].mxu0
            %2380 = vmatprep.mubr.f32.mxu0 0.0
            %2381 = vmatmul.mubr.f32.gmra.mrb[0].mxu0 %v2265
            %v2382 = vpop.f32.mrb[0].mxu0
            %v2383 = vadd.f32 %v2257, %v2382
            %v2384 = vpop.f32.mrb[0].mxu0
            %2385 = vmatprep.mubr.f32.mxu0 0.0
            %2386 = vmatmul.mubr.f32.gmra.mrb[0].mxu0 %v2268
            %v2387 = vpop.f32.mrb[0].mxu0
            %v2388 = vadd.f32 %v2257, %v2387
            %v2389 = vpop.f32.mrb[0].mxu0
            %2390 = vmatprep.mubr.f32.mxu0 0.0
            %2391 = vmatmul.mubr.f32.gmra.mrb[0].mxu0 %v2271
            %v2392 = vpop.f32.mrb[0].mxu0
            %v2393 = vadd.f32 %v2257, %v2392
            %v2394 = vpop.f32.mrb[0].mxu0
            %2395 = vmatprep.mubr.f32.mxu0 0.0
            %2396 = vmatmul.mubr.f32.gmra.mrb[0].mxu0 %v2274
            %v2397 = vpop.f32.mrb[0].mxu0
            %v2398 = vadd.f32 %v2257, %v2397
            %v2399 = vpop.f32.mrb[0].mxu0
            %2400 = vmatprep.mubr.f32.mxu0 0.0
            %2401 = vmatmul.mubr.f32.gmra.mrb[0].mxu0 %v2277
            %v2402 = vpop.f32.mrb[0].mxu0
            %v2403 = vadd.f32 %v2257, %v2402
            %v2404 = vpop.f32.mrb[0].mxu0
            %2405 = vmatprep.mubr.f32.mxu0 0.0
            %2406 = vmatmul.mubr.f32.gmra.mrb[0].mxu0 %v2280
            %v2407 = vpop.f32.mrb[0].mxu0
            %v2408 = vadd.f32 %v2257, %v2407
            %v2409 = vpop.f32.mrb[0].mxu0
            %2410 = vmatprep.mubr.f32.mxu0 0.0
            %2411 = vmatmul.mubr.f32.gmra.mrb[0].mxu0 %v2283
            %v2412 = vpop.f32.mrb[0].mxu0
            %v2413 = vadd.f32 %v2257, %v2412
            %v2414 = vpop.f32.mrb[0].mxu0
            %2415 = vmatprep.mubr.f32.mxu0 0.0
            %2416 = vmatmul.mubr.f32.gmra.mrb[0].mxu0 %v2286
            %v2417 = vpop.f32.mrb[0].mxu0
            %v2418 = vadd.f32 %v2257, %v2417
            %v2419 = vpop.f32.mrb[0].mxu0
            %2420 = vmatprep.mubr.f32.mxu0 0.0
            %2421 = vmatmul.mubr.f32.gmra.mrb[0].mxu0 %v2289
            %v2422 = vpop.f32.mrb[0].mxu0
            %v2423 = vadd.f32 %v2257, %v2422
            %v2424 = vpop.f32.mrb[0].mxu0
            %2425 = vmatprep.mubr.f32.mxu0 0.0
            %2426 = vmatmul.mubr.f32.gmra.mrb[0].mxu0 %v2292
            %v2427 = vpop.f32.mrb[0].mxu0
            %v2428 = vadd.f32 %v2257, %v2427
            %v2429 = vpop.f32.mrb[0].mxu0
            %2430 = vmatprep.mubr.f32.mxu0 0.0
            %2431 = vmatmul.mubr.f32.gmra.mrb[0].mxu0 %v2295
            %v2432 = vpop.f32.mrb[0].mxu0
            %v2433 = vadd.f32 %v2257, %v2432
            %v2434 = vpop.f32.mrb[0].mxu0
            %2435 = vmatprep.mubr.f32.mxu0 0.0
            %2436 = vmatmul.mubr.f32.gmra.mrb[0].mxu0 %v2298
            %v2437 = vpop.f32.mrb[0].mxu0
            %v2438 = vadd.f32 %v2257, %v2437
            %v2439 = vpop.f32.mrb[0].mxu0
            %2440 = vmatprep.mubr.f32.mxu0 0.0
            %2441 = vmatmul.mubr.f32.gmra.mrb[0].mxu0 %v2301
            %v2442 = vpop.f32.mrb[0].mxu0
            %v2443 = vadd.f32 %v2257, %v2442
            %v2444 = vpop.f32.mrb[0].mxu0
            %2445 = vmatprep.mubr.f32.mxu0 0.0
            %2446 = vmatmul.mubr.f32.gmra.mrb[0].mxu0 %v2304
            %v2447 = vpop.f32.mrb[0].mxu0
            %v2448 = vadd.f32 %v2257, %v2447
            %v2449 = vpop.f32.mrb[0].mxu0
            %2450 = vdwg.mxu0
            %v2451 = vmul.f32 %v2373, 0.01
            %v2452 = vmul.f32 %v2378, 0.01
            %v2453 = vmul.f32 %v2383, 0.01
            %v2454 = vmul.f32 %v2388, 0.01
            %v2455 = vmul.f32 %v2393, 0.01
            %v2456 = vmul.f32 %v2398, 0.01
            %v2457 = vmul.f32 %v2403, 0.01
            %v2458 = vmul.f32 %v2408, 0.01
            %v2459 = vmul.f32 %v2413, 0.01
            %v2460 = vmul.f32 %v2418, 0.01
            %v2461 = vmul.f32 %v2423, 0.01
            %v2462 = vmul.f32 %v2428, 0.01
            %v2463 = vmul.f32 %v2433, 0.01
            %v2464 = vmul.f32 %v2438, 0.01
            %v2465 = vmul.f32 %v2443, 0.01
            %v2466 = vmul.f32 %v2448, 0.01
            %v2467 = vmax.f32 %v2373, %v2451
            %v2468 = vmax.f32 %v2378, %v2452
            %v2469 = vmax.f32 %v2383, %v2453
            %v2470 = vmax.f32 %v2388, %v2454
            %v2471 = vmax.f32 %v2393, %v2455
            %v2472 = vmax.f32 %v2398, %v2456
            %v2473 = vmax.f32 %v2403, %v2457
            %v2474 = vmax.f32 %v2408, %v2458
            %v2475 = vmax.f32 %v2413, %v2459
            %v2476 = vmax.f32 %v2418, %v2460
            %v2477 = vmax.f32 %v2423, %v2461
            %v2478 = vmax.f32 %v2428, %v2462
            %v2479 = vmax.f32 %v2433, %v2463
            %v2480 = vmax.f32 %v2438, %v2464
            %v2481 = vmax.f32 %v2443, %v2465
            %v2482 = vmax.f32 %v2448, %v2466
            %v2483 = vmul.f32 %v2467, %v2080
            %v2484 = vmul.f32 %v2468, %v2081
            %v2485 = vmul.f32 %v2469, %v2082
            %v2486 = vmul.f32 %v2470, %v2083
            %v2487 = vmul.f32 %v2471, %v2084
            %v2488 = vmul.f32 %v2472, %v2085
            %v2489 = vmul.f32 %v2473, %v2086
            %v2490 = vmul.f32 %v2474, %v2087
            %v2491 = vmul.f32 %v2475, %v2088
            %v2492 = vmul.f32 %v2476, %v2089
            %v2493 = vmul.f32 %v2477, %v2090
            %v2494 = vmul.f32 %v2478, %v2091
            %v2495 = vmul.f32 %v2479, %v2092
            %v2496 = vmul.f32 %v2480, %v2093
            %v2497 = vmul.f32 %v2481, %v2094
            %v2498 = vmul.f32 %v2482, %v2095
            %v2499 = vsel %vm1398, %v2483, 0.0
            %v2500 = vsel %vm1398, %v2484, 0.0
            %v2501 = vadd.f32 %v2499, %v2500
            %v2502 = vsel %vm1398, %v2485, 0.0
            %v2503 = vadd.f32 %v2501, %v2502
            %v2504 = vsel %vm1398, %v2486, 0.0
            %v2505 = vadd.f32 %v2503, %v2504
            %v2506 = vsel %vm1398, %v2487, 0.0
            %v2507 = vadd.f32 %v2505, %v2506
            %v2508 = vsel %vm1398, %v2488, 0.0
            %v2509 = vadd.f32 %v2507, %v2508
            %v2510 = vsel %vm1398, %v2489, 0.0
            %v2511 = vadd.f32 %v2509, %v2510
            %v2512 = vsel %vm1398, %v2490, 0.0
            %v2513 = vadd.f32 %v2511, %v2512
            %v2514 = vsel %vm1398, %v2491, 0.0
            %v2515 = vadd.f32 %v2513, %v2514
            %v2516 = vsel %vm1398, %v2492, 0.0
            %v2517 = vadd.f32 %v2515, %v2516
            %v2518 = vsel %vm1398, %v2493, 0.0
            %v2519 = vadd.f32 %v2517, %v2518
            %v2520 = vsel %vm1398, %v2494, 0.0
            %v2521 = vadd.f32 %v2519, %v2520
            %v2522 = vsel %vm1398, %v2495, 0.0
            %v2523 = vadd.f32 %v2521, %v2522
            %v2524 = vsel %vm1398, %v2496, 0.0
            %v2525 = vadd.f32 %v2523, %v2524
            %v2526 = vsel %vm1398, %v2497, 0.0
            %v2527 = vadd.f32 %v2525, %v2526
            %v2528 = vsel %vm1398, %v2498, 0.0
            %v2529 = vadd.f32 %v2527, %v2528
            %v2530 = vrot.slane %v2529, 4
            %v2531 = vadd.f32 %v2529, %v2530
            %v2532 = vrot.slane %v2531, 2
            %v2533 = vadd.f32 %v2531, %v2532
            %v2534 = vrot.slane %v2533, 1
            %v2535 = vadd.f32 %v2533, %v2534
            %v2536 = vadd.f32 %v2535, 0.0
            %v2537 = vmul.f32 %v2483, %v2483
            %v2538 = vmul.f32 %v2484, %v2484
            %v2539 = vmul.f32 %v2485, %v2485
            %v2540 = vmul.f32 %v2486, %v2486
            %v2541 = vmul.f32 %v2487, %v2487
            %v2542 = vmul.f32 %v2488, %v2488
            %v2543 = vmul.f32 %v2489, %v2489
            %v2544 = vmul.f32 %v2490, %v2490
            %v2545 = vmul.f32 %v2491, %v2491
            %v2546 = vmul.f32 %v2492, %v2492
            %v2547 = vmul.f32 %v2493, %v2493
            %v2548 = vmul.f32 %v2494, %v2494
            %v2549 = vmul.f32 %v2495, %v2495
            %v2550 = vmul.f32 %v2496, %v2496
            %v2551 = vmul.f32 %v2497, %v2497
            %v2552 = vmul.f32 %v2498, %v2498
            %v2553 = vsel %vm1398, %v2537, 0.0
            %v2554 = vsel %vm1398, %v2538, 0.0
            %v2555 = vadd.f32 %v2553, %v2554
            %v2556 = vsel %vm1398, %v2539, 0.0
            %v2557 = vadd.f32 %v2555, %v2556
            %v2558 = vsel %vm1398, %v2540, 0.0
            %v2559 = vadd.f32 %v2557, %v2558
            %v2560 = vsel %vm1398, %v2541, 0.0
            %v2561 = vadd.f32 %v2559, %v2560
            %v2562 = vsel %vm1398, %v2542, 0.0
            %v2563 = vadd.f32 %v2561, %v2562
            %v2564 = vsel %vm1398, %v2543, 0.0
            %v2565 = vadd.f32 %v2563, %v2564
            %v2566 = vsel %vm1398, %v2544, 0.0
            %v2567 = vadd.f32 %v2565, %v2566
            %v2568 = vsel %vm1398, %v2545, 0.0
            %v2569 = vadd.f32 %v2567, %v2568
            %v2570 = vsel %vm1398, %v2546, 0.0
            %v2571 = vadd.f32 %v2569, %v2570
            %v2572 = vsel %vm1398, %v2547, 0.0
            %v2573 = vadd.f32 %v2571, %v2572
            %v2574 = vsel %vm1398, %v2548, 0.0
            %v2575 = vadd.f32 %v2573, %v2574
            %v2576 = vsel %vm1398, %v2549, 0.0
            %v2577 = vadd.f32 %v2575, %v2576
            %v2578 = vsel %vm1398, %v2550, 0.0
            %v2579 = vadd.f32 %v2577, %v2578
            %v2580 = vsel %vm1398, %v2551, 0.0
            %v2581 = vadd.f32 %v2579, %v2580
            %v2582 = vsel %vm1398, %v2552, 0.0
            %v2583 = vadd.f32 %v2581, %v2582
            %v2584 = vrot.slane %v2583, 4
            %v2585 = vadd.f32 %v2583, %v2584
            %v2586 = vrot.slane %v2585, 2
            %v2587 = vadd.f32 %v2585, %v2586
            %v2588 = vrot.slane %v2587, 1
            %v2589 = vadd.f32 %v2587, %v2588
            %v2590 = vadd.f32 %v2589, 0.0
            %v2591 = vmul.f32 %v2536, 0.015625
            %v2592 = vmul.f32 %v2590, 0.015625
            %v2593 = vmul.f32 %v2591, %v2591
            %v2594 = vsub.f32 %v2592, %v2593
            %v2595 = vmax.f32 %v2594, 0.0
            %v2596 = vadd.f32 %v2595, 1e-05
            %v2597 = vrsqrt.pop %v2596
            %v2598 = vmul.f32 %v1744, %v2597
            %v2599 = vmul.f32 %v2591, %v2598
            %v2600 = vsub.f32 %v1745, %v2599
            %v2601 = vlaneseq
            %v2602 = vshrl.u32 %v2601, 7
            %v2603 = vsub.s32 0, %v2602
            %v2604 = vrot.slane %v2598, %v2603
            %v2605 = vmul.f32 %v2467, %v2604
            %v2606 = vmul.f32 %v2468, %v2604
            %v2607 = vmul.f32 %v2469, %v2604
            %v2608 = vmul.f32 %v2470, %v2604
            %v2609 = vmul.f32 %v2471, %v2604
            %v2610 = vmul.f32 %v2472, %v2604
            %v2611 = vmul.f32 %v2473, %v2604
            %v2612 = vmul.f32 %v2474, %v2604
            %v2613 = vmul.f32 %v2475, %v2604
            %v2614 = vmul.f32 %v2476, %v2604
            %v2615 = vmul.f32 %v2477, %v2604
            %v2616 = vmul.f32 %v2478, %v2604
            %v2617 = vmul.f32 %v2479, %v2604
            %v2618 = vmul.f32 %v2480, %v2604
            %v2619 = vmul.f32 %v2481, %v2604
            %v2620 = vmul.f32 %v2482, %v2604
            %v2621 = vlaneseq
            %v2622 = vshrl.u32 %v2621, 7
            %v2623 = vsub.s32 0, %v2622
            %v2624 = vrot.slane %v2600, %v2623
            %v2625 = vadd.f32 %v2605, %v2624
            %v2626 = vadd.f32 %v2606, %v2624
            %v2627 = vadd.f32 %v2607, %v2624
            %v2628 = vadd.f32 %v2608, %v2624
            %v2629 = vadd.f32 %v2609, %v2624
            %v2630 = vadd.f32 %v2610, %v2624
            %v2631 = vadd.f32 %v2611, %v2624
            %v2632 = vadd.f32 %v2612, %v2624
            %v2633 = vadd.f32 %v2613, %v2624
            %v2634 = vadd.f32 %v2614, %v2624
            %v2635 = vadd.f32 %v2615, %v2624
            %v2636 = vadd.f32 %v2616, %v2624
            %v2637 = vadd.f32 %v2617, %v2624
            %v2638 = vadd.f32 %v2618, %v2624
            %v2639 = vadd.f32 %v2619, %v2624
            %v2640 = vadd.f32 %v2620, %v2624
            %v2641 = vlaneseq
            %v2642 = vshrl.u32 %v2641, 7
            %v2643 = vsub.s32 0, %v2642
            %v2644 = vrot.slane %v1740, %v2643
            %v2646 = vsel %vm1398, %v2625, 0
            %v2649 = vsel %vm1398, %v2626, 0
            %v2652 = vsel %vm1398, %v2627, 0
            %v2655 = vsel %vm1398, %v2628, 0
            %v2658 = vsel %vm1398, %v2629, 0
            %v2661 = vsel %vm1398, %v2630, 0
            %v2664 = vsel %vm1398, %v2631, 0
            %v2667 = vsel %vm1398, %v2632, 0
            %v2670 = vsel %vm1398, %v2633, 0
            %v2673 = vsel %vm1398, %v2634, 0
            %v2676 = vsel %vm1398, %v2635, 0
            %v2679 = vsel %vm1398, %v2636, 0
            %v2682 = vsel %vm1398, %v2637, 0
            %v2685 = vsel %vm1398, %v2638, 0
            %v2688 = vsel %vm1398, %v2639, 0
            %v2691 = vsel %vm1398, %v2640, 0
            %2693 = vmatprep.subr.mxu0 0.0
            %2694 = vmatpush1.msra.mxu0 %v1735
            %2695 = vmatprep.subr.mxu0 0.0
            %2696 = vmatpush1.msra.mxu0 %v1736
            %2697 = vmatprep.subr.mxu0 0.0
            %2698 = vmatpush1.msra.mxu0 0.0
            %2699 = vmatprep.subr.mxu0 0.0
            %2700 = vmatpush1.msra.mxu0 0.0
            %2701 = vmatprep.subr.mxu0 0.0
            %2702 = vmatpush1.msra.mxu0 0.0
            %2703 = vmatprep.subr.mxu0 0.0
            %2704 = vmatpush1.msra.mxu0 0.0
            %2705 = vmatprep.subr.mxu0 0.0
            %2706 = vmatpush1.msra.mxu0 0.0
            %2707 = vmatprep.subr.mxu0 0.0
            %2708 = vmatpush1.msra.mxu0 0.0
            %2709 = vmatprep.subr.mxu0 0.0
            %2710 = vmatpush1.msra.mxu0 0.0
            %2711 = vmatprep.subr.mxu0 0.0
            %2712 = vmatpush1.msra.mxu0 0.0
            %2713 = vmatprep.subr.mxu0 0.0
            %2714 = vmatpush1.msra.mxu0 0.0
            %2715 = vmatprep.subr.mxu0 0.0
            %2716 = vmatpush1.msra.mxu0 0.0
            %2717 = vmatprep.subr.mxu0 0.0
            %2718 = vmatpush1.msra.mxu0 0.0
            %2719 = vmatprep.subr.mxu0 0.0
            %2720 = vmatpush1.msra.mxu0 0.0
            %2721 = vmatprep.subr.mxu0 0.0
            %2722 = vmatpush1.msra.mxu0 0.0
            %2723 = vmatprep.subr.mxu0 0.0
            %2724 = vmatpush1.msra.mxu0 0.0
            %2725 = vmatprep.subr.mxu0 0.0
            %2726 = vmatpush1.msra.mxu0 0.0
            %2727 = vmatprep.subr.mxu0 0.0
            %2728 = vmatpush1.msra.mxu0 0.0
            %2729 = vmatprep.subr.mxu0 0.0
            %2730 = vmatpush1.msra.mxu0 0.0
            %2731 = vmatprep.subr.mxu0 0.0
            %2732 = vmatpush1.msra.mxu0 0.0
            %2733 = vmatprep.subr.mxu0 0.0
            %2734 = vmatpush1.msra.mxu0 0.0
            %2735 = vmatprep.subr.mxu0 0.0
            %2736 = vmatpush1.msra.mxu0 0.0
            %2737 = vmatprep.subr.mxu0 0.0
            %2738 = vmatpush1.msra.mxu0 0.0
            %2739 = vmatprep.subr.mxu0 0.0
            %2740 = vmatpush1.msra.mxu0 0.0
            %2741 = vmatprep.subr.mxu0 0.0
            %2742 = vmatpush1.msra.mxu0 0.0
            %2743 = vmatprep.subr.mxu0 0.0
            %2744 = vmatpush1.msra.mxu0 0.0
            %2745 = vmatprep.subr.mxu0 0.0
            %2746 = vmatpush1.msra.mxu0 0.0
            %2747 = vmatprep.subr.mxu0 0.0
            %2748 = vmatpush1.msra.mxu0 0.0
            %2749 = vmatprep.subr.mxu0 0.0
            %2750 = vmatpush1.msra.mxu0 0.0
            %2751 = vmatprep.subr.mxu0 0.0
            %2752 = vmatpush1.msra.mxu0 0.0
            %2753 = vmatprep.subr.mxu0 0.0
            %2754 = vmatpush1.msra.mxu0 0.0
            %2755 = vmatprep.subr.mxu0 0.0
            %2756 = vmatpush1.msra.mxu0 0.0
            %2757 = vmatprep.mubr.f32.mxu0 0.0
            %2758 = vmatmul.mubr.f32.gmra.mrb[0].mxu0 %v2646
            %v2759 = vpop.f32.mrb[0].mxu0
            %v2760 = vadd.f32 %v2644, %v2759
            %v2761 = vpop.f32.mrb[0].mxu0
            %2762 = vmatprep.mubr.f32.mxu0 0.0
            %2763 = vmatmul.mubr.f32.gmra.mrb[0].mxu0 %v2649
            %v2764 = vpop.f32.mrb[0].mxu0
            %v2765 = vadd.f32 %v2644, %v2764
            %v2766 = vpop.f32.mrb[0].mxu0
            %2767 = vmatprep.mubr.f32.mxu0 0.0
            %2768 = vmatmul.mubr.f32.gmra.mrb[0].mxu0 %v2652
            %v2769 = vpop.f32.mrb[0].mxu0
            %v2770 = vadd.f32 %v2644, %v2769
            %v2771 = vpop.f32.mrb[0].mxu0
            %2772 = vmatprep.mubr.f32.mxu0 0.0
            %2773 = vmatmul.mubr.f32.gmra.mrb[0].mxu0 %v2655
            %v2774 = vpop.f32.mrb[0].mxu0
            %v2775 = vadd.f32 %v2644, %v2774
            %v2776 = vpop.f32.mrb[0].mxu0
            %2777 = vmatprep.mubr.f32.mxu0 0.0
            %2778 = vmatmul.mubr.f32.gmra.mrb[0].mxu0 %v2658
            %v2779 = vpop.f32.mrb[0].mxu0
            %v2780 = vadd.f32 %v2644, %v2779
            %v2781 = vpop.f32.mrb[0].mxu0
            %2782 = vmatprep.mubr.f32.mxu0 0.0
            %2783 = vmatmul.mubr.f32.gmra.mrb[0].mxu0 %v2661
            %v2784 = vpop.f32.mrb[0].mxu0
            %v2785 = vadd.f32 %v2644, %v2784
            %v2786 = vpop.f32.mrb[0].mxu0
            %2787 = vmatprep.mubr.f32.mxu0 0.0
            %2788 = vmatmul.mubr.f32.gmra.mrb[0].mxu0 %v2664
            %v2789 = vpop.f32.mrb[0].mxu0
            %v2790 = vadd.f32 %v2644, %v2789
            %v2791 = vpop.f32.mrb[0].mxu0
            %2792 = vmatprep.mubr.f32.mxu0 0.0
            %2793 = vmatmul.mubr.f32.gmra.mrb[0].mxu0 %v2667
            %v2794 = vpop.f32.mrb[0].mxu0
            %v2795 = vadd.f32 %v2644, %v2794
            %v2796 = vpop.f32.mrb[0].mxu0
            %2797 = vmatprep.mubr.f32.mxu0 0.0
            %2798 = vmatmul.mubr.f32.gmra.mrb[0].mxu0 %v2670
            %v2799 = vpop.f32.mrb[0].mxu0
            %v2800 = vadd.f32 %v2644, %v2799
            %v2801 = vpop.f32.mrb[0].mxu0
            %2802 = vmatprep.mubr.f32.mxu0 0.0
            %2803 = vmatmul.mubr.f32.gmra.mrb[0].mxu0 %v2673
            %v2804 = vpop.f32.mrb[0].mxu0
            %v2805 = vadd.f32 %v2644, %v2804
            %v2806 = vpop.f32.mrb[0].mxu0
            %2807 = vmatprep.mubr.f32.mxu0 0.0
            %2808 = vmatmul.mubr.f32.gmra.mrb[0].mxu0 %v2676
            %v2809 = vpop.f32.mrb[0].mxu0
            %v2810 = vadd.f32 %v2644, %v2809
            %v2811 = vpop.f32.mrb[0].mxu0
            %2812 = vmatprep.mubr.f32.mxu0 0.0
            %2813 = vmatmul.mubr.f32.gmra.mrb[0].mxu0 %v2679
            %v2814 = vpop.f32.mrb[0].mxu0
            %v2815 = vadd.f32 %v2644, %v2814
            %v2816 = vpop.f32.mrb[0].mxu0
            %2817 = vmatprep.mubr.f32.mxu0 0.0
            %2818 = vmatmul.mubr.f32.gmra.mrb[0].mxu0 %v2682
            %v2819 = vpop.f32.mrb[0].mxu0
            %v2820 = vadd.f32 %v2644, %v2819
            %v2821 = vpop.f32.mrb[0].mxu0
            %2822 = vmatprep.mubr.f32.mxu0 0.0
            %2823 = vmatmul.mubr.f32.gmra.mrb[0].mxu0 %v2685
            %v2824 = vpop.f32.mrb[0].mxu0
            %v2825 = vadd.f32 %v2644, %v2824
            %v2826 = vpop.f32.mrb[0].mxu0
            %2827 = vmatprep.mubr.f32.mxu0 0.0
            %2828 = vmatmul.mubr.f32.gmra.mrb[0].mxu0 %v2688
            %v2829 = vpop.f32.mrb[0].mxu0
            %v2830 = vadd.f32 %v2644, %v2829
            %v2831 = vpop.f32.mrb[0].mxu0
            %2832 = vmatprep.mubr.f32.mxu0 0.0
            %2833 = vmatmul.mubr.f32.gmra.mrb[0].mxu0 %v2691
            %v2834 = vpop.f32.mrb[0].mxu0
            %v2835 = vadd.f32 %v2644, %v2834
            %v2836 = vpop.f32.mrb[0].mxu0
            %2837 = vdwg.mxu0
            %v2838 = vmul.f32 %v2760, 0.01
            %v2839 = vmul.f32 %v2765, 0.01
            %v2840 = vmul.f32 %v2770, 0.01
            %v2841 = vmul.f32 %v2775, 0.01
            %v2842 = vmul.f32 %v2780, 0.01
            %v2843 = vmul.f32 %v2785, 0.01
            %v2844 = vmul.f32 %v2790, 0.01
            %v2845 = vmul.f32 %v2795, 0.01
            %v2846 = vmul.f32 %v2800, 0.01
            %v2847 = vmul.f32 %v2805, 0.01
            %v2848 = vmul.f32 %v2810, 0.01
            %v2849 = vmul.f32 %v2815, 0.01
            %v2850 = vmul.f32 %v2820, 0.01
            %v2851 = vmul.f32 %v2825, 0.01
            %v2852 = vmul.f32 %v2830, 0.01
            %v2853 = vmul.f32 %v2835, 0.01
            %v2854 = vmax.f32 %v2760, %v2838
            %v2855 = vmax.f32 %v2765, %v2839
            %v2856 = vmax.f32 %v2770, %v2840
            %v2857 = vmax.f32 %v2775, %v2841
            %v2858 = vmax.f32 %v2780, %v2842
            %v2859 = vmax.f32 %v2785, %v2843
            %v2860 = vmax.f32 %v2790, %v2844
            %v2861 = vmax.f32 %v2795, %v2845
            %v2862 = vmax.f32 %v2800, %v2846
            %v2863 = vmax.f32 %v2805, %v2847
            %v2864 = vmax.f32 %v2810, %v2848
            %v2865 = vmax.f32 %v2815, %v2849
            %v2866 = vmax.f32 %v2820, %v2850
            %v2867 = vmax.f32 %v2825, %v2851
            %v2868 = vmax.f32 %v2830, %v2852
            %v2869 = vmax.f32 %v2835, %v2853
            %v2870 = vlaneseq
            %v2871 = vshrl.u32 %v2870, 7
            %v2872 = vsub.s32 0, %v2871
            %v2873 = vrot.slane %v1737, %v2872
            %v2874 = vmul.f32 %v2854, %v2873
            %v2875 = vmul.f32 %v2855, %v2873
            %v2876 = vmul.f32 %v2856, %v2873
            %v2877 = vmul.f32 %v2857, %v2873
            %v2878 = vmul.f32 %v2858, %v2873
            %v2879 = vmul.f32 %v2859, %v2873
            %v2880 = vmul.f32 %v2860, %v2873
            %v2881 = vmul.f32 %v2861, %v2873
            %v2882 = vmul.f32 %v2862, %v2873
            %v2883 = vmul.f32 %v2863, %v2873
            %v2884 = vmul.f32 %v2864, %v2873
            %v2885 = vmul.f32 %v2865, %v2873
            %v2886 = vmul.f32 %v2866, %v2873
            %v2887 = vmul.f32 %v2867, %v2873
            %v2888 = vmul.f32 %v2868, %v2873
            %v2889 = vmul.f32 %v2869, %v2873
            %v2890 = vsel %vm1398, %v2874, 0.0
            %2891 = vadd.xlane.f32.xlu0 %v2890
            %v2892 = vpop.xlane.xlu0 %2891
            %v2893 = vsel %vm1398, %v2875, 0.0
            %2894 = vadd.xlane.f32.xlu0 %v2893
            %v2895 = vpop.xlane.xlu0 %2894
            %v2896 = vsel %vm1398, %v2876, 0.0
            %2897 = vadd.xlane.f32.xlu0 %v2896
            %v2898 = vpop.xlane.xlu0 %2897
            %v2899 = vsel %vm1398, %v2877, 0.0
            %2900 = vadd.xlane.f32.xlu0 %v2899
            %v2901 = vpop.xlane.xlu0 %2900
            %v2902 = vsel %vm1398, %v2878, 0.0
            %2903 = vadd.xlane.f32.xlu0 %v2902
            %v2904 = vpop.xlane.xlu0 %2903
            %v2905 = vsel %vm1398, %v2879, 0.0
            %2906 = vadd.xlane.f32.xlu0 %v2905
            %v2907 = vpop.xlane.xlu0 %2906
            %v2908 = vsel %vm1398, %v2880, 0.0
            %2909 = vadd.xlane.f32.xlu0 %v2908
            %v2910 = vpop.xlane.xlu0 %2909
            %v2911 = vsel %vm1398, %v2881, 0.0
            %2912 = vadd.xlane.f32.xlu0 %v2911
            %v2913 = vpop.xlane.xlu0 %2912
            %v2914 = vsel %vm1398, %v2882, 0.0
            %2915 = vadd.xlane.f32.xlu0 %v2914
            %v2916 = vpop.xlane.xlu0 %2915
            %v2917 = vsel %vm1398, %v2883, 0.0
            %2918 = vadd.xlane.f32.xlu0 %v2917
            %v2919 = vpop.xlane.xlu0 %2918
            %v2920 = vsel %vm1398, %v2884, 0.0
            %2921 = vadd.xlane.f32.xlu0 %v2920
            %v2922 = vpop.xlane.xlu0 %2921
            %v2923 = vsel %vm1398, %v2885, 0.0
            %2924 = vadd.xlane.f32.xlu0 %v2923
            %v2925 = vpop.xlane.xlu0 %2924
            %v2926 = vsel %vm1398, %v2886, 0.0
            %2927 = vadd.xlane.f32.xlu0 %v2926
            %v2928 = vpop.xlane.xlu0 %2927
            %v2929 = vsel %vm1398, %v2887, 0.0
            %2930 = vadd.xlane.f32.xlu0 %v2929
            %v2931 = vpop.xlane.xlu0 %2930
            %v2932 = vsel %vm1398, %v2888, 0.0
            %2933 = vadd.xlane.f32.xlu0 %v2932
            %v2934 = vpop.xlane.xlu0 %2933
            %v2935 = vsel %vm1398, %v2889, 0.0
            %2936 = vadd.xlane.f32.xlu0 %v2935
            %v2937 = vpop.xlane.xlu0 %2936
            %v2938 = vlaneseq
            %v2939 = vshrl.u32 %v2938, 7
            %v2940 = vsub.s32 0, %v2939
            %v2941 = vrot.slane %v1741, %v2940
            %v2942 = vadd.f32 %v2892, %v2941
            %v2943 = vadd.f32 %v2895, %v2941
            %v2944 = vadd.f32 %v2898, %v2941
            %v2945 = vadd.f32 %v2901, %v2941
            %v2946 = vadd.f32 %v2904, %v2941
            %v2947 = vadd.f32 %v2907, %v2941
            %v2948 = vadd.f32 %v2910, %v2941
            %v2949 = vadd.f32 %v2913, %v2941
            %v2950 = vadd.f32 %v2916, %v2941
            %v2951 = vadd.f32 %v2919, %v2941
            %v2952 = vadd.f32 %v2922, %v2941
            %v2953 = vadd.f32 %v2925, %v2941
            %v2954 = vadd.f32 %v2928, %v2941
            %v2955 = vadd.f32 %v2931, %v2941
            %v2956 = vadd.f32 %v2934, %v2941
            %v2957 = vadd.f32 %v2937, %v2941
            %2974 = vset.pattern.permute.xlu0 0
            %2975 = vperm.xlu0 %2974, %v2942
            %v2976 = vpop.permute.xlu0 %2975
            %2977 = vset.pattern.permute.xlu0 0
            %2978 = vperm.xlu0 %2977, %v2943
            %v2979 = vpop.permute.xlu0 %2978
            %2980 = vset.pattern.permute.xlu0 0
            %2981 = vperm.xlu0 %2980, %v2944
            %v2982 = vpop.permute.xlu0 %2981
            %2983 = vset.pattern.permute.xlu0 0
            %2984 = vperm.xlu0 %2983, %v2945
            %v2985 = vpop.permute.xlu0 %2984
            %2986 = vset.pattern.permute.xlu0 0
            %2987 = vperm.xlu0 %2986, %v2946
            %v2988 = vpop.permute.xlu0 %2987
            %2989 = vset.pattern.permute.xlu0 0
            %2990 = vperm.xlu0 %2989, %v2947
            %v2991 = vpop.permute.xlu0 %2990
            %2992 = vset.pattern.permute.xlu0 0
            %2993 = vperm.xlu0 %2992, %v2948
            %v2994 = vpop.permute.xlu0 %2993
            %2995 = vset.pattern.permute.xlu0 0
            %2996 = vperm.xlu0 %2995, %v2949
            %v2997 = vpop.permute.xlu0 %2996
            %2998 = vset.pattern.permute.xlu0 0
            %2999 = vperm.xlu0 %2998, %v2950
            %v3000 = vpop.permute.xlu0 %2999
            %3001 = vset.pattern.permute.xlu0 0
            %3002 = vperm.xlu0 %3001, %v2951
            %v3003 = vpop.permute.xlu0 %3002
            %3004 = vset.pattern.permute.xlu0 0
            %3005 = vperm.xlu0 %3004, %v2952
            %v3006 = vpop.permute.xlu0 %3005
            %3007 = vset.pattern.permute.xlu0 0
            %3008 = vperm.xlu0 %3007, %v2953
            %v3009 = vpop.permute.xlu0 %3008
            %3010 = vset.pattern.permute.xlu0 0
            %3011 = vperm.xlu0 %3010, %v2954
            %v3012 = vpop.permute.xlu0 %3011
            %3013 = vset.pattern.permute.xlu0 0
            %3014 = vperm.xlu0 %3013, %v2955
            %v3015 = vpop.permute.xlu0 %3014
            %3016 = vset.pattern.permute.xlu0 0
            %3017 = vperm.xlu0 %3016, %v2956
            %v3018 = vpop.permute.xlu0 %3017
            %3019 = vset.pattern.permute.xlu0 0
            %3020 = vperm.xlu0 %3019, %v2957
            %v3021 = vpop.permute.xlu0 %3020
            %v3022 = vlaneseq
            %v3023 = vand.u32 %v3022, 127
            %v3024 = vlaneseq
            %v3025 = vshrl.u32 %v3024, 7
            %v3026 = vsub.s32 %v3023, %v3025
            %v3027 = vrot.slane %v2976, %v3026
            %v3028 = vadd.s32 %v3023, 4294967288
            %v3029 = vlaneseq
            %v3030 = vshrl.u32 %v3029, 7
            %v3031 = vsub.s32 %v3028, %v3030
            %v3032 = vrot.slane %v2979, %v3031
            %vm3033 = vcmask 130112
            %v3034 = vsel %vm3033, %v3032, %v3027
            %v3035 = vadd.s32 %v3023, 4294967280
            %v3036 = vlaneseq
            %v3037 = vshrl.u32 %v3036, 7
            %v3038 = vsub.s32 %v3035, %v3037
            %v3039 = vrot.slane %v2982, %v3038
            %vm3040 = vcmask 195712
            %v3041 = vsel %vm3040, %v3039, %v3034
            %v3042 = vadd.s32 %v3023, 4294967272
            %v3043 = vlaneseq
            %v3044 = vshrl.u32 %v3043, 7
            %v3045 = vsub.s32 %v3042, %v3044
            %v3046 = vrot.slane %v2985, %v3045
            %vm3047 = vcmask 261312
            %v3048 = vsel %vm3047, %v3046, %v3041
            %v3049 = vadd.s32 %v3023, 4294967264
            %v3050 = vlaneseq
            %v3051 = vshrl.u32 %v3050, 7
            %v3052 = vsub.s32 %v3049, %v3051
            %v3053 = vrot.slane %v2988, %v3052
            %vm3054 = vcmask 326912
            %v3055 = vsel %vm3054, %v3053, %v3048
            %v3056 = vadd.s32 %v3023, 4294967256
            %v3057 = vlaneseq
            %v3058 = vshrl.u32 %v3057, 7
            %v3059 = vsub.s32 %v3056, %v3058
            %v3060 = vrot.slane %v2991, %v3059
            %vm3061 = vcmask 392512
            %v3062 = vsel %vm3061, %v3060, %v3055
            %v3063 = vadd.s32 %v3023, 4294967248
            %v3064 = vlaneseq
            %v3065 = vshrl.u32 %v3064, 7
            %v3066 = vsub.s32 %v3063, %v3065
            %v3067 = vrot.slane %v2994, %v3066
            %vm3068 = vcmask 458112
            %v3069 = vsel %vm3068, %v3067, %v3062
            %v3070 = vadd.s32 %v3023, 4294967240
            %v3071 = vlaneseq
            %v3072 = vshrl.u32 %v3071, 7
            %v3073 = vsub.s32 %v3070, %v3072
            %v3074 = vrot.slane %v2997, %v3073
            %vm3075 = vcmask 523712
            %v3076 = vsel %vm3075, %v3074, %v3069
            %v3077 = vadd.s32 %v3023, 4294967232
            %v3078 = vlaneseq
            %v3079 = vshrl.u32 %v3078, 7
            %v3080 = vsub.s32 %v3077, %v3079
            %v3081 = vrot.slane %v3000, %v3080
            %vm3082 = vcmask 589312
            %v3083 = vsel %vm3082, %v3081, %v3076
            %v3084 = vadd.s32 %v3023, 4294967224
            %v3085 = vlaneseq
            %v3086 = vshrl.u32 %v3085, 7
            %v3087 = vsub.s32 %v3084, %v3086
            %v3088 = vrot.slane %v3003, %v3087
            %vm3089 = vcmask 654912
            %v3090 = vsel %vm3089, %v3088, %v3083
            %v3091 = vadd.s32 %v3023, 4294967216
            %v3092 = vlaneseq
            %v3093 = vshrl.u32 %v3092, 7
            %v3094 = vsub.s32 %v3091, %v3093
            %v3095 = vrot.slane %v3006, %v3094
            %vm3096 = vcmask 720512
            %v3097 = vsel %vm3096, %v3095, %v3090
            %v3098 = vadd.s32 %v3023, 4294967208
            %v3099 = vlaneseq
            %v3100 = vshrl.u32 %v3099, 7
            %v3101 = vsub.s32 %v3098, %v3100
            %v3102 = vrot.slane %v3009, %v3101
            %vm3103 = vcmask 786112
            %v3104 = vsel %vm3103, %v3102, %v3097
            %v3105 = vadd.s32 %v3023, 4294967200
            %v3106 = vlaneseq
            %v3107 = vshrl.u32 %v3106, 7
            %v3108 = vsub.s32 %v3105, %v3107
            %v3109 = vrot.slane %v3012, %v3108
            %vm3110 = vcmask 851712
            %v3111 = vsel %vm3110, %v3109, %v3104
            %v3112 = vadd.s32 %v3023, 4294967192
            %v3113 = vlaneseq
            %v3114 = vshrl.u32 %v3113, 7
            %v3115 = vsub.s32 %v3112, %v3114
            %v3116 = vrot.slane %v3015, %v3115
            %vm3117 = vcmask 917312
            %v3118 = vsel %vm3117, %v3116, %v3111
            %v3119 = vadd.s32 %v3023, 4294967184
            %v3120 = vlaneseq
            %v3121 = vshrl.u32 %v3120, 7
            %v3122 = vsub.s32 %v3119, %v3121
            %v3123 = vrot.slane %v3018, %v3122
            %vm3124 = vcmask 982912
            %v3125 = vsel %vm3124, %v3123, %v3118
            %v3126 = vadd.s32 %v3023, 4294967176
            %v3127 = vlaneseq
            %v3128 = vshrl.u32 %v3127, 7
            %v3129 = vsub.s32 %v3126, %v3128
            %v3130 = vrot.slane %v3021, %v3129
            %vm3131 = vcmask 1048512
            %v3132 = vsel %vm3131, %v3130, %v3125
            %3134 = vst [vmem:[#allocation5] sm:$0x1] %v3132
          $region72: #{tpu_custom_call.1} parent=59 // pred_fallthru
            _
        $region60: #{tpu_custom_call.1} parent=35 // pred_fallthru
          _
        // Predicated region
        $region73: #{tpu_custom_call.1} parent=35 // pred_check
          %p3135 = pneg %p130
        $region74: #{tpu_custom_call.1} parent=35 // pred_check_branch
          %3137 = sbr.rel (%p3135) target = $region76
        $region75: #{tpu_custom_call.1} parent=35 // pred_region
          %s3139 = ssub.s32 16, 16
          %3140 = vsyncadd [#allocation6], %s3139
          %s3142 = sshll.u32 [#allocation5], 4
          %s3143 = int_to_ptr.vmem [resolvable:$true] %s3142
          %3145 = dma.vmem_to_hbm [thread:$0]  %s3143, 16, %s4, [#allocation6]
        $region76: #{tpu_custom_call.1} parent=35 // pred_fallthru
          _
        // Predicated region
        $region77: #{tpu_custom_call.1} parent=35 // pred_check
          %p3146 = pneg %p130
        $region78: #{tpu_custom_call.1} parent=35 // pred_check_branch
          %3148 = sbr.rel (%p3146) target = $region80
        $region79: #{tpu_custom_call.1} parent=35 // pred_region
          %3149 = dma.done [#allocation6], 16
        $region80: #{tpu_custom_call.1} parent=35 // pred_fallthru
          _
      $region36: #{tpu_custom_call.1} parent=5 // pred_fallthru
        _
      %p3150 = scmp.le.s32.totalorder 2, %s11
      // Predicated region
      $region81: #{tpu_custom_call.1} parent=5 // pred_check
        %p3151 = pneg %p3150
      $region82: #{tpu_custom_call.1} parent=5 // pred_check_branch
        %3153 = sbr.rel (%p3151) target = $region84
      $region83: #{tpu_custom_call.1} parent=5 // pred_region
        %s3154 = ssub.s32 %s11, 2
      $region84: #{tpu_custom_call.1} parent=5 // pred_fallthru
        _
    $region6: #{tpu_custom_call.1} parent=1 // loop_footer
      %s15 = sadd.s32 1, %s11
    $region7: #{tpu_custom_call.1} parent=1 // loop_footer_branch
      %10 = sbr.rel target = $region3
    $region8: #{tpu_custom_call.1} parent=1 // loop_exit
      _
    %3155 = vsyncpa [#allocation6], 1
    %s3156 = scalar_lea.sflag [#allocation6], 1
    %3157 = vsyncpa %s3156, 1

</llo_original>
